<compile_context>
chip_gen: v6e
topology: v6e:2x2x1
jax: 0.10.0
libtpu: 0.0.40
codegen_flags: <defaults>
</compile_context>

<pallas_src>
import jax
import jax.numpy as jnp
from jax import lax
from jax.experimental import pallas as pl
from jax.experimental.pallas import tpu as pltpu

KERNEL = 3     # ConvX default: kernel=3, stride=1, padding=kernel // 2
LANE = 128     # lane width: Cin / Cout are padded to a multiple of this


def _round_up(x, m):
    return ((x + m - 1) // m) * m


def _vmem_capacity_bytes():
    try:
        return int(pltpu.get_tpu_info().vmem_capacity_bytes)
    except Exception:
        return 64 * 1024 * 1024   # conservative (v7x per-TC size)


def _vmem_need(th, H, W, cin_pad, cout_pad, x_itemsize):
    """Estimated VMEM bytes for one pipelined instance at row-tile height th."""
    K = KERNEL * KERNEL * cin_pad
    return (2 * H * W * cin_pad * x_itemsize        # x (full image), double-buffered
            + 2 * K * cout_pad * 2                  # packed weights (bf16)
            + 2 * th * W * cout_pad * 2             # output tile (bf16), double-buffered
            + (th + 2) * (W + 2) * cin_pad * 2      # xpad scratch (bf16)
            + th * W * K * 2                        # im2col patch scratch (bf16)
            + 4 * cout_pad * 4)                     # BN scale/bias


def _pick_tile_h(H, W, cin_pad, cout_pad, x_itemsize, budget):
    """Largest divisor of H whose VMEM footprint fits the budget."""
    best = 1
    for th in range(1, H + 1):
        if H % th:
            continue
        if _vmem_need(th, H, W, cin_pad, cout_pad, x_itemsize) <= budget:
            best = th
    # TODO(synk): if even th=1 exceeds the budget (huge W*Cin) a W-tile axis
    # and/or non-resident x (manual halo DMA) would be needed.
    return best


def _make_convx_kernel(H, W, TH, cin_pad, cout_pad, n_rt):
    K = KERNEL * KERNEL * cin_pad

    def kernel(x_ref, w_ref, scale_ref, bias_ref, o_ref, xpad_ref, patch_ref):
        # x_ref:     (1, H, W, cin_pad)    f32 or bf16 (full image, one batch elem)
        # w_ref:     (K, cout_pad)         bf16 im2col-packed weights (resident)
        # scale_ref: (1, cout_pad)         f32  gamma / sqrt(var + eps)
        # bias_ref:  (1, cout_pad)         f32  beta - mean * scale
        # o_ref:     (1, TH, W, cout_pad)  bf16 output row tile
        # xpad_ref:  (TH+2, W+2, cin_pad)  bf16 scratch: row tile + 1-px halo
        # patch_ref: (TH, W, K)            bf16 scratch: im2col patch
        r = pl.program_id(1)
        row0 = r * TH

        # ---- zero only the halo border (not the whole buffer) --------------
        zcol = jnp.zeros((TH + 2, 1, cin_pad), jnp.bfloat16)
        xpad_ref[:, 0:1, :] = zcol                       # left pad column
        xpad_ref[:, W + 1:W + 2, :] = zcol               # right pad column

        zrow = jnp.zeros((1, W + 2, cin_pad), jnp.bfloat16)

        # ---- interior rows (cast to bf16 during the VMEM copy) -------------
        xpad_ref[1:TH + 1, 1:W + 1, :] = (
            x_ref[0, pl.ds(row0, TH), :, :].astype(jnp.bfloat16))

        # ---- top halo row ---------------------------------------------------
        @pl.when(r == 0)
        def _():
            xpad_ref[0:1, :, :] = zrow                   # image top boundary

        @pl.when(r > 0)
        def _():
            xpad_ref[0:1, 1:W + 1, :] = (
                x_ref[0, pl.ds(row0 - 1, 1), :, :].astype(jnp.bfloat16))

        # ---- bottom halo row -------------------------------------------------
        @pl.when(r == n_rt - 1)
        def _():
            xpad_ref[TH + 1:TH + 2, :, :] = zrow         # image bottom boundary

        @pl.when(r < n_rt - 1)
        def _():
            xpad_ref[TH + 1:TH + 2, 1:W + 1, :] = (
                x_ref[0, pl.ds(row0 + TH, 1), :, :].astype(jnp.bfloat16))

        # ---- im2col: 9 lane-aligned tap copies (once per row tile) ---------
        for kh in range(KERNEL):
            for kw in range(KERNEL):
                off = (kh * KERNEL + kw) * cin_pad       # multiple of 128
                patch_ref[:, :, off:off + cin_pad] = (
                    xpad_ref[kh:kh + TH, kw:kw + W, :])

        # ---- single MXU matmul over the whole (padded) Cout, f32 acc -------
        acc = jnp.dot(patch_ref[...].reshape(TH * W, K), w_ref[...],
                      preferred_element_type=jnp.float32)   # (TH*W, cout_pad)

        # ---- fused BN (inference stats) + ReLU epilogue in f32 -------------
        y = jnp.maximum(acc * scale_ref[...] + bias_ref[...], 0.0)
        o_ref[0] = y.reshape(TH, W, cout_pad).astype(o_ref.dtype)

    return kernel


def convx_forward_nhwc(x_nhwc, weight_oihw, gamma, beta, running_mean,
                       running_var, eps=1e-5, tile_h=None):
    """ConvX forward in NHWC (no layout transposes). Returns (N, H, W, Cout)."""
    N, H, W, Cin = x_nhwc.shape
    Cout = weight_oihw.shape[0]
    cin_pad = _round_up(Cin, LANE)
    cout_pad = _round_up(Cout, LANE)
    K = KERNEL * KERNEL * cin_pad

    if cin_pad != Cin:
        # Lane-pad Cin (fused with the bf16 cast in one XLA op) so every tap
        # copy in the kernel is a full-lane store and the contraction depth is
        # a multiple of 128.
        x = jnp.pad(x_nhwc, ((0, 0), (0, 0), (0, 0),
                             (0, cin_pad - Cin))).astype(jnp.bfloat16)
    else:
        # No wrapper-side astype: activations enter the kernel as-is and are
        # cast to bf16 during the VMEM xpad copy (saves an HBM round trip).
        x = x_nhwc

    # (Cout, Cin, KH, KW) -> (KH, KW, Cin, Cout) -> pad -> (9*cin_pad, cout_pad).
    w = jnp.transpose(weight_oihw, (2, 3, 1, 0))
    w = jnp.pad(w, ((0, 0), (0, 0), (0, cin_pad - Cin), (0, cout_pad - Cout)))
    w = w.reshape(K, cout_pad).astype(jnp.bfloat16)

    # Fold BatchNorm (inference running stats) into per-channel scale/bias.
    scale = (gamma / jnp.sqrt(running_var + eps)).astype(jnp.float32)
    bias = (beta - running_mean * scale).astype(jnp.float32)
    scale2d = jnp.pad(scale, (0, cout_pad - Cout),
                      constant_values=1.0).reshape(1, cout_pad)
    bias2d = jnp.pad(bias, (0, cout_pad - Cout)).reshape(1, cout_pad)

    # Row-tile height: largest divisor of H that keeps the VMEM footprint
    # (x double-buffer + weights + out double-buffer + xpad + patch) in budget.
    cap = _vmem_capacity_bytes()
    x_item = x.dtype.itemsize
    if tile_h is not None and H % tile_h == 0:
        TH = int(tile_h)
    else:
        TH = _pick_tile_h(H, W, cin_pad, cout_pad, x_item, cap - 16 * 1024 * 1024)
    n_rt = H // TH

    needed = _vmem_need(TH, H, W, cin_pad, cout_pad, x_item)
    vmem_limit = int(min(max(needed + 16 * 1024 * 1024, 32 * 1024 * 1024),
                         cap - 8 * 1024 * 1024))
    vmem_limit = max(vmem_limit, needed)

    kernel = _make_convx_kernel(H, W, TH, cin_pad, cout_pad, n_rt)

    out = pl.pallas_call(
        kernel,
        out_shape=jax.ShapeDtypeStruct((N, H, W, cout_pad), jnp.bfloat16),
        grid_spec=pltpu.PrefetchScalarGridSpec(
            num_scalar_prefetch=0,
            grid=(N, n_rt),
            in_specs=[
                # Full image per batch element; block index depends only on n,
                # so x is DMA'd once per batch element across the row tiles.
                pl.BlockSpec((1, H, W, cin_pad), lambda n, r: (n, 0, 0, 0)),
                # Weights / BN params fully resident (single block, never re-DMA'd).
                pl.BlockSpec((K, cout_pad), lambda n, r: (0, 0)),
                pl.BlockSpec((1, cout_pad), lambda n, r: (0, 0)),
                pl.BlockSpec((1, cout_pad), lambda n, r: (0, 0)),
            ],
            out_specs=pl.BlockSpec((1, TH, W, cout_pad),
                                   lambda n, r: (n, r, 0, 0)),
            scratch_shapes=[
                pltpu.VMEM((TH + 2, W + 2, cin_pad), jnp.bfloat16),
                pltpu.VMEM((TH, W, K), jnp.bfloat16),
            ],
        ),
        compiler_params=pltpu.CompilerParams(
            dimension_semantics=("parallel", "parallel"),
            vmem_limit_bytes=vmem_limit),
    )(x, w, scale2d, bias2d)

    # NHWC consumers that tolerate a lane-padded Cout could skip this slice
    # (it is a no-op whenever Cout is already a multiple of 128).
    return out[..., :Cout]


def convx_forward(x_nchw, weight_oihw, gamma, beta, running_mean, running_var,
                  eps=1e-5, tile_h=None):
    """PyTorch-layout ConvX forward. x: (N, Cin, H, W) -> (N, Cout, H, W).

    The NCHW<->NHWC transposes exist only to match the PyTorch interface; an
    NHWC pipeline should call convx_forward_nhwc directly.
    """
    x_nhwc = jnp.transpose(x_nchw, (0, 2, 3, 1))
    out_nhwc = convx_forward_nhwc(x_nhwc, weight_oihw, gamma, beta,
                                  running_mean, running_var, eps, tile_h)
    return jnp.transpose(out_nhwc, (0, 3, 1, 2))


def _reference(x_nchw, weight_oihw, gamma, beta, running_mean, running_var,
               eps=1e-5):
    """Pure-JAX f32 reference of the same forward (NCHW)."""
    y = lax.conv_general_dilated(
        x_nchw.astype(jnp.float32), weight_oihw.astype(jnp.float32),
        window_strides=(1, 1), padding=((1, 1), (1, 1)),
        dimension_numbers=("NCHW", "OIHW", "NCHW"))
    scale = gamma / jnp.sqrt(running_var + eps)
    bias = beta - running_mean * scale
    y = y * scale[None, :, None, None] + bias[None, :, None, None]
    return jnp.maximum(y, 0.0)


def _make_inputs(key, N, Cin, H, W, Cout):
    k_x, k_w, k_g, k_b, k_m, k_v = jax.random.split(key, 6)
    x = jax.random.normal(k_x, (N, Cin, H, W), dtype=jnp.float32)
    weight = jax.random.normal(k_w, (Cout, Cin, KERNEL, KERNEL),
                               dtype=jnp.float32) * 0.1
    gamma = jax.random.normal(k_g, (Cout,), dtype=jnp.float32) * 0.1 + 1.0
    beta = jax.random.normal(k_b, (Cout,), dtype=jnp.float32) * 0.1
    running_mean = jax.random.normal(k_m, (Cout,), dtype=jnp.float32) * 0.1
    running_var = jax.random.uniform(k_v, (Cout,), dtype=jnp.float32,
                                     minval=0.5, maxval=1.5)
    return x, weight, gamma, beta, running_mean, running_var


if __name__ == "__main__":
    key = jax.random.PRNGKey(0)
    k1, k2 = jax.random.split(key, 2)

    # Test 1: spec-sized shapes (small Cin -> wrapper lane-pads Cin to 128).
    N, Cin, H, W, Cout = 2, 4, 16, 16, 8
    args1 = _make_inputs(k1, N, Cin, H, W, Cout)
    out1 = jax.block_until_ready(jax.jit(convx_forward)(*args1))
    ref1 = _reference(*args1)
    assert out1.shape == (N, Cout, H, W)
    # bf16 MXU inputs + bf16 output (f32 accumulation) -> loosened tolerance.
    assert jnp.allclose(out1.astype(jnp.float32), ref1, atol=5e-2, rtol=5e-2), (
        float(jnp.max(jnp.abs(out1.astype(jnp.float32) - ref1))))

    # Test 2: lane-aligned Cin (no wrapper pad/cast; in-kernel bf16 cast) and a
    # forced row-tile height of 8 to exercise the halo-row branches (n_rt=2).
    N2, Cin2, H2, W2, Cout2 = 1, 128, 16, 16, 8
    args2 = _make_inputs(k2, N2, Cin2, H2, W2, Cout2)
    out2 = jax.block_until_ready(
        jax.jit(lambda *a: convx_forward(*a, tile_h=8))(*args2))
    ref2 = _reference(*args2)
    assert out2.shape == (N2, Cout2, H2, W2)
    assert jnp.allclose(out2.astype(jnp.float32), ref2, atol=5e-2, rtol=5e-2), (
        float(jnp.max(jnp.abs(out2.astype(jnp.float32) - ref2))))

    print("KERNEL_OK")
</pallas_src>

<mosaic_0001>
module attributes {stable_mosaic.version = 11 : i64} {
  func.func @kernel(%arg0: i32, %arg1: i32, %arg2: memref<1x16x16x128xbf16, #tpu.memory_space<vmem>>, %arg3: memref<1152x128xbf16, #tpu.memory_space<vmem>>, %arg4: memref<1x128xf32, #tpu.memory_space<vmem>>, %arg5: memref<1x128xf32, #tpu.memory_space<vmem>>, %arg6: memref<1x16x16x128xbf16, #tpu.memory_space<vmem>>, %arg7: memref<18x18x128xbf16, #tpu.memory_space<vmem>>, %arg8: memref<16x16x1152xbf16, #tpu.memory_space<vmem>>) attributes {dimension_semantics = [#tpu.dimension_semantics<parallel>, #tpu.dimension_semantics<parallel>], iteration_bounds = array<i64: 2, 1>, scalar_prefetch = 0 : i64, scratch_operands = 2 : i64, tpu.core_type = #tpu.core_type<tc>, window_params = [{transform_indices = @transform_0, window_bounds = array<i64: 1, 16, 16, 128>}, {pipeline_mode = #tpu.pipeline_mode<synchronous>, transform_indices = @transform_1, window_bounds = array<i64: 1152, 128>}, {pipeline_mode = #tpu.pipeline_mode<synchronous>, transform_indices = @transform_2, window_bounds = array<i64: 1, 128>}, {pipeline_mode = #tpu.pipeline_mode<synchronous>, transform_indices = @transform_3, window_bounds = array<i64: 1, 128>}, {transform_indices = @transform_4, window_bounds = array<i64: 1, 16, 16, 128>}]} {
    %c16_i32 = arith.constant 16 : i32
    %0 = arith.muli %arg1, %c16_i32 : i32
    %cst = arith.constant 0.000000e+00 : bf16
    %1 = vector.broadcast %cst : bf16 to vector<18x1x128xbf16>
    %c0 = arith.constant 0 : index
    %c0_0 = arith.constant 0 : index
    %c0_1 = arith.constant 0 : index
    %2 = vector.load %arg7[%c0, %c0_0, %c0_1] : memref<18x18x128xbf16, #tpu.memory_space<vmem>>, vector<18x1x128xbf16>
    tpu.vector_store %arg7[%c0, %c0_0, %c0_1], %1 {strides = array<i32>} : memref<18x18x128xbf16, #tpu.memory_space<vmem>>, vector<18x1x128xbf16>,
    %c0_2 = arith.constant 0 : index
    %c17 = arith.constant 17 : index
    %c0_3 = arith.constant 0 : index
    %3 = vector.load %arg7[%c0_2, %c17, %c0_3] : memref<18x18x128xbf16, #tpu.memory_space<vmem>>, vector<18x1x128xbf16>
    tpu.vector_store %arg7[%c0_2, %c17, %c0_3], %1 {strides = array<i32>} : memref<18x18x128xbf16, #tpu.memory_space<vmem>>, vector<18x1x128xbf16>,
    %cst_4 = arith.constant 0.000000e+00 : bf16
    %4 = vector.broadcast %cst_4 : bf16 to vector<1x18x128xbf16>
    %c0_5 = arith.constant 0 : index
    %5 = arith.index_cast %0 : i32 to index
    %c0_6 = arith.constant 0 : index
    %c0_7 = arith.constant 0 : index
    %6 = vector.load %arg2[%c0_5, %5, %c0_6, %c0_7] : memref<1x16x16x128xbf16, #tpu.memory_space<vmem>>, vector<1x16x16x128xbf16>
    %7 = vector.shape_cast %6 : vector<1x16x16x128xbf16> to vector<16x16x128xbf16>
    %c1 = arith.constant 1 : index
    %c1_8 = arith.constant 1 : index
    %c0_9 = arith.constant 0 : index
    %8 = vector.load %arg7[%c1, %c1_8, %c0_9] : memref<18x18x128xbf16, #tpu.memory_space<vmem>>, vector<16x16x128xbf16>
    tpu.vector_store %arg7[%c1, %c1_8, %c0_9], %7 {strides = array<i32>} : memref<18x18x128xbf16, #tpu.memory_space<vmem>>, vector<16x16x128xbf16>,
    %c0_i32 = arith.constant 0 : i32
    %9 = arith.cmpi eq, %arg1, %c0_i32 : i32
    %10 = arith.extui %9 : i1 to i32
    %c0_i32_10 = arith.constant 0 : i32
    %11 = arith.cmpi ne, %10, %c0_i32_10 : i32
    scf.if %11 {
      %c0_77 = arith.constant 0 : index
      %c0_78 = arith.constant 0 : index
      %c0_79 = arith.constant 0 : index
      %56 = vector.load %arg7[%c0_77, %c0_78, %c0_79] : memref<18x18x128xbf16, #tpu.memory_space<vmem>>, vector<1x18x128xbf16>
      tpu.vector_store %arg7[%c0_77, %c0_78, %c0_79], %4 {strides = array<i32>} : memref<18x18x128xbf16, #tpu.memory_space<vmem>>, vector<1x18x128xbf16>,
    } else {
    }
    %c0_i32_11 = arith.constant 0 : i32
    %12 = arith.cmpi sgt, %arg1, %c0_i32_11 : i32
    %13 = arith.extui %12 : i1 to i32
    %c0_i32_12 = arith.constant 0 : i32
    %14 = arith.cmpi ne, %13, %c0_i32_12 : i32
    scf.if %14 {
      %c1_i32 = arith.constant 1 : i32
      %56 = arith.subi %0, %c1_i32 : i32
      %c0_77 = arith.constant 0 : index
      %57 = arith.index_cast %56 : i32 to index
      %c0_78 = arith.constant 0 : index
      %c0_79 = arith.constant 0 : index
      %58 = vector.load %arg2[%c0_77, %57, %c0_78, %c0_79] : memref<1x16x16x128xbf16, #tpu.memory_space<vmem>>, vector<1x1x16x128xbf16>
      %59 = vector.shape_cast %58 : vector<1x1x16x128xbf16> to vector<1x16x128xbf16>
      %c0_80 = arith.constant 0 : index
      %c1_81 = arith.constant 1 : index
      %c0_82 = arith.constant 0 : index
      %60 = vector.load %arg7[%c0_80, %c1_81, %c0_82] : memref<18x18x128xbf16, #tpu.memory_space<vmem>>, vector<1x16x128xbf16>
      tpu.vector_store %arg7[%c0_80, %c1_81, %c0_82], %59 {strides = array<i32>} : memref<18x18x128xbf16, #tpu.memory_space<vmem>>, vector<1x16x128xbf16>,
    } else {
    }
    %c0_i32_13 = arith.constant 0 : i32
    %15 = arith.cmpi eq, %arg1, %c0_i32_13 : i32
    %16 = arith.extui %15 : i1 to i32
    %c0_i32_14 = arith.constant 0 : i32
    %17 = arith.cmpi ne, %16, %c0_i32_14 : i32
    scf.if %17 {
      %c17_77 = arith.constant 17 : index
      %c0_78 = arith.constant 0 : index
      %c0_79 = arith.constant 0 : index
      %56 = vector.load %arg7[%c17_77, %c0_78, %c0_79] : memref<18x18x128xbf16, #tpu.memory_space<vmem>>, vector<1x18x128xbf16>
      tpu.vector_store %arg7[%c17_77, %c0_78, %c0_79], %4 {strides = array<i32>} : memref<18x18x128xbf16, #tpu.memory_space<vmem>>, vector<1x18x128xbf16>,
    } else {
    }
    %c0_i32_15 = arith.constant 0 : i32
    %18 = arith.cmpi slt, %arg1, %c0_i32_15 : i32
    %19 = arith.extui %18 : i1 to i32
    %c0_i32_16 = arith.constant 0 : i32
    %20 = arith.cmpi ne, %19, %c0_i32_16 : i32
    scf.if %20 {
      %c16_i32_77 = arith.constant 16 : i32
      %56 = arith.addi %0, %c16_i32_77 : i32
      %c0_78 = arith.constant 0 : index
      %57 = arith.index_cast %56 : i32 to index
      %c0_79 = arith.constant 0 : index
      %c0_80 = arith.constant 0 : index
      %58 = vector.load %arg2[%c0_78, %57, %c0_79, %c0_80] : memref<1x16x16x128xbf16, #tpu.memory_space<vmem>>, vector<1x1x16x128xbf16>
      %59 = vector.shape_cast %58 : vector<1x1x16x128xbf16> to vector<1x16x128xbf16>
      %c17_81 = arith.constant 17 : index
      %c1_82 = arith.constant 1 : index
      %c0_83 = arith.constant 0 : index
      %60 = vector.load %arg7[%c17_81, %c1_82, %c0_83] : memref<18x18x128xbf16, #tpu.memory_space<vmem>>, vector<1x16x128xbf16>
      tpu.vector_store %arg7[%c17_81, %c1_82, %c0_83], %59 {strides = array<i32>} : memref<18x18x128xbf16, #tpu.memory_space<vmem>>, vector<1x16x128xbf16>,
    } else {
    }
    %c0_17 = arith.constant 0 : index
    %c0_18 = arith.constant 0 : index
    %c0_19 = arith.constant 0 : index
    %21 = vector.load %arg7[%c0_17, %c0_18, %c0_19] : memref<18x18x128xbf16, #tpu.memory_space<vmem>>, vector<16x16x128xbf16>
    %c0_20 = arith.constant 0 : index
    %c0_21 = arith.constant 0 : index
    %c0_22 = arith.constant 0 : index
    %22 = vector.load %arg8[%c0_20, %c0_21, %c0_22] : memref<16x16x1152xbf16, #tpu.memory_space<vmem>>, vector<16x16x128xbf16>
    tpu.vector_store %arg8[%c0_20, %c0_21, %c0_22], %21 {strides = array<i32>} : memref<16x16x1152xbf16, #tpu.memory_space<vmem>>, vector<16x16x128xbf16>,
    %c0_23 = arith.constant 0 : index
    %c1_24 = arith.constant 1 : index
    %c0_25 = arith.constant 0 : index
    %23 = vector.load %arg7[%c0_23, %c1_24, %c0_25] : memref<18x18x128xbf16, #tpu.memory_space<vmem>>, vector<16x16x128xbf16>
    %c0_26 = arith.constant 0 : index
    %c0_27 = arith.constant 0 : index
    %c128 = arith.constant 128 : index
    %24 = vector.load %arg8[%c0_26, %c0_27, %c128] : memref<16x16x1152xbf16, #tpu.memory_space<vmem>>, vector<16x16x128xbf16>
    tpu.vector_store %arg8[%c0_26, %c0_27, %c128], %23 {strides = array<i32>} : memref<16x16x1152xbf16, #tpu.memory_space<vmem>>, vector<16x16x128xbf16>,
    %c0_28 = arith.constant 0 : index
    %c2 = arith.constant 2 : index
    %c0_29 = arith.constant 0 : index
    %25 = vector.load %arg7[%c0_28, %c2, %c0_29] : memref<18x18x128xbf16, #tpu.memory_space<vmem>>, vector<16x16x128xbf16>
    %c0_30 = arith.constant 0 : index
    %c0_31 = arith.constant 0 : index
    %c256 = arith.constant 256 : index
    %26 = vector.load %arg8[%c0_30, %c0_31, %c256] : memref<16x16x1152xbf16, #tpu.memory_space<vmem>>, vector<16x16x128xbf16>
    tpu.vector_store %arg8[%c0_30, %c0_31, %c256], %25 {strides = array<i32>} : memref<16x16x1152xbf16, #tpu.memory_space<vmem>>, vector<16x16x128xbf16>,
    %c1_32 = arith.constant 1 : index
    %c0_33 = arith.constant 0 : index
    %c0_34 = arith.constant 0 : index
    %27 = vector.load %arg7[%c1_32, %c0_33, %c0_34] : memref<18x18x128xbf16, #tpu.memory_space<vmem>>, vector<16x16x128xbf16>
    %c0_35 = arith.constant 0 : index
    %c0_36 = arith.constant 0 : index
    %c384 = arith.constant 384 : index
    %28 = vector.load %arg8[%c0_35, %c0_36, %c384] : memref<16x16x1152xbf16, #tpu.memory_space<vmem>>, vector<16x16x128xbf16>
    tpu.vector_store %arg8[%c0_35, %c0_36, %c384], %27 {strides = array<i32>} : memref<16x16x1152xbf16, #tpu.memory_space<vmem>>, vector<16x16x128xbf16>,
    %c1_37 = arith.constant 1 : index
    %c1_38 = arith.constant 1 : index
    %c0_39 = arith.constant 0 : index
    %29 = vector.load %arg7[%c1_37, %c1_38, %c0_39] : memref<18x18x128xbf16, #tpu.memory_space<vmem>>, vector<16x16x128xbf16>
    %c0_40 = arith.constant 0 : index
    %c0_41 = arith.constant 0 : index
    %c512 = arith.constant 512 : index
    %30 = vector.load %arg8[%c0_40, %c0_41, %c512] : memref<16x16x1152xbf16, #tpu.memory_space<vmem>>, vector<16x16x128xbf16>
    tpu.vector_store %arg8[%c0_40, %c0_41, %c512], %29 {strides = array<i32>} : memref<16x16x1152xbf16, #tpu.memory_space<vmem>>, vector<16x16x128xbf16>,
    %c1_42 = arith.constant 1 : index
    %c2_43 = arith.constant 2 : index
    %c0_44 = arith.constant 0 : index
    %31 = vector.load %arg7[%c1_42, %c2_43, %c0_44] : memref<18x18x128xbf16, #tpu.memory_space<vmem>>, vector<16x16x128xbf16>
    %c0_45 = arith.constant 0 : index
    %c0_46 = arith.constant 0 : index
    %c640 = arith.constant 640 : index
    %32 = vector.load %arg8[%c0_45, %c0_46, %c640] : memref<16x16x1152xbf16, #tpu.memory_space<vmem>>, vector<16x16x128xbf16>
    tpu.vector_store %arg8[%c0_45, %c0_46, %c640], %31 {strides = array<i32>} : memref<16x16x1152xbf16, #tpu.memory_space<vmem>>, vector<16x16x128xbf16>,
    %c2_47 = arith.constant 2 : index
    %c0_48 = arith.constant 0 : index
    %c0_49 = arith.constant 0 : index
    %33 = vector.load %arg7[%c2_47, %c0_48, %c0_49] : memref<18x18x128xbf16, #tpu.memory_space<vmem>>, vector<16x16x128xbf16>
    %c0_50 = arith.constant 0 : index
    %c0_51 = arith.constant 0 : index
    %c768 = arith.constant 768 : index
    %34 = vector.load %arg8[%c0_50, %c0_51, %c768] : memref<16x16x1152xbf16, #tpu.memory_space<vmem>>, vector<16x16x128xbf16>
    tpu.vector_store %arg8[%c0_50, %c0_51, %c768], %33 {strides = array<i32>} : memref<16x16x1152xbf16, #tpu.memory_space<vmem>>, vector<16x16x128xbf16>,
    %c2_52 = arith.constant 2 : index
    %c1_53 = arith.constant 1 : index
    %c0_54 = arith.constant 0 : index
    %35 = vector.load %arg7[%c2_52, %c1_53, %c0_54] : memref<18x18x128xbf16, #tpu.memory_space<vmem>>, vector<16x16x128xbf16>
    %c0_55 = arith.constant 0 : index
    %c0_56 = arith.constant 0 : index
    %c896 = arith.constant 896 : index
    %36 = vector.load %arg8[%c0_55, %c0_56, %c896] : memref<16x16x1152xbf16, #tpu.memory_space<vmem>>, vector<16x16x128xbf16>
    tpu.vector_store %arg8[%c0_55, %c0_56, %c896], %35 {strides = array<i32>} : memref<16x16x1152xbf16, #tpu.memory_space<vmem>>, vector<16x16x128xbf16>,
    %c2_57 = arith.constant 2 : index
    %c2_58 = arith.constant 2 : index
    %c0_59 = arith.constant 0 : index
    %37 = vector.load %arg7[%c2_57, %c2_58, %c0_59] : memref<18x18x128xbf16, #tpu.memory_space<vmem>>, vector<16x16x128xbf16>
    %c0_60 = arith.constant 0 : index
    %c0_61 = arith.constant 0 : index
    %c1024 = arith.constant 1024 : index
    %38 = vector.load %arg8[%c0_60, %c0_61, %c1024] : memref<16x16x1152xbf16, #tpu.memory_space<vmem>>, vector<16x16x128xbf16>
    tpu.vector_store %arg8[%c0_60, %c0_61, %c1024], %37 {strides = array<i32>} : memref<16x16x1152xbf16, #tpu.memory_space<vmem>>, vector<16x16x128xbf16>,
    %c0_62 = arith.constant 0 : index
    %c0_63 = arith.constant 0 : index
    %c0_64 = arith.constant 0 : index
    %39 = vector.load %arg8[%c0_62, %c0_63, %c0_64] : memref<16x16x1152xbf16, #tpu.memory_space<vmem>>, vector<16x16x1152xbf16>
    %40 = vector.shape_cast %39 : vector<16x16x1152xbf16> to vector<256x1152xbf16>
    %c0_65 = arith.constant 0 : index
    %c0_66 = arith.constant 0 : index
    %41 = vector.load %arg3[%c0_65, %c0_66] : memref<1152x128xbf16, #tpu.memory_space<vmem>>, vector<1152x128xbf16>
    %cst_67 = arith.constant dense<0.000000e+00> : vector<256x128xf32>
    %42 = tpu.matmul %40, %41, %cst_67 {dimension_numbers = #tpu.dot_dimension_numbers<[1], [0], [0], [1], [0, 0, 1, 1], [], []>} : vector<256x1152xbf16>, vector<1152x128xbf16>, vector<256x128xf32> -> vector<256x128xf32>
    %c0_68 = arith.constant 0 : index
    %c0_69 = arith.constant 0 : index
    %43 = vector.load %arg4[%c0_68, %c0_69] : memref<1x128xf32, #tpu.memory_space<vmem>>, vector<1x128xf32>
    %44 = vector.broadcast %43 : vector<1x128xf32> to vector<256x128xf32>
    %45 = arith.mulf %42, %44 : vector<256x128xf32>
    %c0_70 = arith.constant 0 : index
    %c0_71 = arith.constant 0 : index
    %46 = vector.load %arg5[%c0_70, %c0_71] : memref<1x128xf32, #tpu.memory_space<vmem>>, vector<1x128xf32>
    %47 = vector.broadcast %46 : vector<1x128xf32> to vector<256x128xf32>
    %48 = arith.addf %45, %47 : vector<256x128xf32>
    %cst_72 = arith.constant 0.000000e+00 : f32
    %49 = vector.broadcast %cst_72 : f32 to vector<256x128xf32>
    %50 = arith.maximumf %48, %49 : vector<256x128xf32>
    %51 = vector.shape_cast %50 : vector<256x128xf32> to vector<16x16x128xf32>
    %52 = arith.truncf %51 : vector<16x16x128xf32> to vector<16x16x128xbf16>
    %c0_73 = arith.constant 0 : index
    %c0_74 = arith.constant 0 : index
    %c0_75 = arith.constant 0 : index
    %c0_76 = arith.constant 0 : index
    %53 = vector.load %arg6[%c0_73, %c0_74, %c0_75, %c0_76] : memref<1x16x16x128xbf16, #tpu.memory_space<vmem>>, vector<1x16x16x128xbf16>
    %54 = vector.shape_cast %53 : vector<1x16x16x128xbf16> to vector<16x16x128xbf16>
    %55 = vector.shape_cast %52 : vector<16x16x128xbf16> to vector<1x16x16x128xbf16>
    tpu.vector_store %arg6[%c0_73, %c0_74, %c0_75, %c0_76], %55 {strides = array<i32>} : memref<1x16x16x128xbf16, #tpu.memory_space<vmem>>, vector<1x16x16x128xbf16>,
    return
  }
  func.func @transform_0(%arg0: i32, %arg1: i32) -> (i32, i32, i32, i32) {
    %c0_i32 = arith.constant 0 : i32
    %c0_i32_0 = arith.constant 0 : i32
    %c0_i32_1 = arith.constant 0 : i32
    %c0_i32_2 = arith.constant 0 : i32
    return %arg0, %c0_i32, %c0_i32_0, %c0_i32_1 : i32, i32, i32, i32
  }
  func.func @transform_1(%arg0: i32, %arg1: i32) -> (i32, i32) {
    %c0_i32 = arith.constant 0 : i32
    %c0_i32_0 = arith.constant 0 : i32
    %c0_i32_1 = arith.constant 0 : i32
    return %c0_i32, %c0_i32_0 : i32, i32
  }
  func.func @transform_2(%arg0: i32, %arg1: i32) -> (i32, i32) {
    %c0_i32 = arith.constant 0 : i32
    %c0_i32_0 = arith.constant 0 : i32
    %c0_i32_1 = arith.constant 0 : i32
    return %c0_i32, %c0_i32_0 : i32, i32
  }
  func.func @transform_3(%arg0: i32, %arg1: i32) -> (i32, i32) {
    %c0_i32 = arith.constant 0 : i32
    %c0_i32_0 = arith.constant 0 : i32
    %c0_i32_1 = arith.constant 0 : i32
    return %c0_i32, %c0_i32_0 : i32, i32
  }
  func.func @transform_4(%arg0: i32, %arg1: i32) -> (i32, i32, i32, i32) {
    %c0_i32 = arith.constant 0 : i32
    %c0_i32_0 = arith.constant 0 : i32
    %c0_i32_1 = arith.constant 0 : i32
    return %arg0, %arg1, %c0_i32, %c0_i32_0 : i32, i32, i32, i32
  }
}

</mosaic_0001>

<llo_original>
// kernel: convx_forward.1
$region0: #{convx_forward.1}
  #allocation0 [shape = 'u32[]', space=smem, size = 0x4, offset = 0x4, fixed_abs, tag = 'smem constant byte address 0x4 - core index']
  #allocation1 [shape = 'u32[144,128]{1,0:T(1,128)}', space=vmem, size = 0x12000, scoped, tag = 'internal scratch']
  #allocation2 [shape = 'bf16[18,18,128]{2,1,0:T(8,128)(2,1)}', space=vmem, size = 0x1b000, scoped, tag = 'scratch operand']
  #allocation3 [shape = 'bf16[16,16,1152]{2,1,0:T(8,128)(2,1)}', space=vmem, size = 0x90000, scoped, tag = 'scratch operand']
  %s0 = inlined_call_operand.vmem [shape: bf16[2,16,16,128], index: 0, kind: input, shape index: {}]
  %s1 = inlined_call_operand.vmem [shape: bf16[1152,128], index: 1, kind: input, shape index: {}]
  %s2 = inlined_call_operand.vmem [shape: f32[1,128], index: 2, kind: input, shape index: {}]
  %s3 = inlined_call_operand.vmem [shape: f32[1,128], index: 3, kind: input, shape index: {}]
  %s4 = inlined_call_operand.vmem [shape: bf16[2,16,16,128], index: 4, kind: output, shape index: {}]
  %s5 = sld [smem:[#allocation0]]
  $region65: #{convx_forward.1} parent=0
    _
  %s7 = ssub.s32 1, %s5
  %s8 = scalar_select 0, %s7, %s5
  loop: start=0, step=1, limit=4
  $region2: #{convx_forward.1} parent=0 // loop_pre_header
    _
  $region3: #{convx_forward.1} parent=0 // loop_header
    %s10 = sphi 0, %s14
    %p11 = scmp.ge.s32.totalorder %s10, 4
    %s17 = sphi 0, %s29
    %s18 = sphi 0, %s25
    %s19 = sphi 0, %s17
    %s20 = sphi 0, %s18
    %s21 = sphi 0, %s19
    %s22 = sphi 0, %s20
    %s32 = sphi 0, %s34
    %s35 = sphi 0, %s32
    %s36 = sphi 0, %s35
    %s52 = sphi 0, %s36
    %s56 = sphi 0, %s56
    %s58 = sphi 0, %s56
    %s59 = sphi 0, %s58
    %s73 = sphi 0, %s59
    %s77 = sphi 0, %s77
    %s79 = sphi 0, %s77
    %s80 = sphi 0, %s79
    %s94 = sphi 0, %s80
    %s98 = sphi 0, %s98
    %s100 = sphi 0, %s98
    %s101 = sphi 0, %s100
    %s115 = sphi 0, %s101
    %s123 = sphi 0, %s125
    %s126 = sphi 0, %s123
    %s127 = sphi 0, %s126
    %s143 = sphi 0, %s127
  $region4: #{convx_forward.1} parent=0 // loop_header_branch
    %13 = sbr.rel (%p11) target = $region8
  $region5: #{convx_forward.1} parent=0 // loop_body
    %s15 = ssub.s32 %s10, 1
    %s16 = ssub.s32 %s10, 2
    %s23 = sadd.s32 1, %s18
    %p24 = scmp.ge.s32.totalorder %s23, 1
    %s25 = scalar_select %p24, 0, %s23
    %s26 = sadd.s32 1, %s17
    %s27 = scalar_select %p24, %s26, %s17
    %p28 = scmp.ge.s32.totalorder %s27, 2
    %s29 = scalar_select %p28, 0, %s27
    %s30 = ssub.s32 %s17, %s29
    %p31 = scmp.eq.s32.totalorder %s30, 0
    %s33 = sadd.s32 %s32, 1
    %s34 = scalar_select %p31, %s32, %s33
    %p37 = pneg %p31
    %p38 = scmp.eq.s32.totalorder %s10, 1
    %p39 = por %p37, %p38
    %p40 = scmp.ne.s32.totalorder %s32, %s35
    %p41 = scmp.eq.s32.totalorder %s10, 0
    %p42 = por %p40, %p41
    %p43 = scmp.ne.s32.totalorder %s32, %s35
    %p44 = scmp.eq.s32.totalorder %s15, 1
    %p45 = por %p43, %p44
    %p46 = scmp.ne.s32.totalorder %s35, %s36
    %p47 = scmp.eq.s32.totalorder %s15, 0
    %p48 = por %p46, %p47
    %p49 = scmp.ne.s32.totalorder %s35, %s36
    %p50 = scmp.eq.s32.totalorder %s16, 1
    %p51 = por %p49, %p50
    %p53 = scmp.ne.s32.totalorder %s36, %s52
    %p54 = scmp.eq.s32.totalorder %s16, 0
    %p55 = por %p53, %p54
    %s57 = sadd.s32 %s56, 1
    %p60 = scmp.eq.s32.totalorder %s10, 1
    %p61 = scmp.ne.s32.totalorder %s56, %s58
    %p62 = scmp.eq.s32.totalorder %s10, 0
    %p63 = por %p61, %p62
    %p64 = scmp.ne.s32.totalorder %s56, %s58
    %p65 = scmp.eq.s32.totalorder %s15, 1
    %p66 = por %p64, %p65
    %p67 = scmp.ne.s32.totalorder %s58, %s59
    %p68 = scmp.eq.s32.totalorder %s15, 0
    %p69 = por %p67, %p68
    %p70 = scmp.ne.s32.totalorder %s58, %s59
    %p71 = scmp.eq.s32.totalorder %s16, 1
    %p72 = por %p70, %p71
    %p74 = scmp.ne.s32.totalorder %s59, %s73
    %p75 = scmp.eq.s32.totalorder %s16, 0
    %p76 = por %p74, %p75
    %s78 = sadd.s32 %s77, 1
    %p81 = scmp.eq.s32.totalorder %s10, 1
    %p82 = scmp.ne.s32.totalorder %s77, %s79
    %p83 = scmp.eq.s32.totalorder %s10, 0
    %p84 = por %p82, %p83
    %p85 = scmp.ne.s32.totalorder %s77, %s79
    %p86 = scmp.eq.s32.totalorder %s15, 1
    %p87 = por %p85, %p86
    %p88 = scmp.ne.s32.totalorder %s79, %s80
    %p89 = scmp.eq.s32.totalorder %s15, 0
    %p90 = por %p88, %p89
    %p91 = scmp.ne.s32.totalorder %s79, %s80
    %p92 = scmp.eq.s32.totalorder %s16, 1
    %p93 = por %p91, %p92
    %p95 = scmp.ne.s32.totalorder %s80, %s94
    %p96 = scmp.eq.s32.totalorder %s16, 0
    %p97 = por %p95, %p96
    %s99 = sadd.s32 %s98, 1
    %p102 = scmp.eq.s32.totalorder %s10, 1
    %p103 = scmp.ne.s32.totalorder %s98, %s100
    %p104 = scmp.eq.s32.totalorder %s10, 0
    %p105 = por %p103, %p104
    %p106 = scmp.ne.s32.totalorder %s98, %s100
    %p107 = scmp.eq.s32.totalorder %s15, 1
    %p108 = por %p106, %p107
    %p109 = scmp.ne.s32.totalorder %s100, %s101
    %p110 = scmp.eq.s32.totalorder %s15, 0
    %p111 = por %p109, %p110
    %p112 = scmp.ne.s32.totalorder %s100, %s101
    %p113 = scmp.eq.s32.totalorder %s16, 1
    %p114 = por %p112, %p113
    %p116 = scmp.ne.s32.totalorder %s101, %s115
    %p117 = scmp.eq.s32.totalorder %s16, 0
    %p118 = por %p116, %p117
    %s119 = ssub.s32 %s17, %s29
    %s120 = ssub.s32 %s18, %s25
    %s121 = sor.u32 %s119, %s120
    %p122 = scmp.eq.s32.totalorder %s121, 0
    %s124 = sadd.s32 %s123, 1
    %s125 = scalar_select %p122, %s123, %s124
    %p128 = pneg %p122
    %p129 = scmp.eq.s32.totalorder %s10, 1
    %p130 = por %p128, %p129
    %p131 = scmp.ne.s32.totalorder %s123, %s126
    %p132 = scmp.eq.s32.totalorder %s10, 0
    %p133 = por %p131, %p132
    %p134 = scmp.ne.s32.totalorder %s123, %s126
    %p135 = scmp.eq.s32.totalorder %s15, 1
    %p136 = por %p134, %p135
    %p137 = scmp.ne.s32.totalorder %s126, %s127
    %p138 = scmp.eq.s32.totalorder %s15, 0
    %p139 = por %p137, %p138
    %p140 = scmp.ne.s32.totalorder %s126, %s127
    %p141 = scmp.eq.s32.totalorder %s16, 1
    %p142 = por %p140, %p141
    %p144 = scmp.ne.s32.totalorder %s127, %s143
    %p145 = scmp.eq.s32.totalorder %s16, 0
    %p146 = por %p144, %p145
    %p147 = scmp.le.s32.totalorder 1, %s10
    %p148 = scmp.lt.s32.totalorder %s10, 3
    %p149 = pnand %p147, %p148
    %p150 = pneg %p149
    // Predicated region
    $region9: #{convx_forward.1} parent=5 // pred_check
      _
    $region10: #{convx_forward.1} parent=5 // pred_check_branch
      %152 = sbr.rel (%p149) target = $region12
    $region11: #{convx_forward.1} parent=5 // pred_region
      %s153 = ssub.s32 %s10, 1
      // Predicated region
      $region13: #{convx_forward.1} parent=11 // pred_check
        %p154 = pneg %p69
      $region14: #{convx_forward.1} parent=11 // pred_check_branch
        %156 = sbr.rel (%p154) target = $region16
      $region15: #{convx_forward.1} parent=11 // pred_region
        _
      $region16: #{convx_forward.1} parent=11 // pred_fallthru
        _
      // Predicated region
      $region17: #{convx_forward.1} parent=11 // pred_check
        %p157 = pneg %p90
      $region18: #{convx_forward.1} parent=11 // pred_check_branch
        %159 = sbr.rel (%p157) target = $region20
      $region19: #{convx_forward.1} parent=11 // pred_region
        _
      $region20: #{convx_forward.1} parent=11 // pred_fallthru
        _
      // Predicated region
      $region21: #{convx_forward.1} parent=11 // pred_check
        %p160 = pneg %p111
      $region22: #{convx_forward.1} parent=11 // pred_check_branch
        %162 = sbr.rel (%p160) target = $region24
      $region23: #{convx_forward.1} parent=11 // pred_region
        _
      $region24: #{convx_forward.1} parent=11 // pred_fallthru
        _
    $region12: #{convx_forward.1} parent=5 // pred_fallthru
      _
    %p163 = scmp.lt.s32.totalorder %s10, 2
    // Predicated region
    $region25: #{convx_forward.1} parent=5 // pred_check
      %p164 = pneg %p163
    $region26: #{convx_forward.1} parent=5 // pred_check_branch
      %166 = sbr.rel (%p164) target = $region28
    $region27: #{convx_forward.1} parent=5 // pred_region
      // Predicated region
      $region29: #{convx_forward.1} parent=27 // pred_check
        %p167 = pneg %p42
      $region30: #{convx_forward.1} parent=27 // pred_check_branch
        %169 = sbr.rel (%p167) target = $region32
      $region31: #{convx_forward.1} parent=27 // pred_region
        %p170 = scmp.lt.s32.totalorder %s17, 1
        %s171 = scalar_select %p170, %s17, 1
        %s172 = smul.addr %s171, 32
        %s173 = smul.addr %s172, 4
        %s174 = scalar_lea.vmem %s0, %s173
      $region32: #{convx_forward.1} parent=27 // pred_fallthru
        _
    $region28: #{convx_forward.1} parent=5 // pred_fallthru
      _
    %p175 = scmp.le.s32.totalorder 1, %s10
    %p176 = scmp.lt.s32.totalorder %s10, 3
    %p177 = pnand %p175, %p176
    %p178 = pneg %p177
    // Predicated region
    $region33: #{convx_forward.1} parent=5 // pred_check
      _
    $region34: #{convx_forward.1} parent=5 // pred_check_branch
      %180 = sbr.rel (%p177) target = $region36
    $region35: #{convx_forward.1} parent=5 // pred_region
      %s181 = ssub.s32 %s10, 1
      %p182 = scmp.lt.s32.totalorder %s19, 1
      %s183 = scalar_select %p182, %s19, 1
      %s184 = smul.addr %s183, 32
      %s185 = smul.addr %s184, 4
      %s186 = scalar_lea.vmem %s0, %s185
      %p187 = pneg %p48
      %p188 = pneg %p45
      %p189 = pneg %p69
      %p190 = pneg %p66
      %p191 = pneg %p90
      %p192 = pneg %p87
      %p193 = pneg %p111
      %p194 = pneg %p108
      %p195 = pneg %p139
      %p196 = pneg %p136
      %s197 = smul.u32 16, %s20
      %p198 = scmp.lt.s32.totalorder %s19, 1
      %s199 = scalar_select %p198, %s19, 1
      %p200 = scmp.lt.s32.totalorder %s197, 15
      %s201 = scalar_select %p200, %s197, 15
      %s202 = smul.addr %s201, 2
      %s203 = smul.addr %s199, 32
      %s204 = sadd.s32 %s202, %s203
      %s205 = smul.addr %s204, 4
      %s206 = scalar_lea.vmem %s4, %s205
      %p207 = scmp.lt.s32.totalorder %s19, 1
      %s208 = scalar_select %p207, %s19, 1
      %s209 = smul.addr %s208, 32
      %s210 = smul.addr %s209, 4
      %s211 = scalar_lea.vmem %s0, %s210
      %s212 = smul.u32 16, %s20
      %p213 = scmp.lt.s32.totalorder %s19, 1
      %s214 = scalar_select %p213, %s19, 1
      %p215 = scmp.lt.s32.totalorder %s212, 15
      %s216 = scalar_select %p215, %s212, 15
      %s217 = smul.addr %s216, 2
      %s218 = smul.addr %s214, 32
      %s219 = sadd.s32 %s217, %s218
      %s220 = smul.addr %s219, 4
      %s221 = scalar_lea.vmem %s4, %s220
      %s222 = smul.u32 16, %s20
      %s224 = smul.u32 %s20, 16
      %vm225 = vcmask 1040384
      %vm226 = vsmask.f32 256
      %vm227 = vmand %vm225, %vm226
      %v228 = vld [vmem:[#allocation2] sm:$0x1]
      %v229 = vsel %vm227, 0, %v228
      %230 = vst [vmem:[#allocation2] sm:$0x1] %v229
      %v231 = vld [vmem:[#allocation2 + $0xc] sm:$0x1]
      %v232 = vsel %vm227, 0, %v231
      %233 = vst [vmem:[#allocation2 + $0xc] sm:$0x1] %v232
      %v234 = vld [vmem:[#allocation2 + $0x18] sm:$0x1]
      %v235 = vsel %vm227, 0, %v234
      %236 = vst [vmem:[#allocation2 + $0x18] sm:$0x1] %v235
      %v237 = vld [vmem:[#allocation2 + $0x24] sm:$0x1]
      %v238 = vsel %vm227, 0, %v237
      %239 = vst [vmem:[#allocation2 + $0x24] sm:$0x1] %v238
      %v240 = vld [vmem:[#allocation2 + $0x30] sm:$0x1]
      %v241 = vsel %vm227, 0, %v240
      %242 = vst [vmem:[#allocation2 + $0x30] sm:$0x1] %v241
      %v243 = vld [vmem:[#allocation2 + $0x3c] sm:$0x1]
      %v244 = vsel %vm227, 0, %v243
      %245 = vst [vmem:[#allocation2 + $0x3c] sm:$0x1] %v244
      %v246 = vld [vmem:[#allocation2 + $0x48] sm:$0x1]
      %v247 = vsel %vm227, 0, %v246
      %248 = vst [vmem:[#allocation2 + $0x48] sm:$0x1] %v247
      %v249 = vld [vmem:[#allocation2 + $0x54] sm:$0x1]
      %v250 = vsel %vm227, 0, %v249
      %251 = vst [vmem:[#allocation2 + $0x54] sm:$0x1] %v250
      %v252 = vld [vmem:[#allocation2 + $0x60] sm:$0x1]
      %v253 = vsel %vm227, 0, %v252
      %254 = vst [vmem:[#allocation2 + $0x60] sm:$0x1] %v253
      %v255 = vld [vmem:[#allocation2 + $0x6c] sm:$0x1]
      %v256 = vsel %vm227, 0, %v255
      %257 = vst [vmem:[#allocation2 + $0x6c] sm:$0x1] %v256
      %v258 = vld [vmem:[#allocation2 + $0x78] sm:$0x1]
      %v259 = vsel %vm227, 0, %v258
      %260 = vst [vmem:[#allocation2 + $0x78] sm:$0x1] %v259
      %v261 = vld [vmem:[#allocation2 + $0x84] sm:$0x1]
      %v262 = vsel %vm227, 0, %v261
      %263 = vst [vmem:[#allocation2 + $0x84] sm:$0x1] %v262
      %v264 = vld [vmem:[#allocation2 + $0x90] sm:$0x1]
      %v265 = vsel %vm227, 0, %v264
      %266 = vst [vmem:[#allocation2 + $0x90] sm:$0x1] %v265
      %v267 = vld [vmem:[#allocation2 + $0x9c] sm:$0x1]
      %v268 = vsel %vm227, 0, %v267
      %269 = vst [vmem:[#allocation2 + $0x9c] sm:$0x1] %v268
      %v270 = vld [vmem:[#allocation2 + $0xa8] sm:$0x1]
      %v271 = vsel %vm227, 0, %v270
      %272 = vst [vmem:[#allocation2 + $0xa8] sm:$0x1] %v271
      %v273 = vld [vmem:[#allocation2 + $0xb4] sm:$0x1]
      %v274 = vsel %vm227, 0, %v273
      %275 = vst [vmem:[#allocation2 + $0xb4] sm:$0x1] %v274
      %v276 = vld [vmem:[#allocation2 + $0xc0] sm:$0x1]
      %v277 = vsel %vm227, 0, %v276
      %278 = vst [vmem:[#allocation2 + $0xc0] sm:$0x1] %v277
      %v279 = vld [vmem:[#allocation2 + $0xcc] sm:$0x1]
      %v280 = vsel %vm227, 0, %v279
      %281 = vst [vmem:[#allocation2 + $0xcc] sm:$0x1] %v280
      %vm282 = vsmask.f32 7938
      %vm283 = vmand %vm225, %vm282
      %v284 = vld [vmem:[#allocation2 + $0x8] sm:$0x1]
      %v285 = vsel %vm283, 0, %v284
      %286 = vst [vmem:[#allocation2 + $0x8] sm:$0x1] %v285
      %v287 = vld [vmem:[#allocation2 + $0x14] sm:$0x1]
      %v288 = vsel %vm283, 0, %v287
      %289 = vst [vmem:[#allocation2 + $0x14] sm:$0x1] %v288
      %v290 = vld [vmem:[#allocation2 + $0x20] sm:$0x1]
      %v291 = vsel %vm283, 0, %v290
      %292 = vst [vmem:[#allocation2 + $0x20] sm:$0x1] %v291
      %v293 = vld [vmem:[#allocation2 + $0x2c] sm:$0x1]
      %v294 = vsel %vm283, 0, %v293
      %295 = vst [vmem:[#allocation2 + $0x2c] sm:$0x1] %v294
      %v296 = vld [vmem:[#allocation2 + $0x38] sm:$0x1]
      %v297 = vsel %vm283, 0, %v296
      %298 = vst [vmem:[#allocation2 + $0x38] sm:$0x1] %v297
      %v299 = vld [vmem:[#allocation2 + $0x44] sm:$0x1]
      %v300 = vsel %vm283, 0, %v299
      %301 = vst [vmem:[#allocation2 + $0x44] sm:$0x1] %v300
      %v302 = vld [vmem:[#allocation2 + $0x50] sm:$0x1]
      %v303 = vsel %vm283, 0, %v302
      %304 = vst [vmem:[#allocation2 + $0x50] sm:$0x1] %v303
      %v305 = vld [vmem:[#allocation2 + $0x5c] sm:$0x1]
      %v306 = vsel %vm283, 0, %v305
      %307 = vst [vmem:[#allocation2 + $0x5c] sm:$0x1] %v306
      %v308 = vld [vmem:[#allocation2 + $0x68] sm:$0x1]
      %v309 = vsel %vm283, 0, %v308
      %310 = vst [vmem:[#allocation2 + $0x68] sm:$0x1] %v309
      %v311 = vld [vmem:[#allocation2 + $0x74] sm:$0x1]
      %v312 = vsel %vm283, 0, %v311
      %313 = vst [vmem:[#allocation2 + $0x74] sm:$0x1] %v312
      %v314 = vld [vmem:[#allocation2 + $0x80] sm:$0x1]
      %v315 = vsel %vm283, 0, %v314
      %316 = vst [vmem:[#allocation2 + $0x80] sm:$0x1] %v315
      %v317 = vld [vmem:[#allocation2 + $0x8c] sm:$0x1]
      %v318 = vsel %vm283, 0, %v317
      %319 = vst [vmem:[#allocation2 + $0x8c] sm:$0x1] %v318
      %v320 = vld [vmem:[#allocation2 + $0x98] sm:$0x1]
      %v321 = vsel %vm283, 0, %v320
      %322 = vst [vmem:[#allocation2 + $0x98] sm:$0x1] %v321
      %v323 = vld [vmem:[#allocation2 + $0xa4] sm:$0x1]
      %v324 = vsel %vm283, 0, %v323
      %325 = vst [vmem:[#allocation2 + $0xa4] sm:$0x1] %v324
      %v326 = vld [vmem:[#allocation2 + $0xb0] sm:$0x1]
      %v327 = vsel %vm283, 0, %v326
      %328 = vst [vmem:[#allocation2 + $0xb0] sm:$0x1] %v327
      %v329 = vld [vmem:[#allocation2 + $0xbc] sm:$0x1]
      %v330 = vsel %vm283, 0, %v329
      %331 = vst [vmem:[#allocation2 + $0xbc] sm:$0x1] %v330
      %v332 = vld [vmem:[#allocation2 + $0xc8] sm:$0x1]
      %v333 = vsel %vm283, 0, %v332
      %334 = vst [vmem:[#allocation2 + $0xc8] sm:$0x1] %v333
      %v335 = vld [vmem:[#allocation2 + $0xd4] sm:$0x1]
      %v336 = vsel %vm283, 0, %v335
      %337 = vst [vmem:[#allocation2 + $0xd4] sm:$0x1] %v336
      %s338 = smul.u32 %s224, 2
      %s339 = smul.addr %s338, 4
      %s340 = scalar_lea.vmem %s211, %s339
      %v341 = vld [vmem:[%s340] sm:$0xf]
      %v342 = vld [vmem:[%s340 + $0x4] sm:$0xf]
      %v343 = vld [vmem:[%s340 + $0x8] sm:$0xf]
      %v344 = vld [vmem:[%s340 + $0xc] sm:$0xf]
      %v345 = vld [vmem:[%s340 + $0x10] sm:$0xf]
      %v346 = vld [vmem:[%s340 + $0x14] sm:$0xf]
      %v347 = vld [vmem:[%s340 + $0x18] sm:$0xf]
      %v348 = vld [vmem:[%s340 + $0x1c] sm:$0xf]
      %v349 = vld [vmem:[%s340 + $0x20] sm:$0xf]
      %v350 = vld [vmem:[%s340 + $0x24] sm:$0xf]
      %v351 = vld [vmem:[%s340 + $0x28] sm:$0xf]
      %v352 = vld [vmem:[%s340 + $0x2c] sm:$0xf]
      %v353 = vld [vmem:[%s340 + $0x30] sm:$0xf]
      %v354 = vld [vmem:[%s340 + $0x34] sm:$0xf]
      %v355 = vld [vmem:[%s340 + $0x38] sm:$0xf]
      %v356 = vld [vmem:[%s340 + $0x3c] sm:$0xf]
      %v357 = vld [vmem:[%s340 + $0x40] sm:$0xf]
      %v358 = vld [vmem:[%s340 + $0x44] sm:$0xf]
      %v359 = vld [vmem:[%s340 + $0x48] sm:$0xf]
      %v360 = vld [vmem:[%s340 + $0x4c] sm:$0xf]
      %v361 = vld [vmem:[%s340 + $0x50] sm:$0xf]
      %v362 = vld [vmem:[%s340 + $0x54] sm:$0xf]
      %v363 = vld [vmem:[%s340 + $0x58] sm:$0xf]
      %v364 = vld [vmem:[%s340 + $0x5c] sm:$0xf]
      %v365 = vld [vmem:[%s340 + $0x60] sm:$0xf]
      %v366 = vld [vmem:[%s340 + $0x64] sm:$0xf]
      %v367 = vld [vmem:[%s340 + $0x68] sm:$0xf]
      %v368 = vld [vmem:[%s340 + $0x6c] sm:$0xf]
      %v369 = vld [vmem:[%s340 + $0x70] sm:$0xf]
      %v370 = vld [vmem:[%s340 + $0x74] sm:$0xf]
      %v371 = vld [vmem:[%s340 + $0x78] sm:$0xf]
      %v372 = vld [vmem:[%s340 + $0x7c] sm:$0xf]
      %vm373 = vsmask.f32 4368
      %vm374 = vmor %vm226, %vm373
      %v376 = vshrl.u32 %v341, 16
      %v378 = vrot.slane %v376, 7
      %v379 = vshll.u32 %v341, 16
      %v381 = vor.u32 %v378, %v379
      %v382 = vrot.slane %v378, 4
      %v384 = vshrl.u32 %v342, 16
      %v386 = vrot.slane %v384, 7
      %v387 = vshll.u32 %v342, 16
      %v389 = vor.u32 %v386, %v387
      %v390 = vsel %vm374, %v382, %v389
      %v391 = vrot.slane %v386, 4
      %v393 = vshrl.u32 %v343, 16
      %v395 = vrot.slane %v393, 7
      %v396 = vshll.u32 %v343, 16
      %v398 = vor.u32 %v395, %v396
      %v399 = vrot.slane %v395, 4
      %v401 = vshrl.u32 %v344, 16
      %v403 = vrot.slane %v401, 7
      %v404 = vshll.u32 %v344, 16
      %v406 = vor.u32 %v403, %v404
      %v407 = vsel %vm374, %v399, %v406
      %v408 = vrot.slane %v403, 4
      %v410 = vshrl.u32 %v345, 16
      %v412 = vrot.slane %v410, 7
      %v413 = vshll.u32 %v345, 16
      %v415 = vor.u32 %v412, %v413
      %v416 = vrot.slane %v412, 4
      %v418 = vshrl.u32 %v346, 16
      %v420 = vrot.slane %v418, 7
      %v421 = vshll.u32 %v346, 16
      %v423 = vor.u32 %v420, %v421
      %v424 = vsel %vm374, %v416, %v423
      %v425 = vrot.slane %v420, 4
      %v427 = vshrl.u32 %v347, 16
      %v429 = vrot.slane %v427, 7
      %v430 = vshll.u32 %v347, 16
      %v432 = vor.u32 %v429, %v430
      %v433 = vrot.slane %v429, 4
      %v435 = vshrl.u32 %v348, 16
      %v437 = vrot.slane %v435, 7
      %v438 = vshll.u32 %v348, 16
      %v440 = vor.u32 %v437, %v438
      %v441 = vsel %vm374, %v433, %v440
      %v442 = vrot.slane %v437, 4
      %v444 = vshrl.u32 %v349, 16
      %v446 = vrot.slane %v444, 7
      %v447 = vshll.u32 %v349, 16
      %v449 = vor.u32 %v446, %v447
      %v450 = vrot.slane %v446, 4
      %v452 = vshrl.u32 %v350, 16
      %v454 = vrot.slane %v452, 7
      %v455 = vshll.u32 %v350, 16
      %v457 = vor.u32 %v454, %v455
      %v458 = vsel %vm374, %v450, %v457
      %v459 = vrot.slane %v454, 4
      %v461 = vshrl.u32 %v351, 16
      %v463 = vrot.slane %v461, 7
      %v464 = vshll.u32 %v351, 16
      %v466 = vor.u32 %v463, %v464
      %v467 = vrot.slane %v463, 4
      %v469 = vshrl.u32 %v352, 16
      %v471 = vrot.slane %v469, 7
      %v472 = vshll.u32 %v352, 16
      %v474 = vor.u32 %v471, %v472
      %v475 = vsel %vm374, %v467, %v474
      %v476 = vrot.slane %v471, 4
      %v478 = vshrl.u32 %v353, 16
      %v480 = vrot.slane %v478, 7
      %v481 = vshll.u32 %v353, 16
      %v483 = vor.u32 %v480, %v481
      %v484 = vrot.slane %v480, 4
      %v486 = vshrl.u32 %v354, 16
      %v488 = vrot.slane %v486, 7
      %v489 = vshll.u32 %v354, 16
      %v491 = vor.u32 %v488, %v489
      %v492 = vsel %vm374, %v484, %v491
      %v493 = vrot.slane %v488, 4
      %v495 = vshrl.u32 %v355, 16
      %v497 = vrot.slane %v495, 7
      %v498 = vshll.u32 %v355, 16
      %v500 = vor.u32 %v497, %v498
      %v501 = vrot.slane %v497, 4
      %v503 = vshrl.u32 %v356, 16
      %v505 = vrot.slane %v503, 7
      %v506 = vshll.u32 %v356, 16
      %v508 = vor.u32 %v505, %v506
      %v509 = vsel %vm374, %v501, %v508
      %v510 = vrot.slane %v505, 4
      %v512 = vshrl.u32 %v357, 16
      %v514 = vrot.slane %v512, 7
      %v515 = vshll.u32 %v357, 16
      %v517 = vor.u32 %v514, %v515
      %v518 = vrot.slane %v514, 4
      %v520 = vshrl.u32 %v358, 16
      %v522 = vrot.slane %v520, 7
      %v523 = vshll.u32 %v358, 16
      %v525 = vor.u32 %v522, %v523
      %v526 = vsel %vm374, %v518, %v525
      %v527 = vrot.slane %v522, 4
      %v529 = vshrl.u32 %v359, 16
      %v531 = vrot.slane %v529, 7
      %v532 = vshll.u32 %v359, 16
      %v534 = vor.u32 %v531, %v532
      %v535 = vrot.slane %v531, 4
      %v537 = vshrl.u32 %v360, 16
      %v539 = vrot.slane %v537, 7
      %v540 = vshll.u32 %v360, 16
      %v542 = vor.u32 %v539, %v540
      %v543 = vsel %vm374, %v535, %v542
      %v544 = vrot.slane %v539, 4
      %v546 = vshrl.u32 %v361, 16
      %v548 = vrot.slane %v546, 7
      %v549 = vshll.u32 %v361, 16
      %v551 = vor.u32 %v548, %v549
      %v552 = vrot.slane %v548, 4
      %v554 = vshrl.u32 %v362, 16
      %v556 = vrot.slane %v554, 7
      %v557 = vshll.u32 %v362, 16
      %v559 = vor.u32 %v556, %v557
      %v560 = vsel %vm374, %v552, %v559
      %v561 = vrot.slane %v556, 4
      %v563 = vshrl.u32 %v363, 16
      %v565 = vrot.slane %v563, 7
      %v566 = vshll.u32 %v363, 16
      %v568 = vor.u32 %v565, %v566
      %v569 = vrot.slane %v565, 4
      %v571 = vshrl.u32 %v364, 16
      %v573 = vrot.slane %v571, 7
      %v574 = vshll.u32 %v364, 16
      %v576 = vor.u32 %v573, %v574
      %v577 = vsel %vm374, %v569, %v576
      %v578 = vrot.slane %v573, 4
      %v580 = vshrl.u32 %v365, 16
      %v582 = vrot.slane %v580, 7
      %v583 = vshll.u32 %v365, 16
      %v585 = vor.u32 %v582, %v583
      %v586 = vrot.slane %v582, 4
      %v588 = vshrl.u32 %v366, 16
      %v590 = vrot.slane %v588, 7
      %v591 = vshll.u32 %v366, 16
      %v593 = vor.u32 %v590, %v591
      %v594 = vsel %vm374, %v586, %v593
      %v595 = vrot.slane %v590, 4
      %v597 = vshrl.u32 %v367, 16
      %v599 = vrot.slane %v597, 7
      %v600 = vshll.u32 %v367, 16
      %v602 = vor.u32 %v599, %v600
      %v603 = vrot.slane %v599, 4
      %v605 = vshrl.u32 %v368, 16
      %v607 = vrot.slane %v605, 7
      %v608 = vshll.u32 %v368, 16
      %v610 = vor.u32 %v607, %v608
      %v611 = vsel %vm374, %v603, %v610
      %v612 = vrot.slane %v607, 4
      %v614 = vshrl.u32 %v369, 16
      %v616 = vrot.slane %v614, 7
      %v617 = vshll.u32 %v369, 16
      %v619 = vor.u32 %v616, %v617
      %v620 = vrot.slane %v616, 4
      %v622 = vshrl.u32 %v370, 16
      %v624 = vrot.slane %v622, 7
      %v625 = vshll.u32 %v370, 16
      %v627 = vor.u32 %v624, %v625
      %v628 = vsel %vm374, %v620, %v627
      %v629 = vrot.slane %v624, 4
      %v631 = vshrl.u32 %v371, 16
      %v633 = vrot.slane %v631, 7
      %v634 = vshll.u32 %v371, 16
      %v636 = vor.u32 %v633, %v634
      %v637 = vrot.slane %v633, 4
      %v639 = vshrl.u32 %v372, 16
      %v641 = vrot.slane %v639, 7
      %v642 = vshll.u32 %v372, 16
      %v644 = vor.u32 %v641, %v642
      %v645 = vsel %vm374, %v637, %v644
      %v646 = vrot.slane %v641, 4
      %s695 = scalar_lea.vmem [#allocation2], 12
      %vm696 = vcmask 1043456
      %vm697 = vmand %vm696, %vm282
      %v698 = vld [vmem:[%s695] sm:$0xf]
      %v699 = vsel %vm697, %v381, %v698
      %700 = vst [vmem:[%s695] sm:$0xf] %v699
      %701 = vst [vmem:[%s695 + $0x4] sm:$0xf] %v390
      %v702 = vld [vmem:[%s695 + $0x8] sm:$0x1]
      %v703 = vsel %vm227, %v391, %v702
      %704 = vst [vmem:[%s695 + $0x8] sm:$0x1] %v703
      %v705 = vld [vmem:[%s695 + $0xc] sm:$0xf]
      %v706 = vsel %vm697, %v398, %v705
      %707 = vst [vmem:[%s695 + $0xc] sm:$0xf] %v706
      %708 = vst [vmem:[%s695 + $0x10] sm:$0xf] %v407
      %v709 = vld [vmem:[%s695 + $0x14] sm:$0x1]
      %v710 = vsel %vm227, %v408, %v709
      %711 = vst [vmem:[%s695 + $0x14] sm:$0x1] %v710
      %v712 = vld [vmem:[%s695 + $0x18] sm:$0xf]
      %v713 = vsel %vm697, %v415, %v712
      %714 = vst [vmem:[%s695 + $0x18] sm:$0xf] %v713
      %715 = vst [vmem:[%s695 + $0x1c] sm:$0xf] %v424
      %v716 = vld [vmem:[%s695 + $0x20] sm:$0x1]
      %v717 = vsel %vm227, %v425, %v716
      %718 = vst [vmem:[%s695 + $0x20] sm:$0x1] %v717
      %v719 = vld [vmem:[%s695 + $0x24] sm:$0xf]
      %v720 = vsel %vm697, %v432, %v719
      %721 = vst [vmem:[%s695 + $0x24] sm:$0xf] %v720
      %722 = vst [vmem:[%s695 + $0x28] sm:$0xf] %v441
      %v723 = vld [vmem:[%s695 + $0x2c] sm:$0x1]
      %v724 = vsel %vm227, %v442, %v723
      %725 = vst [vmem:[%s695 + $0x2c] sm:$0x1] %v724
      %v726 = vld [vmem:[%s695 + $0x30] sm:$0xf]
      %v727 = vsel %vm697, %v449, %v726
      %728 = vst [vmem:[%s695 + $0x30] sm:$0xf] %v727
      %729 = vst [vmem:[%s695 + $0x34] sm:$0xf] %v458
      %v730 = vld [vmem:[%s695 + $0x38] sm:$0x1]
      %v731 = vsel %vm227, %v459, %v730
      %732 = vst [vmem:[%s695 + $0x38] sm:$0x1] %v731
      %v733 = vld [vmem:[%s695 + $0x3c] sm:$0xf]
      %v734 = vsel %vm697, %v466, %v733
      %735 = vst [vmem:[%s695 + $0x3c] sm:$0xf] %v734
      %736 = vst [vmem:[%s695 + $0x40] sm:$0xf] %v475
      %v737 = vld [vmem:[%s695 + $0x44] sm:$0x1]
      %v738 = vsel %vm227, %v476, %v737
      %739 = vst [vmem:[%s695 + $0x44] sm:$0x1] %v738
      %v740 = vld [vmem:[%s695 + $0x48] sm:$0xf]
      %v741 = vsel %vm697, %v483, %v740
      %742 = vst [vmem:[%s695 + $0x48] sm:$0xf] %v741
      %743 = vst [vmem:[%s695 + $0x4c] sm:$0xf] %v492
      %v744 = vld [vmem:[%s695 + $0x50] sm:$0x1]
      %v745 = vsel %vm227, %v493, %v744
      %746 = vst [vmem:[%s695 + $0x50] sm:$0x1] %v745
      %v747 = vld [vmem:[%s695 + $0x54] sm:$0xf]
      %v748 = vsel %vm697, %v500, %v747
      %749 = vst [vmem:[%s695 + $0x54] sm:$0xf] %v748
      %750 = vst [vmem:[%s695 + $0x58] sm:$0xf] %v509
      %v751 = vld [vmem:[%s695 + $0x5c] sm:$0x1]
      %v752 = vsel %vm227, %v510, %v751
      %753 = vst [vmem:[%s695 + $0x5c] sm:$0x1] %v752
      %v754 = vld [vmem:[%s695 + $0x60] sm:$0xf]
      %v755 = vsel %vm697, %v517, %v754
      %756 = vst [vmem:[%s695 + $0x60] sm:$0xf] %v755
      %757 = vst [vmem:[%s695 + $0x64] sm:$0xf] %v526
      %v758 = vld [vmem:[%s695 + $0x68] sm:$0x1]
      %v759 = vsel %vm227, %v527, %v758
      %760 = vst [vmem:[%s695 + $0x68] sm:$0x1] %v759
      %v761 = vld [vmem:[%s695 + $0x6c] sm:$0xf]
      %v762 = vsel %vm697, %v534, %v761
      %763 = vst [vmem:[%s695 + $0x6c] sm:$0xf] %v762
      %764 = vst [vmem:[%s695 + $0x70] sm:$0xf] %v543
      %v765 = vld [vmem:[%s695 + $0x74] sm:$0x1]
      %v766 = vsel %vm227, %v544, %v765
      %767 = vst [vmem:[%s695 + $0x74] sm:$0x1] %v766
      %v768 = vld [vmem:[%s695 + $0x78] sm:$0xf]
      %v769 = vsel %vm697, %v551, %v768
      %770 = vst [vmem:[%s695 + $0x78] sm:$0xf] %v769
      %771 = vst [vmem:[%s695 + $0x7c] sm:$0xf] %v560
      %v772 = vld [vmem:[%s695 + $0x80] sm:$0x1]
      %v773 = vsel %vm227, %v561, %v772
      %774 = vst [vmem:[%s695 + $0x80] sm:$0x1] %v773
      %v775 = vld [vmem:[%s695 + $0x84] sm:$0xf]
      %v776 = vsel %vm697, %v568, %v775
      %777 = vst [vmem:[%s695 + $0x84] sm:$0xf] %v776
      %778 = vst [vmem:[%s695 + $0x88] sm:$0xf] %v577
      %v779 = vld [vmem:[%s695 + $0x8c] sm:$0x1]
      %v780 = vsel %vm227, %v578, %v779
      %781 = vst [vmem:[%s695 + $0x8c] sm:$0x1] %v780
      %v782 = vld [vmem:[%s695 + $0x90] sm:$0xf]
      %v783 = vsel %vm697, %v585, %v782
      %784 = vst [vmem:[%s695 + $0x90] sm:$0xf] %v783
      %785 = vst [vmem:[%s695 + $0x94] sm:$0xf] %v594
      %v786 = vld [vmem:[%s695 + $0x98] sm:$0x1]
      %v787 = vsel %vm227, %v595, %v786
      %788 = vst [vmem:[%s695 + $0x98] sm:$0x1] %v787
      %v789 = vld [vmem:[%s695 + $0x9c] sm:$0xf]
      %v790 = vsel %vm697, %v602, %v789
      %791 = vst [vmem:[%s695 + $0x9c] sm:$0xf] %v790
      %792 = vst [vmem:[%s695 + $0xa0] sm:$0xf] %v611
      %v793 = vld [vmem:[%s695 + $0xa4] sm:$0x1]
      %v794 = vsel %vm227, %v612, %v793
      %795 = vst [vmem:[%s695 + $0xa4] sm:$0x1] %v794
      %v796 = vld [vmem:[%s695 + $0xa8] sm:$0xf]
      %v797 = vsel %vm697, %v619, %v796
      %798 = vst [vmem:[%s695 + $0xa8] sm:$0xf] %v797
      %799 = vst [vmem:[%s695 + $0xac] sm:$0xf] %v628
      %v800 = vld [vmem:[%s695 + $0xb0] sm:$0x1]
      %v801 = vsel %vm227, %v629, %v800
      %802 = vst [vmem:[%s695 + $0xb0] sm:$0x1] %v801
      %v803 = vld [vmem:[%s695 + $0xb4] sm:$0xf]
      %v804 = vsel %vm697, %v636, %v803
      %805 = vst [vmem:[%s695 + $0xb4] sm:$0xf] %v804
      %806 = vst [vmem:[%s695 + $0xb8] sm:$0xf] %v645
      %v807 = vld [vmem:[%s695 + $0xbc] sm:$0x1]
      %v808 = vsel %vm227, %v646, %v807
      %809 = vst [vmem:[%s695 + $0xbc] sm:$0x1] %v808
      %p810 = scmp.eq.s32.totalorder %s20, 0
      // Predicated region
      $region37: #{convx_forward.1} parent=35 // pred_check
        %p811 = pneg %p810
      $region38: #{convx_forward.1} parent=35 // pred_check_branch
        %813 = sbr.rel (%p811) target = $region40
      $region39: #{convx_forward.1} parent=35 // pred_region
        %814 = vst [vmem:[#allocation2] sm:$0xf] 0
        %815 = vst [vmem:[#allocation2 + $0x4] sm:$0xf] 0
        %816 = vst [vmem:[#allocation2 + $0x8] sm:$0x1] 0
      $region40: #{convx_forward.1} parent=35 // pred_fallthru
        _
      %p817 = scmp.gt.s32.totalorder %s20, 0
      // Predicated region
      $region41: #{convx_forward.1} parent=35 // pred_check
        %p818 = pneg %p817
      $region42: #{convx_forward.1} parent=35 // pred_check_branch
        %820 = sbr.rel (%p818) target = $region44
      $region43: #{convx_forward.1} parent=35 // pred_region
        %s821 = ssub.s32 %s224, 1
        %s822 = smul.u32 %s821, 2
        %s823 = smul.addr %s822, 4
        %s824 = scalar_lea.vmem %s211, %s823
        %v825 = vld [vmem:[%s824] sm:$0xf]
        %v826 = vld [vmem:[%s824 + $0x4] sm:$0xf]
        %v828 = vshrl.u32 %v825, 16
        %v830 = vrot.slane %v828, 7
        %v831 = vshll.u32 %v825, 16
        %v833 = vor.u32 %v830, %v831
        %v834 = vrot.slane %v830, 4
        %v836 = vshrl.u32 %v826, 16
        %v838 = vrot.slane %v836, 7
        %v839 = vshll.u32 %v826, 16
        %v841 = vor.u32 %v838, %v839
        %v842 = vsel %vm374, %v834, %v841
        %v843 = vrot.slane %v838, 4
        %v847 = vld [vmem:[#allocation2] sm:$0xf]
        %v848 = vsel %vm697, %v833, %v847
        %849 = vst [vmem:[#allocation2] sm:$0xf] %v848
        %850 = vst [vmem:[#allocation2 + $0x4] sm:$0xf] %v842
        %v851 = vld [vmem:[#allocation2 + $0x8] sm:$0x1]
        %v852 = vsel %vm227, %v843, %v851
        %853 = vst [vmem:[#allocation2 + $0x8] sm:$0x1] %v852
      $region44: #{convx_forward.1} parent=35 // pred_fallthru
        _
      // Predicated region
      $region45: #{convx_forward.1} parent=35 // pred_check
        %p854 = pneg %p810
      $region46: #{convx_forward.1} parent=35 // pred_check_branch
        %856 = sbr.rel (%p854) target = $region48
      $region47: #{convx_forward.1} parent=35 // pred_region
        %s857 = scalar_lea.vmem [#allocation2], 204
        %858 = vst [vmem:[%s857] sm:$0xf] 0
        %859 = vst [vmem:[%s857 + $0x4] sm:$0xf] 0
        %860 = vst [vmem:[%s857 + $0x8] sm:$0x1] 0
      $region48: #{convx_forward.1} parent=35 // pred_fallthru
        _
      %p861 = scmp.lt.s32.totalorder %s20, 0
      // Predicated region
      $region49: #{convx_forward.1} parent=35 // pred_check
        %p862 = pneg %p861
      $region50: #{convx_forward.1} parent=35 // pred_check_branch
        %864 = sbr.rel (%p862) target = $region52
      $region51: #{convx_forward.1} parent=35 // pred_region
        %s865 = sadd.s32 %s224, 16
        %s866 = smul.u32 %s865, 2
        %s867 = smul.addr %s866, 4
        %s868 = scalar_lea.vmem %s211, %s867
        %v869 = vld [vmem:[%s868] sm:$0xf]
        %v870 = vld [vmem:[%s868 + $0x4] sm:$0xf]
        %v872 = vshrl.u32 %v869, 16
        %v874 = vrot.slane %v872, 7
        %v875 = vshll.u32 %v869, 16
        %v877 = vor.u32 %v874, %v875
        %v878 = vrot.slane %v874, 4
        %v880 = vshrl.u32 %v870, 16
        %v882 = vrot.slane %v880, 7
        %v883 = vshll.u32 %v870, 16
        %v885 = vor.u32 %v882, %v883
        %v886 = vsel %vm374, %v878, %v885
        %v887 = vrot.slane %v882, 4
        %s891 = scalar_lea.vmem [#allocation2], 204
        %v892 = vld [vmem:[%s891] sm:$0xf]
        %v893 = vsel %vm697, %v877, %v892
        %894 = vst [vmem:[%s891] sm:$0xf] %v893
        %895 = vst [vmem:[%s891 + $0x4] sm:$0xf] %v886
        %v896 = vld [vmem:[%s891 + $0x8] sm:$0x1]
        %v897 = vsel %vm227, %v887, %v896
        %898 = vst [vmem:[%s891 + $0x8] sm:$0x1] %v897
      $region52: #{convx_forward.1} parent=35 // pred_fallthru
        _
      %v899 = vld [vmem:[#allocation2] sm:$0xf]
      %v900 = vld [vmem:[#allocation2 + $0x4] sm:$0xf]
      %v901 = vld [vmem:[#allocation2 + $0xc] sm:$0xf]
      %v902 = vld [vmem:[#allocation2 + $0x10] sm:$0xf]
      %v903 = vld [vmem:[#allocation2 + $0x18] sm:$0xf]
      %v904 = vld [vmem:[#allocation2 + $0x1c] sm:$0xf]
      %v905 = vld [vmem:[#allocation2 + $0x24] sm:$0xf]
      %v906 = vld [vmem:[#allocation2 + $0x28] sm:$0xf]
      %v907 = vld [vmem:[#allocation2 + $0x30] sm:$0xf]
      %v908 = vld [vmem:[#allocation2 + $0x34] sm:$0xf]
      %v909 = vld [vmem:[#allocation2 + $0x3c] sm:$0xf]
      %v910 = vld [vmem:[#allocation2 + $0x40] sm:$0xf]
      %v911 = vld [vmem:[#allocation2 + $0x48] sm:$0xf]
      %v912 = vld [vmem:[#allocation2 + $0x4c] sm:$0xf]
      %v913 = vld [vmem:[#allocation2 + $0x54] sm:$0xf]
      %v914 = vld [vmem:[#allocation2 + $0x58] sm:$0xf]
      %v915 = vld [vmem:[#allocation2 + $0x60] sm:$0xf]
      %v916 = vld [vmem:[#allocation2 + $0x64] sm:$0xf]
      %v917 = vld [vmem:[#allocation2 + $0x6c] sm:$0xf]
      %v918 = vld [vmem:[#allocation2 + $0x70] sm:$0xf]
      %v919 = vld [vmem:[#allocation2 + $0x78] sm:$0xf]
      %v920 = vld [vmem:[#allocation2 + $0x7c] sm:$0xf]
      %v921 = vld [vmem:[#allocation2 + $0x84] sm:$0xf]
      %v922 = vld [vmem:[#allocation2 + $0x88] sm:$0xf]
      %v923 = vld [vmem:[#allocation2 + $0x90] sm:$0xf]
      %v924 = vld [vmem:[#allocation2 + $0x94] sm:$0xf]
      %v925 = vld [vmem:[#allocation2 + $0x9c] sm:$0xf]
      %v926 = vld [vmem:[#allocation2 + $0xa0] sm:$0xf]
      %v927 = vld [vmem:[#allocation2 + $0xa8] sm:$0xf]
      %v928 = vld [vmem:[#allocation2 + $0xac] sm:$0xf]
      %v929 = vld [vmem:[#allocation2 + $0xb4] sm:$0xf]
      %v930 = vld [vmem:[#allocation2 + $0xb8] sm:$0xf]
      %931 = vst [vmem:[#allocation3] sm:$0xf] %v899
      %932 = vst [vmem:[#allocation3 + $0x24] sm:$0xf] %v900
      %933 = vst [vmem:[#allocation3 + $0x48] sm:$0xf] %v901
      %934 = vst [vmem:[#allocation3 + $0x6c] sm:$0xf] %v902
      %935 = vst [vmem:[#allocation3 + $0x90] sm:$0xf] %v903
      %936 = vst [vmem:[#allocation3 + $0xb4] sm:$0xf] %v904
      %937 = vst [vmem:[#allocation3 + $0xd8] sm:$0xf] %v905
      %938 = vst [vmem:[#allocation3 + $0xfc] sm:$0xf] %v906
      %939 = vst [vmem:[#allocation3 + $0x120] sm:$0xf] %v907
      %940 = vst [vmem:[#allocation3 + $0x144] sm:$0xf] %v908
      %941 = vst [vmem:[#allocation3 + $0x168] sm:$0xf] %v909
      %942 = vst [vmem:[#allocation3 + $0x18c] sm:$0xf] %v910
      %943 = vst [vmem:[#allocation3 + $0x1b0] sm:$0xf] %v911
      %944 = vst [vmem:[#allocation3 + $0x1d4] sm:$0xf] %v912
      %945 = vst [vmem:[#allocation3 + $0x1f8] sm:$0xf] %v913
      %946 = vst [vmem:[#allocation3 + $0x21c] sm:$0xf] %v914
      %947 = vst [vmem:[#allocation3 + $0x240] sm:$0xf] %v915
      %948 = vst [vmem:[#allocation3 + $0x264] sm:$0xf] %v916
      %949 = vst [vmem:[#allocation3 + $0x288] sm:$0xf] %v917
      %950 = vst [vmem:[#allocation3 + $0x2ac] sm:$0xf] %v918
      %951 = vst [vmem:[#allocation3 + $0x2d0] sm:$0xf] %v919
      %952 = vst [vmem:[#allocation3 + $0x2f4] sm:$0xf] %v920
      %953 = vst [vmem:[#allocation3 + $0x318] sm:$0xf] %v921
      %954 = vst [vmem:[#allocation3 + $0x33c] sm:$0xf] %v922
      %955 = vst [vmem:[#allocation3 + $0x360] sm:$0xf] %v923
      %956 = vst [vmem:[#allocation3 + $0x384] sm:$0xf] %v924
      %957 = vst [vmem:[#allocation3 + $0x3a8] sm:$0xf] %v925
      %958 = vst [vmem:[#allocation3 + $0x3cc] sm:$0xf] %v926
      %959 = vst [vmem:[#allocation3 + $0x3f0] sm:$0xf] %v927
      %960 = vst [vmem:[#allocation3 + $0x414] sm:$0xf] %v928
      %961 = vst [vmem:[#allocation3 + $0x438] sm:$0xf] %v929
      %962 = vst [vmem:[#allocation3 + $0x45c] sm:$0xf] %v930
      %v963 = vld [vmem:[#allocation2] sm:$0xf]
      %v964 = vld [vmem:[#allocation2 + $0x4] sm:$0xf]
      %v965 = vld [vmem:[#allocation2 + $0x8] sm:$0x1]
      %v966 = vld [vmem:[#allocation2 + $0xc] sm:$0xf]
      %v967 = vld [vmem:[#allocation2 + $0x10] sm:$0xf]
      %v968 = vld [vmem:[#allocation2 + $0x14] sm:$0x1]
      %v969 = vld [vmem:[#allocation2 + $0x18] sm:$0xf]
      %v970 = vld [vmem:[#allocation2 + $0x1c] sm:$0xf]
      %v971 = vld [vmem:[#allocation2 + $0x20] sm:$0x1]
      %v972 = vld [vmem:[#allocation2 + $0x24] sm:$0xf]
      %v973 = vld [vmem:[#allocation2 + $0x28] sm:$0xf]
      %v974 = vld [vmem:[#allocation2 + $0x2c] sm:$0x1]
      %v975 = vld [vmem:[#allocation2 + $0x30] sm:$0xf]
      %v976 = vld [vmem:[#allocation2 + $0x34] sm:$0xf]
      %v977 = vld [vmem:[#allocation2 + $0x38] sm:$0x1]
      %v978 = vld [vmem:[#allocation2 + $0x3c] sm:$0xf]
      %v979 = vld [vmem:[#allocation2 + $0x40] sm:$0xf]
      %v980 = vld [vmem:[#allocation2 + $0x44] sm:$0x1]
      %v981 = vld [vmem:[#allocation2 + $0x48] sm:$0xf]
      %v982 = vld [vmem:[#allocation2 + $0x4c] sm:$0xf]
      %v983 = vld [vmem:[#allocation2 + $0x50] sm:$0x1]
      %v984 = vld [vmem:[#allocation2 + $0x54] sm:$0xf]
      %v985 = vld [vmem:[#allocation2 + $0x58] sm:$0xf]
      %v986 = vld [vmem:[#allocation2 + $0x5c] sm:$0x1]
      %v987 = vld [vmem:[#allocation2 + $0x60] sm:$0xf]
      %v988 = vld [vmem:[#allocation2 + $0x64] sm:$0xf]
      %v989 = vld [vmem:[#allocation2 + $0x68] sm:$0x1]
      %v990 = vld [vmem:[#allocation2 + $0x6c] sm:$0xf]
      %v991 = vld [vmem:[#allocation2 + $0x70] sm:$0xf]
      %v992 = vld [vmem:[#allocation2 + $0x74] sm:$0x1]
      %v993 = vld [vmem:[#allocation2 + $0x78] sm:$0xf]
      %v994 = vld [vmem:[#allocation2 + $0x7c] sm:$0xf]
      %v995 = vld [vmem:[#allocation2 + $0x80] sm:$0x1]
      %v996 = vld [vmem:[#allocation2 + $0x84] sm:$0xf]
      %v997 = vld [vmem:[#allocation2 + $0x88] sm:$0xf]
      %v998 = vld [vmem:[#allocation2 + $0x8c] sm:$0x1]
      %v999 = vld [vmem:[#allocation2 + $0x90] sm:$0xf]
      %v1000 = vld [vmem:[#allocation2 + $0x94] sm:$0xf]
      %v1001 = vld [vmem:[#allocation2 + $0x98] sm:$0x1]
      %v1002 = vld [vmem:[#allocation2 + $0x9c] sm:$0xf]
      %v1003 = vld [vmem:[#allocation2 + $0xa0] sm:$0xf]
      %v1004 = vld [vmem:[#allocation2 + $0xa4] sm:$0x1]
      %v1005 = vld [vmem:[#allocation2 + $0xa8] sm:$0xf]
      %v1006 = vld [vmem:[#allocation2 + $0xac] sm:$0xf]
      %v1007 = vld [vmem:[#allocation2 + $0xb0] sm:$0x1]
      %v1008 = vld [vmem:[#allocation2 + $0xb4] sm:$0xf]
      %v1009 = vld [vmem:[#allocation2 + $0xb8] sm:$0xf]
      %v1010 = vld [vmem:[#allocation2 + $0xbc] sm:$0x1]
      %vm1011 = vsmask.f32 3328
      %vm1012 = vsmask.f32 7440
      %vm1013 = vmor %vm1011, %vm1012
      %v1015 = vshrl.u32 %v963, 16
      %v1017 = vrot.slane %v1015, 4
      %v1018 = vshll.u32 %v963, 16
      %v1020 = vrot.slane %v1018, 5
      %v1021 = vor.u32 %v1017, %v1020
      %v1022 = vrot.slane %v1021, 4
      %v1024 = vshll.u32 %v964, 16
      %v1026 = vrot.slane %v1024, 5
      %v1027 = vsel %vm1013, %v1022, %v1026
      %v1028 = vshrl.u32 %v964, 16
      %v1030 = vrot.slane %v1028, 4
      %v1031 = vor.u32 %v1030, %v1026
      %v1032 = vrot.slane %v1031, 4
      %v1034 = vshll.u32 %v965, 16
      %v1036 = vrot.slane %v1034, 5
      %v1037 = vsel %vm1013, %v1032, %v1036
      %v1039 = vshrl.u32 %v966, 16
      %v1041 = vrot.slane %v1039, 4
      %v1042 = vshll.u32 %v966, 16
      %v1044 = vrot.slane %v1042, 5
      %v1045 = vor.u32 %v1041, %v1044
      %v1046 = vrot.slane %v1045, 4
      %v1048 = vshll.u32 %v967, 16
      %v1050 = vrot.slane %v1048, 5
      %v1051 = vsel %vm1013, %v1046, %v1050
      %v1052 = vshrl.u32 %v967, 16
      %v1054 = vrot.slane %v1052, 4
      %v1055 = vor.u32 %v1054, %v1050
      %v1056 = vrot.slane %v1055, 4
      %v1058 = vshll.u32 %v968, 16
      %v1060 = vrot.slane %v1058, 5
      %v1061 = vsel %vm1013, %v1056, %v1060
      %v1063 = vshrl.u32 %v969, 16
      %v1065 = vrot.slane %v1063, 4
      %v1066 = vshll.u32 %v969, 16
      %v1068 = vrot.slane %v1066, 5
      %v1069 = vor.u32 %v1065, %v1068
      %v1070 = vrot.slane %v1069, 4
      %v1072 = vshll.u32 %v970, 16
      %v1074 = vrot.slane %v1072, 5
      %v1075 = vsel %vm1013, %v1070, %v1074
      %v1076 = vshrl.u32 %v970, 16
      %v1078 = vrot.slane %v1076, 4
      %v1079 = vor.u32 %v1078, %v1074
      %v1080 = vrot.slane %v1079, 4
      %v1082 = vshll.u32 %v971, 16
      %v1084 = vrot.slane %v1082, 5
      %v1085 = vsel %vm1013, %v1080, %v1084
      %v1087 = vshrl.u32 %v972, 16
      %v1089 = vrot.slane %v1087, 4
      %v1090 = vshll.u32 %v972, 16
      %v1092 = vrot.slane %v1090, 5
      %v1093 = vor.u32 %v1089, %v1092
      %v1094 = vrot.slane %v1093, 4
      %v1096 = vshll.u32 %v973, 16
      %v1098 = vrot.slane %v1096, 5
      %v1099 = vsel %vm1013, %v1094, %v1098
      %v1100 = vshrl.u32 %v973, 16
      %v1102 = vrot.slane %v1100, 4
      %v1103 = vor.u32 %v1102, %v1098
      %v1104 = vrot.slane %v1103, 4
      %v1106 = vshll.u32 %v974, 16
      %v1108 = vrot.slane %v1106, 5
      %v1109 = vsel %vm1013, %v1104, %v1108
      %v1111 = vshrl.u32 %v975, 16
      %v1113 = vrot.slane %v1111, 4
      %v1114 = vshll.u32 %v975, 16
      %v1116 = vrot.slane %v1114, 5
      %v1117 = vor.u32 %v1113, %v1116
      %v1118 = vrot.slane %v1117, 4
      %v1120 = vshll.u32 %v976, 16
      %v1122 = vrot.slane %v1120, 5
      %v1123 = vsel %vm1013, %v1118, %v1122
      %v1124 = vshrl.u32 %v976, 16
      %v1126 = vrot.slane %v1124, 4
      %v1127 = vor.u32 %v1126, %v1122
      %v1128 = vrot.slane %v1127, 4
      %v1130 = vshll.u32 %v977, 16
      %v1132 = vrot.slane %v1130, 5
      %v1133 = vsel %vm1013, %v1128, %v1132
      %v1135 = vshrl.u32 %v978, 16
      %v1137 = vrot.slane %v1135, 4
      %v1138 = vshll.u32 %v978, 16
      %v1140 = vrot.slane %v1138, 5
      %v1141 = vor.u32 %v1137, %v1140
      %v1142 = vrot.slane %v1141, 4
      %v1144 = vshll.u32 %v979, 16
      %v1146 = vrot.slane %v1144, 5
      %v1147 = vsel %vm1013, %v1142, %v1146
      %v1148 = vshrl.u32 %v979, 16
      %v1150 = vrot.slane %v1148, 4
      %v1151 = vor.u32 %v1150, %v1146
      %v1152 = vrot.slane %v1151, 4
      %v1154 = vshll.u32 %v980, 16
      %v1156 = vrot.slane %v1154, 5
      %v1157 = vsel %vm1013, %v1152, %v1156
      %v1159 = vshrl.u32 %v981, 16
      %v1161 = vrot.slane %v1159, 4
      %v1162 = vshll.u32 %v981, 16
      %v1164 = vrot.slane %v1162, 5
      %v1165 = vor.u32 %v1161, %v1164
      %v1166 = vrot.slane %v1165, 4
      %v1168 = vshll.u32 %v982, 16
      %v1170 = vrot.slane %v1168, 5
      %v1171 = vsel %vm1013, %v1166, %v1170
      %v1172 = vshrl.u32 %v982, 16
      %v1174 = vrot.slane %v1172, 4
      %v1175 = vor.u32 %v1174, %v1170
      %v1176 = vrot.slane %v1175, 4
      %v1178 = vshll.u32 %v983, 16
      %v1180 = vrot.slane %v1178, 5
      %v1181 = vsel %vm1013, %v1176, %v1180
      %v1183 = vshrl.u32 %v984, 16
      %v1185 = vrot.slane %v1183, 4
      %v1186 = vshll.u32 %v984, 16
      %v1188 = vrot.slane %v1186, 5
      %v1189 = vor.u32 %v1185, %v1188
      %v1190 = vrot.slane %v1189, 4
      %v1192 = vshll.u32 %v985, 16
      %v1194 = vrot.slane %v1192, 5
      %v1195 = vsel %vm1013, %v1190, %v1194
      %v1196 = vshrl.u32 %v985, 16
      %v1198 = vrot.slane %v1196, 4
      %v1199 = vor.u32 %v1198, %v1194
      %v1200 = vrot.slane %v1199, 4
      %v1202 = vshll.u32 %v986, 16
      %v1204 = vrot.slane %v1202, 5
      %v1205 = vsel %vm1013, %v1200, %v1204
      %v1207 = vshrl.u32 %v987, 16
      %v1209 = vrot.slane %v1207, 4
      %v1210 = vshll.u32 %v987, 16
      %v1212 = vrot.slane %v1210, 5
      %v1213 = vor.u32 %v1209, %v1212
      %v1214 = vrot.slane %v1213, 4
      %v1216 = vshll.u32 %v988, 16
      %v1218 = vrot.slane %v1216, 5
      %v1219 = vsel %vm1013, %v1214, %v1218
      %v1220 = vshrl.u32 %v988, 16
      %v1222 = vrot.slane %v1220, 4
      %v1223 = vor.u32 %v1222, %v1218
      %v1224 = vrot.slane %v1223, 4
      %v1226 = vshll.u32 %v989, 16
      %v1228 = vrot.slane %v1226, 5
      %v1229 = vsel %vm1013, %v1224, %v1228
      %v1231 = vshrl.u32 %v990, 16
      %v1233 = vrot.slane %v1231, 4
      %v1234 = vshll.u32 %v990, 16
      %v1236 = vrot.slane %v1234, 5
      %v1237 = vor.u32 %v1233, %v1236
      %v1238 = vrot.slane %v1237, 4
      %v1240 = vshll.u32 %v991, 16
      %v1242 = vrot.slane %v1240, 5
      %v1243 = vsel %vm1013, %v1238, %v1242
      %v1244 = vshrl.u32 %v991, 16
      %v1246 = vrot.slane %v1244, 4
      %v1247 = vor.u32 %v1246, %v1242
      %v1248 = vrot.slane %v1247, 4
      %v1250 = vshll.u32 %v992, 16
      %v1252 = vrot.slane %v1250, 5
      %v1253 = vsel %vm1013, %v1248, %v1252
      %v1255 = vshrl.u32 %v993, 16
      %v1257 = vrot.slane %v1255, 4
      %v1258 = vshll.u32 %v993, 16
      %v1260 = vrot.slane %v1258, 5
      %v1261 = vor.u32 %v1257, %v1260
      %v1262 = vrot.slane %v1261, 4
      %v1264 = vshll.u32 %v994, 16
      %v1266 = vrot.slane %v1264, 5
      %v1267 = vsel %vm1013, %v1262, %v1266
      %v1268 = vshrl.u32 %v994, 16
      %v1270 = vrot.slane %v1268, 4
      %v1271 = vor.u32 %v1270, %v1266
      %v1272 = vrot.slane %v1271, 4
      %v1274 = vshll.u32 %v995, 16
      %v1276 = vrot.slane %v1274, 5
      %v1277 = vsel %vm1013, %v1272, %v1276
      %v1279 = vshrl.u32 %v996, 16
      %v1281 = vrot.slane %v1279, 4
      %v1282 = vshll.u32 %v996, 16
      %v1284 = vrot.slane %v1282, 5
      %v1285 = vor.u32 %v1281, %v1284
      %v1286 = vrot.slane %v1285, 4
      %v1288 = vshll.u32 %v997, 16
      %v1290 = vrot.slane %v1288, 5
      %v1291 = vsel %vm1013, %v1286, %v1290
      %v1292 = vshrl.u32 %v997, 16
      %v1294 = vrot.slane %v1292, 4
      %v1295 = vor.u32 %v1294, %v1290
      %v1296 = vrot.slane %v1295, 4
      %v1298 = vshll.u32 %v998, 16
      %v1300 = vrot.slane %v1298, 5
      %v1301 = vsel %vm1013, %v1296, %v1300
      %v1303 = vshrl.u32 %v999, 16
      %v1305 = vrot.slane %v1303, 4
      %v1306 = vshll.u32 %v999, 16
      %v1308 = vrot.slane %v1306, 5
      %v1309 = vor.u32 %v1305, %v1308
      %v1310 = vrot.slane %v1309, 4
      %v1312 = vshll.u32 %v1000, 16
      %v1314 = vrot.slane %v1312, 5
      %v1315 = vsel %vm1013, %v1310, %v1314
      %v1316 = vshrl.u32 %v1000, 16
      %v1318 = vrot.slane %v1316, 4
      %v1319 = vor.u32 %v1318, %v1314
      %v1320 = vrot.slane %v1319, 4
      %v1322 = vshll.u32 %v1001, 16
      %v1324 = vrot.slane %v1322, 5
      %v1325 = vsel %vm1013, %v1320, %v1324
      %v1327 = vshrl.u32 %v1002, 16
      %v1329 = vrot.slane %v1327, 4
      %v1330 = vshll.u32 %v1002, 16
      %v1332 = vrot.slane %v1330, 5
      %v1333 = vor.u32 %v1329, %v1332
      %v1334 = vrot.slane %v1333, 4
      %v1336 = vshll.u32 %v1003, 16
      %v1338 = vrot.slane %v1336, 5
      %v1339 = vsel %vm1013, %v1334, %v1338
      %v1340 = vshrl.u32 %v1003, 16
      %v1342 = vrot.slane %v1340, 4
      %v1343 = vor.u32 %v1342, %v1338
      %v1344 = vrot.slane %v1343, 4
      %v1346 = vshll.u32 %v1004, 16
      %v1348 = vrot.slane %v1346, 5
      %v1349 = vsel %vm1013, %v1344, %v1348
      %v1351 = vshrl.u32 %v1005, 16
      %v1353 = vrot.slane %v1351, 4
      %v1354 = vshll.u32 %v1005, 16
      %v1356 = vrot.slane %v1354, 5
      %v1357 = vor.u32 %v1353, %v1356
      %v1358 = vrot.slane %v1357, 4
      %v1360 = vshll.u32 %v1006, 16
      %v1362 = vrot.slane %v1360, 5
      %v1363 = vsel %vm1013, %v1358, %v1362
      %v1364 = vshrl.u32 %v1006, 16
      %v1366 = vrot.slane %v1364, 4
      %v1367 = vor.u32 %v1366, %v1362
      %v1368 = vrot.slane %v1367, 4
      %v1370 = vshll.u32 %v1007, 16
      %v1372 = vrot.slane %v1370, 5
      %v1373 = vsel %vm1013, %v1368, %v1372
      %v1375 = vshrl.u32 %v1008, 16
      %v1377 = vrot.slane %v1375, 4
      %v1378 = vshll.u32 %v1008, 16
      %v1380 = vrot.slane %v1378, 5
      %v1381 = vor.u32 %v1377, %v1380
      %v1382 = vrot.slane %v1381, 4
      %v1384 = vshll.u32 %v1009, 16
      %v1386 = vrot.slane %v1384, 5
      %v1387 = vsel %vm1013, %v1382, %v1386
      %v1388 = vshrl.u32 %v1009, 16
      %v1390 = vrot.slane %v1388, 4
      %v1391 = vor.u32 %v1390, %v1386
      %v1392 = vrot.slane %v1391, 4
      %v1394 = vshll.u32 %v1010, 16
      %v1396 = vrot.slane %v1394, 5
      %v1397 = vsel %vm1013, %v1392, %v1396
      %1430 = vst [vmem:[#allocation3 + $0x4] sm:$0xf] %v1027
      %1431 = vst [vmem:[#allocation3 + $0x28] sm:$0xf] %v1037
      %1432 = vst [vmem:[#allocation3 + $0x4c] sm:$0xf] %v1051
      %1433 = vst [vmem:[#allocation3 + $0x70] sm:$0xf] %v1061
      %1434 = vst [vmem:[#allocation3 + $0x94] sm:$0xf] %v1075
      %1435 = vst [vmem:[#allocation3 + $0xb8] sm:$0xf] %v1085
      %1436 = vst [vmem:[#allocation3 + $0xdc] sm:$0xf] %v1099
      %1437 = vst [vmem:[#allocation3 + $0x100] sm:$0xf] %v1109
      %1438 = vst [vmem:[#allocation3 + $0x124] sm:$0xf] %v1123
      %1439 = vst [vmem:[#allocation3 + $0x148] sm:$0xf] %v1133
      %1440 = vst [vmem:[#allocation3 + $0x16c] sm:$0xf] %v1147
      %1441 = vst [vmem:[#allocation3 + $0x190] sm:$0xf] %v1157
      %1442 = vst [vmem:[#allocation3 + $0x1b4] sm:$0xf] %v1171
      %1443 = vst [vmem:[#allocation3 + $0x1d8] sm:$0xf] %v1181
      %1444 = vst [vmem:[#allocation3 + $0x1fc] sm:$0xf] %v1195
      %1445 = vst [vmem:[#allocation3 + $0x220] sm:$0xf] %v1205
      %1446 = vst [vmem:[#allocation3 + $0x244] sm:$0xf] %v1219
      %1447 = vst [vmem:[#allocation3 + $0x268] sm:$0xf] %v1229
      %1448 = vst [vmem:[#allocation3 + $0x28c] sm:$0xf] %v1243
      %1449 = vst [vmem:[#allocation3 + $0x2b0] sm:$0xf] %v1253
      %1450 = vst [vmem:[#allocation3 + $0x2d4] sm:$0xf] %v1267
      %1451 = vst [vmem:[#allocation3 + $0x2f8] sm:$0xf] %v1277
      %1452 = vst [vmem:[#allocation3 + $0x31c] sm:$0xf] %v1291
      %1453 = vst [vmem:[#allocation3 + $0x340] sm:$0xf] %v1301
      %1454 = vst [vmem:[#allocation3 + $0x364] sm:$0xf] %v1315
      %1455 = vst [vmem:[#allocation3 + $0x388] sm:$0xf] %v1325
      %1456 = vst [vmem:[#allocation3 + $0x3ac] sm:$0xf] %v1339
      %1457 = vst [vmem:[#allocation3 + $0x3d0] sm:$0xf] %v1349
      %1458 = vst [vmem:[#allocation3 + $0x3f4] sm:$0xf] %v1363
      %1459 = vst [vmem:[#allocation3 + $0x418] sm:$0xf] %v1373
      %1460 = vst [vmem:[#allocation3 + $0x43c] sm:$0xf] %v1387
      %1461 = vst [vmem:[#allocation3 + $0x460] sm:$0xf] %v1397
      %v1462 = vld [vmem:[#allocation2] sm:$0xe]
      %v1463 = vld [vmem:[#allocation2 + $0x4] sm:$0xf]
      %v1464 = vld [vmem:[#allocation2 + $0x8] sm:$0x1]
      %v1465 = vld [vmem:[#allocation2 + $0xc] sm:$0xe]
      %v1466 = vld [vmem:[#allocation2 + $0x10] sm:$0xf]
      %v1467 = vld [vmem:[#allocation2 + $0x14] sm:$0x1]
      %v1468 = vld [vmem:[#allocation2 + $0x18] sm:$0xe]
      %v1469 = vld [vmem:[#allocation2 + $0x1c] sm:$0xf]
      %v1470 = vld [vmem:[#allocation2 + $0x20] sm:$0x1]
      %v1471 = vld [vmem:[#allocation2 + $0x24] sm:$0xe]
      %v1472 = vld [vmem:[#allocation2 + $0x28] sm:$0xf]
      %v1473 = vld [vmem:[#allocation2 + $0x2c] sm:$0x1]
      %v1474 = vld [vmem:[#allocation2 + $0x30] sm:$0xe]
      %v1475 = vld [vmem:[#allocation2 + $0x34] sm:$0xf]
      %v1476 = vld [vmem:[#allocation2 + $0x38] sm:$0x1]
      %v1477 = vld [vmem:[#allocation2 + $0x3c] sm:$0xe]
      %v1478 = vld [vmem:[#allocation2 + $0x40] sm:$0xf]
      %v1479 = vld [vmem:[#allocation2 + $0x44] sm:$0x1]
      %v1480 = vld [vmem:[#allocation2 + $0x48] sm:$0xe]
      %v1481 = vld [vmem:[#allocation2 + $0x4c] sm:$0xf]
      %v1482 = vld [vmem:[#allocation2 + $0x50] sm:$0x1]
      %v1483 = vld [vmem:[#allocation2 + $0x54] sm:$0xe]
      %v1484 = vld [vmem:[#allocation2 + $0x58] sm:$0xf]
      %v1485 = vld [vmem:[#allocation2 + $0x5c] sm:$0x1]
      %v1486 = vld [vmem:[#allocation2 + $0x60] sm:$0xe]
      %v1487 = vld [vmem:[#allocation2 + $0x64] sm:$0xf]
      %v1488 = vld [vmem:[#allocation2 + $0x68] sm:$0x1]
      %v1489 = vld [vmem:[#allocation2 + $0x6c] sm:$0xe]
      %v1490 = vld [vmem:[#allocation2 + $0x70] sm:$0xf]
      %v1491 = vld [vmem:[#allocation2 + $0x74] sm:$0x1]
      %v1492 = vld [vmem:[#allocation2 + $0x78] sm:$0xe]
      %v1493 = vld [vmem:[#allocation2 + $0x7c] sm:$0xf]
      %v1494 = vld [vmem:[#allocation2 + $0x80] sm:$0x1]
      %v1495 = vld [vmem:[#allocation2 + $0x84] sm:$0xe]
      %v1496 = vld [vmem:[#allocation2 + $0x88] sm:$0xf]
      %v1497 = vld [vmem:[#allocation2 + $0x8c] sm:$0x1]
      %v1498 = vld [vmem:[#allocation2 + $0x90] sm:$0xe]
      %v1499 = vld [vmem:[#allocation2 + $0x94] sm:$0xf]
      %v1500 = vld [vmem:[#allocation2 + $0x98] sm:$0x1]
      %v1501 = vld [vmem:[#allocation2 + $0x9c] sm:$0xe]
      %v1502 = vld [vmem:[#allocation2 + $0xa0] sm:$0xf]
      %v1503 = vld [vmem:[#allocation2 + $0xa4] sm:$0x1]
      %v1504 = vld [vmem:[#allocation2 + $0xa8] sm:$0xe]
      %v1505 = vld [vmem:[#allocation2 + $0xac] sm:$0xf]
      %v1506 = vld [vmem:[#allocation2 + $0xb0] sm:$0x1]
      %v1507 = vld [vmem:[#allocation2 + $0xb4] sm:$0xe]
      %v1508 = vld [vmem:[#allocation2 + $0xb8] sm:$0xf]
      %v1509 = vld [vmem:[#allocation2 + $0xbc] sm:$0x1]
      %vm1558 = vcmask 1042432
      %vm1559 = vcmask 1046532
      %vm1560 = vmor %vm1558, %vm1559
      %v1561 = vrot.slane %v1462, 5
      %v1562 = vrot.slane %v1561, 4
      %v1563 = vrot.slane %v1463, 5
      %v1564 = vsel %vm1560, %v1562, %v1563
      %v1565 = vrot.slane %v1563, 4
      %v1566 = vrot.slane %v1464, 5
      %v1567 = vsel %vm1560, %v1565, %v1566
      %v1568 = vrot.slane %v1465, 5
      %v1569 = vrot.slane %v1568, 4
      %v1570 = vrot.slane %v1466, 5
      %v1571 = vsel %vm1560, %v1569, %v1570
      %v1572 = vrot.slane %v1570, 4
      %v1573 = vrot.slane %v1467, 5
      %v1574 = vsel %vm1560, %v1572, %v1573
      %v1575 = vrot.slane %v1468, 5
      %v1576 = vrot.slane %v1575, 4
      %v1577 = vrot.slane %v1469, 5
      %v1578 = vsel %vm1560, %v1576, %v1577
      %v1579 = vrot.slane %v1577, 4
      %v1580 = vrot.slane %v1470, 5
      %v1581 = vsel %vm1560, %v1579, %v1580
      %v1582 = vrot.slane %v1471, 5
      %v1583 = vrot.slane %v1582, 4
      %v1584 = vrot.slane %v1472, 5
      %v1585 = vsel %vm1560, %v1583, %v1584
      %v1586 = vrot.slane %v1584, 4
      %v1587 = vrot.slane %v1473, 5
      %v1588 = vsel %vm1560, %v1586, %v1587
      %v1589 = vrot.slane %v1474, 5
      %v1590 = vrot.slane %v1589, 4
      %v1591 = vrot.slane %v1475, 5
      %v1592 = vsel %vm1560, %v1590, %v1591
      %v1593 = vrot.slane %v1591, 4
      %v1594 = vrot.slane %v1476, 5
      %v1595 = vsel %vm1560, %v1593, %v1594
      %v1596 = vrot.slane %v1477, 5
      %v1597 = vrot.slane %v1596, 4
      %v1598 = vrot.slane %v1478, 5
      %v1599 = vsel %vm1560, %v1597, %v1598
      %v1600 = vrot.slane %v1598, 4
      %v1601 = vrot.slane %v1479, 5
      %v1602 = vsel %vm1560, %v1600, %v1601
      %v1603 = vrot.slane %v1480, 5
      %v1604 = vrot.slane %v1603, 4
      %v1605 = vrot.slane %v1481, 5
      %v1606 = vsel %vm1560, %v1604, %v1605
      %v1607 = vrot.slane %v1605, 4
      %v1608 = vrot.slane %v1482, 5
      %v1609 = vsel %vm1560, %v1607, %v1608
      %v1610 = vrot.slane %v1483, 5
      %v1611 = vrot.slane %v1610, 4
      %v1612 = vrot.slane %v1484, 5
      %v1613 = vsel %vm1560, %v1611, %v1612
      %v1614 = vrot.slane %v1612, 4
      %v1615 = vrot.slane %v1485, 5
      %v1616 = vsel %vm1560, %v1614, %v1615
      %v1617 = vrot.slane %v1486, 5
      %v1618 = vrot.slane %v1617, 4
      %v1619 = vrot.slane %v1487, 5
      %v1620 = vsel %vm1560, %v1618, %v1619
      %v1621 = vrot.slane %v1619, 4
      %v1622 = vrot.slane %v1488, 5
      %v1623 = vsel %vm1560, %v1621, %v1622
      %v1624 = vrot.slane %v1489, 5
      %v1625 = vrot.slane %v1624, 4
      %v1626 = vrot.slane %v1490, 5
      %v1627 = vsel %vm1560, %v1625, %v1626
      %v1628 = vrot.slane %v1626, 4
      %v1629 = vrot.slane %v1491, 5
      %v1630 = vsel %vm1560, %v1628, %v1629
      %v1631 = vrot.slane %v1492, 5
      %v1632 = vrot.slane %v1631, 4
      %v1633 = vrot.slane %v1493, 5
      %v1634 = vsel %vm1560, %v1632, %v1633
      %v1635 = vrot.slane %v1633, 4
      %v1636 = vrot.slane %v1494, 5
      %v1637 = vsel %vm1560, %v1635, %v1636
      %v1638 = vrot.slane %v1495, 5
      %v1639 = vrot.slane %v1638, 4
      %v1640 = vrot.slane %v1496, 5
      %v1641 = vsel %vm1560, %v1639, %v1640
      %v1642 = vrot.slane %v1640, 4
      %v1643 = vrot.slane %v1497, 5
      %v1644 = vsel %vm1560, %v1642, %v1643
      %v1645 = vrot.slane %v1498, 5
      %v1646 = vrot.slane %v1645, 4
      %v1647 = vrot.slane %v1499, 5
      %v1648 = vsel %vm1560, %v1646, %v1647
      %v1649 = vrot.slane %v1647, 4
      %v1650 = vrot.slane %v1500, 5
      %v1651 = vsel %vm1560, %v1649, %v1650
      %v1652 = vrot.slane %v1501, 5
      %v1653 = vrot.slane %v1652, 4
      %v1654 = vrot.slane %v1502, 5
      %v1655 = vsel %vm1560, %v1653, %v1654
      %v1656 = vrot.slane %v1654, 4
      %v1657 = vrot.slane %v1503, 5
      %v1658 = vsel %vm1560, %v1656, %v1657
      %v1659 = vrot.slane %v1504, 5
      %v1660 = vrot.slane %v1659, 4
      %v1661 = vrot.slane %v1505, 5
      %v1662 = vsel %vm1560, %v1660, %v1661
      %v1663 = vrot.slane %v1661, 4
      %v1664 = vrot.slane %v1506, 5
      %v1665 = vsel %vm1560, %v1663, %v1664
      %v1666 = vrot.slane %v1507, 5
      %v1667 = vrot.slane %v1666, 4
      %v1668 = vrot.slane %v1508, 5
      %v1669 = vsel %vm1560, %v1667, %v1668
      %v1670 = vrot.slane %v1668, 4
      %v1671 = vrot.slane %v1509, 5
      %v1672 = vsel %vm1560, %v1670, %v1671
      %1705 = vst [vmem:[#allocation3 + $0x8] sm:$0xf] %v1564
      %1706 = vst [vmem:[#allocation3 + $0x2c] sm:$0xf] %v1567
      %1707 = vst [vmem:[#allocation3 + $0x50] sm:$0xf] %v1571
      %1708 = vst [vmem:[#allocation3 + $0x74] sm:$0xf] %v1574
      %1709 = vst [vmem:[#allocation3 + $0x98] sm:$0xf] %v1578
      %1710 = vst [vmem:[#allocation3 + $0xbc] sm:$0xf] %v1581
      %1711 = vst [vmem:[#allocation3 + $0xe0] sm:$0xf] %v1585
      %1712 = vst [vmem:[#allocation3 + $0x104] sm:$0xf] %v1588
      %1713 = vst [vmem:[#allocation3 + $0x128] sm:$0xf] %v1592
      %1714 = vst [vmem:[#allocation3 + $0x14c] sm:$0xf] %v1595
      %1715 = vst [vmem:[#allocation3 + $0x170] sm:$0xf] %v1599
      %1716 = vst [vmem:[#allocation3 + $0x194] sm:$0xf] %v1602
      %1717 = vst [vmem:[#allocation3 + $0x1b8] sm:$0xf] %v1606
      %1718 = vst [vmem:[#allocation3 + $0x1dc] sm:$0xf] %v1609
      %1719 = vst [vmem:[#allocation3 + $0x200] sm:$0xf] %v1613
      %1720 = vst [vmem:[#allocation3 + $0x224] sm:$0xf] %v1616
      %1721 = vst [vmem:[#allocation3 + $0x248] sm:$0xf] %v1620
      %1722 = vst [vmem:[#allocation3 + $0x26c] sm:$0xf] %v1623
      %1723 = vst [vmem:[#allocation3 + $0x290] sm:$0xf] %v1627
      %1724 = vst [vmem:[#allocation3 + $0x2b4] sm:$0xf] %v1630
      %1725 = vst [vmem:[#allocation3 + $0x2d8] sm:$0xf] %v1634
      %1726 = vst [vmem:[#allocation3 + $0x2fc] sm:$0xf] %v1637
      %1727 = vst [vmem:[#allocation3 + $0x320] sm:$0xf] %v1641
      %1728 = vst [vmem:[#allocation3 + $0x344] sm:$0xf] %v1644
      %1729 = vst [vmem:[#allocation3 + $0x368] sm:$0xf] %v1648
      %1730 = vst [vmem:[#allocation3 + $0x38c] sm:$0xf] %v1651
      %1731 = vst [vmem:[#allocation3 + $0x3b0] sm:$0xf] %v1655
      %1732 = vst [vmem:[#allocation3 + $0x3d4] sm:$0xf] %v1658
      %1733 = vst [vmem:[#allocation3 + $0x3f8] sm:$0xf] %v1662
      %1734 = vst [vmem:[#allocation3 + $0x41c] sm:$0xf] %v1665
      %1735 = vst [vmem:[#allocation3 + $0x440] sm:$0xf] %v1669
      %1736 = vst [vmem:[#allocation3 + $0x464] sm:$0xf] %v1672
      %v1737 = vld [vmem:[%s695] sm:$0xf]
      %v1738 = vld [vmem:[%s695 + $0x4] sm:$0xf]
      %v1739 = vld [vmem:[%s695 + $0xc] sm:$0xf]
      %v1740 = vld [vmem:[%s695 + $0x10] sm:$0xf]
      %v1741 = vld [vmem:[%s695 + $0x18] sm:$0xf]
      %v1742 = vld [vmem:[%s695 + $0x1c] sm:$0xf]
      %v1743 = vld [vmem:[%s695 + $0x24] sm:$0xf]
      %v1744 = vld [vmem:[%s695 + $0x28] sm:$0xf]
      %v1745 = vld [vmem:[%s695 + $0x30] sm:$0xf]
      %v1746 = vld [vmem:[%s695 + $0x34] sm:$0xf]
      %v1747 = vld [vmem:[%s695 + $0x3c] sm:$0xf]
      %v1748 = vld [vmem:[%s695 + $0x40] sm:$0xf]
      %v1749 = vld [vmem:[%s695 + $0x48] sm:$0xf]
      %v1750 = vld [vmem:[%s695 + $0x4c] sm:$0xf]
      %v1751 = vld [vmem:[%s695 + $0x54] sm:$0xf]
      %v1752 = vld [vmem:[%s695 + $0x58] sm:$0xf]
      %v1753 = vld [vmem:[%s695 + $0x60] sm:$0xf]
      %v1754 = vld [vmem:[%s695 + $0x64] sm:$0xf]
      %v1755 = vld [vmem:[%s695 + $0x6c] sm:$0xf]
      %v1756 = vld [vmem:[%s695 + $0x70] sm:$0xf]
      %v1757 = vld [vmem:[%s695 + $0x78] sm:$0xf]
      %v1758 = vld [vmem:[%s695 + $0x7c] sm:$0xf]
      %v1759 = vld [vmem:[%s695 + $0x84] sm:$0xf]
      %v1760 = vld [vmem:[%s695 + $0x88] sm:$0xf]
      %v1761 = vld [vmem:[%s695 + $0x90] sm:$0xf]
      %v1762 = vld [vmem:[%s695 + $0x94] sm:$0xf]
      %v1763 = vld [vmem:[%s695 + $0x9c] sm:$0xf]
      %v1764 = vld [vmem:[%s695 + $0xa0] sm:$0xf]
      %v1765 = vld [vmem:[%s695 + $0xa8] sm:$0xf]
      %v1766 = vld [vmem:[%s695 + $0xac] sm:$0xf]
      %v1767 = vld [vmem:[%s695 + $0xb4] sm:$0xf]
      %v1768 = vld [vmem:[%s695 + $0xb8] sm:$0xf]
      %1769 = vst [vmem:[#allocation3 + $0xc] sm:$0xf] %v1737
      %1770 = vst [vmem:[#allocation3 + $0x30] sm:$0xf] %v1738
      %1771 = vst [vmem:[#allocation3 + $0x54] sm:$0xf] %v1739
      %1772 = vst [vmem:[#allocation3 + $0x78] sm:$0xf] %v1740
      %1773 = vst [vmem:[#allocation3 + $0x9c] sm:$0xf] %v1741
      %1774 = vst [vmem:[#allocation3 + $0xc0] sm:$0xf] %v1742
      %1775 = vst [vmem:[#allocation3 + $0xe4] sm:$0xf] %v1743
      %1776 = vst [vmem:[#allocation3 + $0x108] sm:$0xf] %v1744
      %1777 = vst [vmem:[#allocation3 + $0x12c] sm:$0xf] %v1745
      %1778 = vst [vmem:[#allocation3 + $0x150] sm:$0xf] %v1746
      %1779 = vst [vmem:[#allocation3 + $0x174] sm:$0xf] %v1747
      %1780 = vst [vmem:[#allocation3 + $0x198] sm:$0xf] %v1748
      %1781 = vst [vmem:[#allocation3 + $0x1bc] sm:$0xf] %v1749
      %1782 = vst [vmem:[#allocation3 + $0x1e0] sm:$0xf] %v1750
      %1783 = vst [vmem:[#allocation3 + $0x204] sm:$0xf] %v1751
      %1784 = vst [vmem:[#allocation3 + $0x228] sm:$0xf] %v1752
      %1785 = vst [vmem:[#allocation3 + $0x24c] sm:$0xf] %v1753
      %1786 = vst [vmem:[#allocation3 + $0x270] sm:$0xf] %v1754
      %1787 = vst [vmem:[#allocation3 + $0x294] sm:$0xf] %v1755
      %1788 = vst [vmem:[#allocation3 + $0x2b8] sm:$0xf] %v1756
      %1789 = vst [vmem:[#allocation3 + $0x2dc] sm:$0xf] %v1757
      %1790 = vst [vmem:[#allocation3 + $0x300] sm:$0xf] %v1758
      %1791 = vst [vmem:[#allocation3 + $0x324] sm:$0xf] %v1759
      %1792 = vst [vmem:[#allocation3 + $0x348] sm:$0xf] %v1760
      %1793 = vst [vmem:[#allocation3 + $0x36c] sm:$0xf] %v1761
      %1794 = vst [vmem:[#allocation3 + $0x390] sm:$0xf] %v1762
      %1795 = vst [vmem:[#allocation3 + $0x3b4] sm:$0xf] %v1763
      %1796 = vst [vmem:[#allocation3 + $0x3d8] sm:$0xf] %v1764
      %1797 = vst [vmem:[#allocation3 + $0x3fc] sm:$0xf] %v1765
      %1798 = vst [vmem:[#allocation3 + $0x420] sm:$0xf] %v1766
      %1799 = vst [vmem:[#allocation3 + $0x444] sm:$0xf] %v1767
      %1800 = vst [vmem:[#allocation3 + $0x468] sm:$0xf] %v1768
      %v1801 = vld [vmem:[%s695] sm:$0xf]
      %v1802 = vld [vmem:[%s695 + $0x4] sm:$0xf]
      %v1803 = vld [vmem:[%s695 + $0x8] sm:$0x1]
      %v1804 = vld [vmem:[%s695 + $0xc] sm:$0xf]
      %v1805 = vld [vmem:[%s695 + $0x10] sm:$0xf]
      %v1806 = vld [vmem:[%s695 + $0x14] sm:$0x1]
      %v1807 = vld [vmem:[%s695 + $0x18] sm:$0xf]
      %v1808 = vld [vmem:[%s695 + $0x1c] sm:$0xf]
      %v1809 = vld [vmem:[%s695 + $0x20] sm:$0x1]
      %v1810 = vld [vmem:[%s695 + $0x24] sm:$0xf]
      %v1811 = vld [vmem:[%s695 + $0x28] sm:$0xf]
      %v1812 = vld [vmem:[%s695 + $0x2c] sm:$0x1]
      %v1813 = vld [vmem:[%s695 + $0x30] sm:$0xf]
      %v1814 = vld [vmem:[%s695 + $0x34] sm:$0xf]
      %v1815 = vld [vmem:[%s695 + $0x38] sm:$0x1]
      %v1816 = vld [vmem:[%s695 + $0x3c] sm:$0xf]
      %v1817 = vld [vmem:[%s695 + $0x40] sm:$0xf]
      %v1818 = vld [vmem:[%s695 + $0x44] sm:$0x1]
      %v1819 = vld [vmem:[%s695 + $0x48] sm:$0xf]
      %v1820 = vld [vmem:[%s695 + $0x4c] sm:$0xf]
      %v1821 = vld [vmem:[%s695 + $0x50] sm:$0x1]
      %v1822 = vld [vmem:[%s695 + $0x54] sm:$0xf]
      %v1823 = vld [vmem:[%s695 + $0x58] sm:$0xf]
      %v1824 = vld [vmem:[%s695 + $0x5c] sm:$0x1]
      %v1825 = vld [vmem:[%s695 + $0x60] sm:$0xf]
      %v1826 = vld [vmem:[%s695 + $0x64] sm:$0xf]
      %v1827 = vld [vmem:[%s695 + $0x68] sm:$0x1]
      %v1828 = vld [vmem:[%s695 + $0x6c] sm:$0xf]
      %v1829 = vld [vmem:[%s695 + $0x70] sm:$0xf]
      %v1830 = vld [vmem:[%s695 + $0x74] sm:$0x1]
      %v1831 = vld [vmem:[%s695 + $0x78] sm:$0xf]
      %v1832 = vld [vmem:[%s695 + $0x7c] sm:$0xf]
      %v1833 = vld [vmem:[%s695 + $0x80] sm:$0x1]
      %v1834 = vld [vmem:[%s695 + $0x84] sm:$0xf]
      %v1835 = vld [vmem:[%s695 + $0x88] sm:$0xf]
      %v1836 = vld [vmem:[%s695 + $0x8c] sm:$0x1]
      %v1837 = vld [vmem:[%s695 + $0x90] sm:$0xf]
      %v1838 = vld [vmem:[%s695 + $0x94] sm:$0xf]
      %v1839 = vld [vmem:[%s695 + $0x98] sm:$0x1]
      %v1840 = vld [vmem:[%s695 + $0x9c] sm:$0xf]
      %v1841 = vld [vmem:[%s695 + $0xa0] sm:$0xf]
      %v1842 = vld [vmem:[%s695 + $0xa4] sm:$0x1]
      %v1843 = vld [vmem:[%s695 + $0xa8] sm:$0xf]
      %v1844 = vld [vmem:[%s695 + $0xac] sm:$0xf]
      %v1845 = vld [vmem:[%s695 + $0xb0] sm:$0x1]
      %v1846 = vld [vmem:[%s695 + $0xb4] sm:$0xf]
      %v1847 = vld [vmem:[%s695 + $0xb8] sm:$0xf]
      %v1848 = vld [vmem:[%s695 + $0xbc] sm:$0x1]
      %v1850 = vshrl.u32 %v1801, 16
      %v1852 = vrot.slane %v1850, 4
      %v1853 = vshll.u32 %v1801, 16
      %v1855 = vrot.slane %v1853, 5
      %v1856 = vor.u32 %v1852, %v1855
      %v1857 = vrot.slane %v1856, 4
      %v1859 = vshll.u32 %v1802, 16
      %v1861 = vrot.slane %v1859, 5
      %v1862 = vsel %vm1013, %v1857, %v1861
      %v1863 = vshrl.u32 %v1802, 16
      %v1865 = vrot.slane %v1863, 4
      %v1866 = vor.u32 %v1865, %v1861
      %v1867 = vrot.slane %v1866, 4
      %v1869 = vshll.u32 %v1803, 16
      %v1871 = vrot.slane %v1869, 5
      %v1872 = vsel %vm1013, %v1867, %v1871
      %v1874 = vshrl.u32 %v1804, 16
      %v1876 = vrot.slane %v1874, 4
      %v1877 = vshll.u32 %v1804, 16
      %v1879 = vrot.slane %v1877, 5
      %v1880 = vor.u32 %v1876, %v1879
      %v1881 = vrot.slane %v1880, 4
      %v1883 = vshll.u32 %v1805, 16
      %v1885 = vrot.slane %v1883, 5
      %v1886 = vsel %vm1013, %v1881, %v1885
      %v1887 = vshrl.u32 %v1805, 16
      %v1889 = vrot.slane %v1887, 4
      %v1890 = vor.u32 %v1889, %v1885
      %v1891 = vrot.slane %v1890, 4
      %v1893 = vshll.u32 %v1806, 16
      %v1895 = vrot.slane %v1893, 5
      %v1896 = vsel %vm1013, %v1891, %v1895
      %v1898 = vshrl.u32 %v1807, 16
      %v1900 = vrot.slane %v1898, 4
      %v1901 = vshll.u32 %v1807, 16
      %v1903 = vrot.slane %v1901, 5
      %v1904 = vor.u32 %v1900, %v1903
      %v1905 = vrot.slane %v1904, 4
      %v1907 = vshll.u32 %v1808, 16
      %v1909 = vrot.slane %v1907, 5
      %v1910 = vsel %vm1013, %v1905, %v1909
      %v1911 = vshrl.u32 %v1808, 16
      %v1913 = vrot.slane %v1911, 4
      %v1914 = vor.u32 %v1913, %v1909
      %v1915 = vrot.slane %v1914, 4
      %v1917 = vshll.u32 %v1809, 16
      %v1919 = vrot.slane %v1917, 5
      %v1920 = vsel %vm1013, %v1915, %v1919
      %v1922 = vshrl.u32 %v1810, 16
      %v1924 = vrot.slane %v1922, 4
      %v1925 = vshll.u32 %v1810, 16
      %v1927 = vrot.slane %v1925, 5
      %v1928 = vor.u32 %v1924, %v1927
      %v1929 = vrot.slane %v1928, 4
      %v1931 = vshll.u32 %v1811, 16
      %v1933 = vrot.slane %v1931, 5
      %v1934 = vsel %vm1013, %v1929, %v1933
      %v1935 = vshrl.u32 %v1811, 16
      %v1937 = vrot.slane %v1935, 4
      %v1938 = vor.u32 %v1937, %v1933
      %v1939 = vrot.slane %v1938, 4
      %v1941 = vshll.u32 %v1812, 16
      %v1943 = vrot.slane %v1941, 5
      %v1944 = vsel %vm1013, %v1939, %v1943
      %v1946 = vshrl.u32 %v1813, 16
      %v1948 = vrot.slane %v1946, 4
      %v1949 = vshll.u32 %v1813, 16
      %v1951 = vrot.slane %v1949, 5
      %v1952 = vor.u32 %v1948, %v1951
      %v1953 = vrot.slane %v1952, 4
      %v1955 = vshll.u32 %v1814, 16
      %v1957 = vrot.slane %v1955, 5
      %v1958 = vsel %vm1013, %v1953, %v1957
      %v1959 = vshrl.u32 %v1814, 16
      %v1961 = vrot.slane %v1959, 4
      %v1962 = vor.u32 %v1961, %v1957
      %v1963 = vrot.slane %v1962, 4
      %v1965 = vshll.u32 %v1815, 16
      %v1967 = vrot.slane %v1965, 5
      %v1968 = vsel %vm1013, %v1963, %v1967
      %v1970 = vshrl.u32 %v1816, 16
      %v1972 = vrot.slane %v1970, 4
      %v1973 = vshll.u32 %v1816, 16
      %v1975 = vrot.slane %v1973, 5
      %v1976 = vor.u32 %v1972, %v1975
      %v1977 = vrot.slane %v1976, 4
      %v1979 = vshll.u32 %v1817, 16
      %v1981 = vrot.slane %v1979, 5
      %v1982 = vsel %vm1013, %v1977, %v1981
      %v1983 = vshrl.u32 %v1817, 16
      %v1985 = vrot.slane %v1983, 4
      %v1986 = vor.u32 %v1985, %v1981
      %v1987 = vrot.slane %v1986, 4
      %v1989 = vshll.u32 %v1818, 16
      %v1991 = vrot.slane %v1989, 5
      %v1992 = vsel %vm1013, %v1987, %v1991
      %v1994 = vshrl.u32 %v1819, 16
      %v1996 = vrot.slane %v1994, 4
      %v1997 = vshll.u32 %v1819, 16
      %v1999 = vrot.slane %v1997, 5
      %v2000 = vor.u32 %v1996, %v1999
      %v2001 = vrot.slane %v2000, 4
      %v2003 = vshll.u32 %v1820, 16
      %v2005 = vrot.slane %v2003, 5
      %v2006 = vsel %vm1013, %v2001, %v2005
      %v2007 = vshrl.u32 %v1820, 16
      %v2009 = vrot.slane %v2007, 4
      %v2010 = vor.u32 %v2009, %v2005
      %v2011 = vrot.slane %v2010, 4
      %v2013 = vshll.u32 %v1821, 16
      %v2015 = vrot.slane %v2013, 5
      %v2016 = vsel %vm1013, %v2011, %v2015
      %v2018 = vshrl.u32 %v1822, 16
      %v2020 = vrot.slane %v2018, 4
      %v2021 = vshll.u32 %v1822, 16
      %v2023 = vrot.slane %v2021, 5
      %v2024 = vor.u32 %v2020, %v2023
      %v2025 = vrot.slane %v2024, 4
      %v2027 = vshll.u32 %v1823, 16
      %v2029 = vrot.slane %v2027, 5
      %v2030 = vsel %vm1013, %v2025, %v2029
      %v2031 = vshrl.u32 %v1823, 16
      %v2033 = vrot.slane %v2031, 4
      %v2034 = vor.u32 %v2033, %v2029
      %v2035 = vrot.slane %v2034, 4
      %v2037 = vshll.u32 %v1824, 16
      %v2039 = vrot.slane %v2037, 5
      %v2040 = vsel %vm1013, %v2035, %v2039
      %v2042 = vshrl.u32 %v1825, 16
      %v2044 = vrot.slane %v2042, 4
      %v2045 = vshll.u32 %v1825, 16
      %v2047 = vrot.slane %v2045, 5
      %v2048 = vor.u32 %v2044, %v2047
      %v2049 = vrot.slane %v2048, 4
      %v2051 = vshll.u32 %v1826, 16
      %v2053 = vrot.slane %v2051, 5
      %v2054 = vsel %vm1013, %v2049, %v2053
      %v2055 = vshrl.u32 %v1826, 16
      %v2057 = vrot.slane %v2055, 4
      %v2058 = vor.u32 %v2057, %v2053
      %v2059 = vrot.slane %v2058, 4
      %v2061 = vshll.u32 %v1827, 16
      %v2063 = vrot.slane %v2061, 5
      %v2064 = vsel %vm1013, %v2059, %v2063
      %v2066 = vshrl.u32 %v1828, 16
      %v2068 = vrot.slane %v2066, 4
      %v2069 = vshll.u32 %v1828, 16
      %v2071 = vrot.slane %v2069, 5
      %v2072 = vor.u32 %v2068, %v2071
      %v2073 = vrot.slane %v2072, 4
      %v2075 = vshll.u32 %v1829, 16
      %v2077 = vrot.slane %v2075, 5
      %v2078 = vsel %vm1013, %v2073, %v2077
      %v2079 = vshrl.u32 %v1829, 16
      %v2081 = vrot.slane %v2079, 4
      %v2082 = vor.u32 %v2081, %v2077
      %v2083 = vrot.slane %v2082, 4
      %v2085 = vshll.u32 %v1830, 16
      %v2087 = vrot.slane %v2085, 5
      %v2088 = vsel %vm1013, %v2083, %v2087
      %v2090 = vshrl.u32 %v1831, 16
      %v2092 = vrot.slane %v2090, 4
      %v2093 = vshll.u32 %v1831, 16
      %v2095 = vrot.slane %v2093, 5
      %v2096 = vor.u32 %v2092, %v2095
      %v2097 = vrot.slane %v2096, 4
      %v2099 = vshll.u32 %v1832, 16
      %v2101 = vrot.slane %v2099, 5
      %v2102 = vsel %vm1013, %v2097, %v2101
      %v2103 = vshrl.u32 %v1832, 16
      %v2105 = vrot.slane %v2103, 4
      %v2106 = vor.u32 %v2105, %v2101
      %v2107 = vrot.slane %v2106, 4
      %v2109 = vshll.u32 %v1833, 16
      %v2111 = vrot.slane %v2109, 5
      %v2112 = vsel %vm1013, %v2107, %v2111
      %v2114 = vshrl.u32 %v1834, 16
      %v2116 = vrot.slane %v2114, 4
      %v2117 = vshll.u32 %v1834, 16
      %v2119 = vrot.slane %v2117, 5
      %v2120 = vor.u32 %v2116, %v2119
      %v2121 = vrot.slane %v2120, 4
      %v2123 = vshll.u32 %v1835, 16
      %v2125 = vrot.slane %v2123, 5
      %v2126 = vsel %vm1013, %v2121, %v2125
      %v2127 = vshrl.u32 %v1835, 16
      %v2129 = vrot.slane %v2127, 4
      %v2130 = vor.u32 %v2129, %v2125
      %v2131 = vrot.slane %v2130, 4
      %v2133 = vshll.u32 %v1836, 16
      %v2135 = vrot.slane %v2133, 5
      %v2136 = vsel %vm1013, %v2131, %v2135
      %v2138 = vshrl.u32 %v1837, 16
      %v2140 = vrot.slane %v2138, 4
      %v2141 = vshll.u32 %v1837, 16
      %v2143 = vrot.slane %v2141, 5
      %v2144 = vor.u32 %v2140, %v2143
      %v2145 = vrot.slane %v2144, 4
      %v2147 = vshll.u32 %v1838, 16
      %v2149 = vrot.slane %v2147, 5
      %v2150 = vsel %vm1013, %v2145, %v2149
      %v2151 = vshrl.u32 %v1838, 16
      %v2153 = vrot.slane %v2151, 4
      %v2154 = vor.u32 %v2153, %v2149
      %v2155 = vrot.slane %v2154, 4
      %v2157 = vshll.u32 %v1839, 16
      %v2159 = vrot.slane %v2157, 5
      %v2160 = vsel %vm1013, %v2155, %v2159
      %v2162 = vshrl.u32 %v1840, 16
      %v2164 = vrot.slane %v2162, 4
      %v2165 = vshll.u32 %v1840, 16
      %v2167 = vrot.slane %v2165, 5
      %v2168 = vor.u32 %v2164, %v2167
      %v2169 = vrot.slane %v2168, 4
      %v2171 = vshll.u32 %v1841, 16
      %v2173 = vrot.slane %v2171, 5
      %v2174 = vsel %vm1013, %v2169, %v2173
      %v2175 = vshrl.u32 %v1841, 16
      %v2177 = vrot.slane %v2175, 4
      %v2178 = vor.u32 %v2177, %v2173
      %v2179 = vrot.slane %v2178, 4
      %v2181 = vshll.u32 %v1842, 16
      %v2183 = vrot.slane %v2181, 5
      %v2184 = vsel %vm1013, %v2179, %v2183
      %v2186 = vshrl.u32 %v1843, 16
      %v2188 = vrot.slane %v2186, 4
      %v2189 = vshll.u32 %v1843, 16
      %v2191 = vrot.slane %v2189, 5
      %v2192 = vor.u32 %v2188, %v2191
      %v2193 = vrot.slane %v2192, 4
      %v2195 = vshll.u32 %v1844, 16
      %v2197 = vrot.slane %v2195, 5
      %v2198 = vsel %vm1013, %v2193, %v2197
      %v2199 = vshrl.u32 %v1844, 16
      %v2201 = vrot.slane %v2199, 4
      %v2202 = vor.u32 %v2201, %v2197
      %v2203 = vrot.slane %v2202, 4
      %v2205 = vshll.u32 %v1845, 16
      %v2207 = vrot.slane %v2205, 5
      %v2208 = vsel %vm1013, %v2203, %v2207
      %v2210 = vshrl.u32 %v1846, 16
      %v2212 = vrot.slane %v2210, 4
      %v2213 = vshll.u32 %v1846, 16
      %v2215 = vrot.slane %v2213, 5
      %v2216 = vor.u32 %v2212, %v2215
      %v2217 = vrot.slane %v2216, 4
      %v2219 = vshll.u32 %v1847, 16
      %v2221 = vrot.slane %v2219, 5
      %v2222 = vsel %vm1013, %v2217, %v2221
      %v2223 = vshrl.u32 %v1847, 16
      %v2225 = vrot.slane %v2223, 4
      %v2226 = vor.u32 %v2225, %v2221
      %v2227 = vrot.slane %v2226, 4
      %v2229 = vshll.u32 %v1848, 16
      %v2231 = vrot.slane %v2229, 5
      %v2232 = vsel %vm1013, %v2227, %v2231
      %2265 = vst [vmem:[#allocation3 + $0x10] sm:$0xf] %v1862
      %2266 = vst [vmem:[#allocation3 + $0x34] sm:$0xf] %v1872
      %2267 = vst [vmem:[#allocation3 + $0x58] sm:$0xf] %v1886
      %2268 = vst [vmem:[#allocation3 + $0x7c] sm:$0xf] %v1896
      %2269 = vst [vmem:[#allocation3 + $0xa0] sm:$0xf] %v1910
      %2270 = vst [vmem:[#allocation3 + $0xc4] sm:$0xf] %v1920
      %2271 = vst [vmem:[#allocation3 + $0xe8] sm:$0xf] %v1934
      %2272 = vst [vmem:[#allocation3 + $0x10c] sm:$0xf] %v1944
      %2273 = vst [vmem:[#allocation3 + $0x130] sm:$0xf] %v1958
      %2274 = vst [vmem:[#allocation3 + $0x154] sm:$0xf] %v1968
      %2275 = vst [vmem:[#allocation3 + $0x178] sm:$0xf] %v1982
      %2276 = vst [vmem:[#allocation3 + $0x19c] sm:$0xf] %v1992
      %2277 = vst [vmem:[#allocation3 + $0x1c0] sm:$0xf] %v2006
      %2278 = vst [vmem:[#allocation3 + $0x1e4] sm:$0xf] %v2016
      %2279 = vst [vmem:[#allocation3 + $0x208] sm:$0xf] %v2030
      %2280 = vst [vmem:[#allocation3 + $0x22c] sm:$0xf] %v2040
      %2281 = vst [vmem:[#allocation3 + $0x250] sm:$0xf] %v2054
      %2282 = vst [vmem:[#allocation3 + $0x274] sm:$0xf] %v2064
      %2283 = vst [vmem:[#allocation3 + $0x298] sm:$0xf] %v2078
      %2284 = vst [vmem:[#allocation3 + $0x2bc] sm:$0xf] %v2088
      %2285 = vst [vmem:[#allocation3 + $0x2e0] sm:$0xf] %v2102
      %2286 = vst [vmem:[#allocation3 + $0x304] sm:$0xf] %v2112
      %2287 = vst [vmem:[#allocation3 + $0x328] sm:$0xf] %v2126
      %2288 = vst [vmem:[#allocation3 + $0x34c] sm:$0xf] %v2136
      %2289 = vst [vmem:[#allocation3 + $0x370] sm:$0xf] %v2150
      %2290 = vst [vmem:[#allocation3 + $0x394] sm:$0xf] %v2160
      %2291 = vst [vmem:[#allocation3 + $0x3b8] sm:$0xf] %v2174
      %2292 = vst [vmem:[#allocation3 + $0x3dc] sm:$0xf] %v2184
      %2293 = vst [vmem:[#allocation3 + $0x400] sm:$0xf] %v2198
      %2294 = vst [vmem:[#allocation3 + $0x424] sm:$0xf] %v2208
      %2295 = vst [vmem:[#allocation3 + $0x448] sm:$0xf] %v2222
      %2296 = vst [vmem:[#allocation3 + $0x46c] sm:$0xf] %v2232
      %v2297 = vld [vmem:[%s695] sm:$0xe]
      %v2298 = vld [vmem:[%s695 + $0x4] sm:$0xf]
      %v2299 = vld [vmem:[%s695 + $0x8] sm:$0x1]
      %v2300 = vld [vmem:[%s695 + $0xc] sm:$0xe]
      %v2301 = vld [vmem:[%s695 + $0x10] sm:$0xf]
      %v2302 = vld [vmem:[%s695 + $0x14] sm:$0x1]
      %v2303 = vld [vmem:[%s695 + $0x18] sm:$0xe]
      %v2304 = vld [vmem:[%s695 + $0x1c] sm:$0xf]
      %v2305 = vld [vmem:[%s695 + $0x20] sm:$0x1]
      %v2306 = vld [vmem:[%s695 + $0x24] sm:$0xe]
      %v2307 = vld [vmem:[%s695 + $0x28] sm:$0xf]
      %v2308 = vld [vmem:[%s695 + $0x2c] sm:$0x1]
      %v2309 = vld [vmem:[%s695 + $0x30] sm:$0xe]
      %v2310 = vld [vmem:[%s695 + $0x34] sm:$0xf]
      %v2311 = vld [vmem:[%s695 + $0x38] sm:$0x1]
      %v2312 = vld [vmem:[%s695 + $0x3c] sm:$0xe]
      %v2313 = vld [vmem:[%s695 + $0x40] sm:$0xf]
      %v2314 = vld [vmem:[%s695 + $0x44] sm:$0x1]
      %v2315 = vld [vmem:[%s695 + $0x48] sm:$0xe]
      %v2316 = vld [vmem:[%s695 + $0x4c] sm:$0xf]
      %v2317 = vld [vmem:[%s695 + $0x50] sm:$0x1]
      %v2318 = vld [vmem:[%s695 + $0x54] sm:$0xe]
      %v2319 = vld [vmem:[%s695 + $0x58] sm:$0xf]
      %v2320 = vld [vmem:[%s695 + $0x5c] sm:$0x1]
      %v2321 = vld [vmem:[%s695 + $0x60] sm:$0xe]
      %v2322 = vld [vmem:[%s695 + $0x64] sm:$0xf]
      %v2323 = vld [vmem:[%s695 + $0x68] sm:$0x1]
      %v2324 = vld [vmem:[%s695 + $0x6c] sm:$0xe]
      %v2325 = vld [vmem:[%s695 + $0x70] sm:$0xf]
      %v2326 = vld [vmem:[%s695 + $0x74] sm:$0x1]
      %v2327 = vld [vmem:[%s695 + $0x78] sm:$0xe]
      %v2328 = vld [vmem:[%s695 + $0x7c] sm:$0xf]
      %v2329 = vld [vmem:[%s695 + $0x80] sm:$0x1]
      %v2330 = vld [vmem:[%s695 + $0x84] sm:$0xe]
      %v2331 = vld [vmem:[%s695 + $0x88] sm:$0xf]
      %v2332 = vld [vmem:[%s695 + $0x8c] sm:$0x1]
      %v2333 = vld [vmem:[%s695 + $0x90] sm:$0xe]
      %v2334 = vld [vmem:[%s695 + $0x94] sm:$0xf]
      %v2335 = vld [vmem:[%s695 + $0x98] sm:$0x1]
      %v2336 = vld [vmem:[%s695 + $0x9c] sm:$0xe]
      %v2337 = vld [vmem:[%s695 + $0xa0] sm:$0xf]
      %v2338 = vld [vmem:[%s695 + $0xa4] sm:$0x1]
      %v2339 = vld [vmem:[%s695 + $0xa8] sm:$0xe]
      %v2340 = vld [vmem:[%s695 + $0xac] sm:$0xf]
      %v2341 = vld [vmem:[%s695 + $0xb0] sm:$0x1]
      %v2342 = vld [vmem:[%s695 + $0xb4] sm:$0xe]
      %v2343 = vld [vmem:[%s695 + $0xb8] sm:$0xf]
      %v2344 = vld [vmem:[%s695 + $0xbc] sm:$0x1]
      %v2393 = vrot.slane %v2297, 5
      %v2394 = vrot.slane %v2393, 4
      %v2395 = vrot.slane %v2298, 5
      %v2396 = vsel %vm1560, %v2394, %v2395
      %v2397 = vrot.slane %v2395, 4
      %v2398 = vrot.slane %v2299, 5
      %v2399 = vsel %vm1560, %v2397, %v2398
      %v2400 = vrot.slane %v2300, 5
      %v2401 = vrot.slane %v2400, 4
      %v2402 = vrot.slane %v2301, 5
      %v2403 = vsel %vm1560, %v2401, %v2402
      %v2404 = vrot.slane %v2402, 4
      %v2405 = vrot.slane %v2302, 5
      %v2406 = vsel %vm1560, %v2404, %v2405
      %v2407 = vrot.slane %v2303, 5
      %v2408 = vrot.slane %v2407, 4
      %v2409 = vrot.slane %v2304, 5
      %v2410 = vsel %vm1560, %v2408, %v2409
      %v2411 = vrot.slane %v2409, 4
      %v2412 = vrot.slane %v2305, 5
      %v2413 = vsel %vm1560, %v2411, %v2412
      %v2414 = vrot.slane %v2306, 5
      %v2415 = vrot.slane %v2414, 4
      %v2416 = vrot.slane %v2307, 5
      %v2417 = vsel %vm1560, %v2415, %v2416
      %v2418 = vrot.slane %v2416, 4
      %v2419 = vrot.slane %v2308, 5
      %v2420 = vsel %vm1560, %v2418, %v2419
      %v2421 = vrot.slane %v2309, 5
      %v2422 = vrot.slane %v2421, 4
      %v2423 = vrot.slane %v2310, 5
      %v2424 = vsel %vm1560, %v2422, %v2423
      %v2425 = vrot.slane %v2423, 4
      %v2426 = vrot.slane %v2311, 5
      %v2427 = vsel %vm1560, %v2425, %v2426
      %v2428 = vrot.slane %v2312, 5
      %v2429 = vrot.slane %v2428, 4
      %v2430 = vrot.slane %v2313, 5
      %v2431 = vsel %vm1560, %v2429, %v2430
      %v2432 = vrot.slane %v2430, 4
      %v2433 = vrot.slane %v2314, 5
      %v2434 = vsel %vm1560, %v2432, %v2433
      %v2435 = vrot.slane %v2315, 5
      %v2436 = vrot.slane %v2435, 4
      %v2437 = vrot.slane %v2316, 5
      %v2438 = vsel %vm1560, %v2436, %v2437
      %v2439 = vrot.slane %v2437, 4
      %v2440 = vrot.slane %v2317, 5
      %v2441 = vsel %vm1560, %v2439, %v2440
      %v2442 = vrot.slane %v2318, 5
      %v2443 = vrot.slane %v2442, 4
      %v2444 = vrot.slane %v2319, 5
      %v2445 = vsel %vm1560, %v2443, %v2444
      %v2446 = vrot.slane %v2444, 4
      %v2447 = vrot.slane %v2320, 5
      %v2448 = vsel %vm1560, %v2446, %v2447
      %v2449 = vrot.slane %v2321, 5
      %v2450 = vrot.slane %v2449, 4
      %v2451 = vrot.slane %v2322, 5
      %v2452 = vsel %vm1560, %v2450, %v2451
      %v2453 = vrot.slane %v2451, 4
      %v2454 = vrot.slane %v2323, 5
      %v2455 = vsel %vm1560, %v2453, %v2454
      %v2456 = vrot.slane %v2324, 5
      %v2457 = vrot.slane %v2456, 4
      %v2458 = vrot.slane %v2325, 5
      %v2459 = vsel %vm1560, %v2457, %v2458
      %v2460 = vrot.slane %v2458, 4
      %v2461 = vrot.slane %v2326, 5
      %v2462 = vsel %vm1560, %v2460, %v2461
      %v2463 = vrot.slane %v2327, 5
      %v2464 = vrot.slane %v2463, 4
      %v2465 = vrot.slane %v2328, 5
      %v2466 = vsel %vm1560, %v2464, %v2465
      %v2467 = vrot.slane %v2465, 4
      %v2468 = vrot.slane %v2329, 5
      %v2469 = vsel %vm1560, %v2467, %v2468
      %v2470 = vrot.slane %v2330, 5
      %v2471 = vrot.slane %v2470, 4
      %v2472 = vrot.slane %v2331, 5
      %v2473 = vsel %vm1560, %v2471, %v2472
      %v2474 = vrot.slane %v2472, 4
      %v2475 = vrot.slane %v2332, 5
      %v2476 = vsel %vm1560, %v2474, %v2475
      %v2477 = vrot.slane %v2333, 5
      %v2478 = vrot.slane %v2477, 4
      %v2479 = vrot.slane %v2334, 5
      %v2480 = vsel %vm1560, %v2478, %v2479
      %v2481 = vrot.slane %v2479, 4
      %v2482 = vrot.slane %v2335, 5
      %v2483 = vsel %vm1560, %v2481, %v2482
      %v2484 = vrot.slane %v2336, 5
      %v2485 = vrot.slane %v2484, 4
      %v2486 = vrot.slane %v2337, 5
      %v2487 = vsel %vm1560, %v2485, %v2486
      %v2488 = vrot.slane %v2486, 4
      %v2489 = vrot.slane %v2338, 5
      %v2490 = vsel %vm1560, %v2488, %v2489
      %v2491 = vrot.slane %v2339, 5
      %v2492 = vrot.slane %v2491, 4
      %v2493 = vrot.slane %v2340, 5
      %v2494 = vsel %vm1560, %v2492, %v2493
      %v2495 = vrot.slane %v2493, 4
      %v2496 = vrot.slane %v2341, 5
      %v2497 = vsel %vm1560, %v2495, %v2496
      %v2498 = vrot.slane %v2342, 5
      %v2499 = vrot.slane %v2498, 4
      %v2500 = vrot.slane %v2343, 5
      %v2501 = vsel %vm1560, %v2499, %v2500
      %v2502 = vrot.slane %v2500, 4
      %v2503 = vrot.slane %v2344, 5
      %v2504 = vsel %vm1560, %v2502, %v2503
      %2537 = vst [vmem:[#allocation3 + $0x14] sm:$0xf] %v2396
      %2538 = vst [vmem:[#allocation3 + $0x38] sm:$0xf] %v2399
      %2539 = vst [vmem:[#allocation3 + $0x5c] sm:$0xf] %v2403
      %2540 = vst [vmem:[#allocation3 + $0x80] sm:$0xf] %v2406
      %2541 = vst [vmem:[#allocation3 + $0xa4] sm:$0xf] %v2410
      %2542 = vst [vmem:[#allocation3 + $0xc8] sm:$0xf] %v2413
      %2543 = vst [vmem:[#allocation3 + $0xec] sm:$0xf] %v2417
      %2544 = vst [vmem:[#allocation3 + $0x110] sm:$0xf] %v2420
      %2545 = vst [vmem:[#allocation3 + $0x134] sm:$0xf] %v2424
      %2546 = vst [vmem:[#allocation3 + $0x158] sm:$0xf] %v2427
      %2547 = vst [vmem:[#allocation3 + $0x17c] sm:$0xf] %v2431
      %2548 = vst [vmem:[#allocation3 + $0x1a0] sm:$0xf] %v2434
      %2549 = vst [vmem:[#allocation3 + $0x1c4] sm:$0xf] %v2438
      %2550 = vst [vmem:[#allocation3 + $0x1e8] sm:$0xf] %v2441
      %2551 = vst [vmem:[#allocation3 + $0x20c] sm:$0xf] %v2445
      %2552 = vst [vmem:[#allocation3 + $0x230] sm:$0xf] %v2448
      %2553 = vst [vmem:[#allocation3 + $0x254] sm:$0xf] %v2452
      %2554 = vst [vmem:[#allocation3 + $0x278] sm:$0xf] %v2455
      %2555 = vst [vmem:[#allocation3 + $0x29c] sm:$0xf] %v2459
      %2556 = vst [vmem:[#allocation3 + $0x2c0] sm:$0xf] %v2462
      %2557 = vst [vmem:[#allocation3 + $0x2e4] sm:$0xf] %v2466
      %2558 = vst [vmem:[#allocation3 + $0x308] sm:$0xf] %v2469
      %2559 = vst [vmem:[#allocation3 + $0x32c] sm:$0xf] %v2473
      %2560 = vst [vmem:[#allocation3 + $0x350] sm:$0xf] %v2476
      %2561 = vst [vmem:[#allocation3 + $0x374] sm:$0xf] %v2480
      %2562 = vst [vmem:[#allocation3 + $0x398] sm:$0xf] %v2483
      %2563 = vst [vmem:[#allocation3 + $0x3bc] sm:$0xf] %v2487
      %2564 = vst [vmem:[#allocation3 + $0x3e0] sm:$0xf] %v2490
      %2565 = vst [vmem:[#allocation3 + $0x404] sm:$0xf] %v2494
      %2566 = vst [vmem:[#allocation3 + $0x428] sm:$0xf] %v2497
      %2567 = vst [vmem:[#allocation3 + $0x44c] sm:$0xf] %v2501
      %2568 = vst [vmem:[#allocation3 + $0x470] sm:$0xf] %v2504
      %s2569 = scalar_lea.vmem [#allocation2], 24
      %v2570 = vld [vmem:[%s2569] sm:$0xf]
      %v2571 = vld [vmem:[%s2569 + $0x4] sm:$0xf]
      %v2572 = vld [vmem:[%s2569 + $0xc] sm:$0xf]
      %v2573 = vld [vmem:[%s2569 + $0x10] sm:$0xf]
      %v2574 = vld [vmem:[%s2569 + $0x18] sm:$0xf]
      %v2575 = vld [vmem:[%s2569 + $0x1c] sm:$0xf]
      %v2576 = vld [vmem:[%s2569 + $0x24] sm:$0xf]
      %v2577 = vld [vmem:[%s2569 + $0x28] sm:$0xf]
      %v2578 = vld [vmem:[%s2569 + $0x30] sm:$0xf]
      %v2579 = vld [vmem:[%s2569 + $0x34] sm:$0xf]
      %v2580 = vld [vmem:[%s2569 + $0x3c] sm:$0xf]
      %v2581 = vld [vmem:[%s2569 + $0x40] sm:$0xf]
      %v2582 = vld [vmem:[%s2569 + $0x48] sm:$0xf]
      %v2583 = vld [vmem:[%s2569 + $0x4c] sm:$0xf]
      %v2584 = vld [vmem:[%s2569 + $0x54] sm:$0xf]
      %v2585 = vld [vmem:[%s2569 + $0x58] sm:$0xf]
      %v2586 = vld [vmem:[%s2569 + $0x60] sm:$0xf]
      %v2587 = vld [vmem:[%s2569 + $0x64] sm:$0xf]
      %v2588 = vld [vmem:[%s2569 + $0x6c] sm:$0xf]
      %v2589 = vld [vmem:[%s2569 + $0x70] sm:$0xf]
      %v2590 = vld [vmem:[%s2569 + $0x78] sm:$0xf]
      %v2591 = vld [vmem:[%s2569 + $0x7c] sm:$0xf]
      %v2592 = vld [vmem:[%s2569 + $0x84] sm:$0xf]
      %v2593 = vld [vmem:[%s2569 + $0x88] sm:$0xf]
      %v2594 = vld [vmem:[%s2569 + $0x90] sm:$0xf]
      %v2595 = vld [vmem:[%s2569 + $0x94] sm:$0xf]
      %v2596 = vld [vmem:[%s2569 + $0x9c] sm:$0xf]
      %v2597 = vld [vmem:[%s2569 + $0xa0] sm:$0xf]
      %v2598 = vld [vmem:[%s2569 + $0xa8] sm:$0xf]
      %v2599 = vld [vmem:[%s2569 + $0xac] sm:$0xf]
      %v2600 = vld [vmem:[%s2569 + $0xb4] sm:$0xf]
      %v2601 = vld [vmem:[%s2569 + $0xb8] sm:$0xf]
      %2602 = vst [vmem:[#allocation3 + $0x18] sm:$0xf] %v2570
      %2603 = vst [vmem:[#allocation3 + $0x3c] sm:$0xf] %v2571
      %2604 = vst [vmem:[#allocation3 + $0x60] sm:$0xf] %v2572
      %2605 = vst [vmem:[#allocation3 + $0x84] sm:$0xf] %v2573
      %2606 = vst [vmem:[#allocation3 + $0xa8] sm:$0xf] %v2574
      %2607 = vst [vmem:[#allocation3 + $0xcc] sm:$0xf] %v2575
      %2608 = vst [vmem:[#allocation3 + $0xf0] sm:$0xf] %v2576
      %2609 = vst [vmem:[#allocation3 + $0x114] sm:$0xf] %v2577
      %2610 = vst [vmem:[#allocation3 + $0x138] sm:$0xf] %v2578
      %2611 = vst [vmem:[#allocation3 + $0x15c] sm:$0xf] %v2579
      %2612 = vst [vmem:[#allocation3 + $0x180] sm:$0xf] %v2580
      %2613 = vst [vmem:[#allocation3 + $0x1a4] sm:$0xf] %v2581
      %2614 = vst [vmem:[#allocation3 + $0x1c8] sm:$0xf] %v2582
      %2615 = vst [vmem:[#allocation3 + $0x1ec] sm:$0xf] %v2583
      %2616 = vst [vmem:[#allocation3 + $0x210] sm:$0xf] %v2584
      %2617 = vst [vmem:[#allocation3 + $0x234] sm:$0xf] %v2585
      %2618 = vst [vmem:[#allocation3 + $0x258] sm:$0xf] %v2586
      %2619 = vst [vmem:[#allocation3 + $0x27c] sm:$0xf] %v2587
      %2620 = vst [vmem:[#allocation3 + $0x2a0] sm:$0xf] %v2588
      %2621 = vst [vmem:[#allocation3 + $0x2c4] sm:$0xf] %v2589
      %2622 = vst [vmem:[#allocation3 + $0x2e8] sm:$0xf] %v2590
      %2623 = vst [vmem:[#allocation3 + $0x30c] sm:$0xf] %v2591
      %2624 = vst [vmem:[#allocation3 + $0x330] sm:$0xf] %v2592
      %2625 = vst [vmem:[#allocation3 + $0x354] sm:$0xf] %v2593
      %2626 = vst [vmem:[#allocation3 + $0x378] sm:$0xf] %v2594
      %2627 = vst [vmem:[#allocation3 + $0x39c] sm:$0xf] %v2595
      %2628 = vst [vmem:[#allocation3 + $0x3c0] sm:$0xf] %v2596
      %2629 = vst [vmem:[#allocation3 + $0x3e4] sm:$0xf] %v2597
      %2630 = vst [vmem:[#allocation3 + $0x408] sm:$0xf] %v2598
      %2631 = vst [vmem:[#allocation3 + $0x42c] sm:$0xf] %v2599
      %2632 = vst [vmem:[#allocation3 + $0x450] sm:$0xf] %v2600
      %2633 = vst [vmem:[#allocation3 + $0x474] sm:$0xf] %v2601
      %v2634 = vld [vmem:[%s2569] sm:$0xf]
      %v2635 = vld [vmem:[%s2569 + $0x4] sm:$0xf]
      %v2636 = vld [vmem:[%s2569 + $0x8] sm:$0x1]
      %v2637 = vld [vmem:[%s2569 + $0xc] sm:$0xf]
      %v2638 = vld [vmem:[%s2569 + $0x10] sm:$0xf]
      %v2639 = vld [vmem:[%s2569 + $0x14] sm:$0x1]
      %v2640 = vld [vmem:[%s2569 + $0x18] sm:$0xf]
      %v2641 = vld [vmem:[%s2569 + $0x1c] sm:$0xf]
      %v2642 = vld [vmem:[%s2569 + $0x20] sm:$0x1]
      %v2643 = vld [vmem:[%s2569 + $0x24] sm:$0xf]
      %v2644 = vld [vmem:[%s2569 + $0x28] sm:$0xf]
      %v2645 = vld [vmem:[%s2569 + $0x2c] sm:$0x1]
      %v2646 = vld [vmem:[%s2569 + $0x30] sm:$0xf]
      %v2647 = vld [vmem:[%s2569 + $0x34] sm:$0xf]
      %v2648 = vld [vmem:[%s2569 + $0x38] sm:$0x1]
      %v2649 = vld [vmem:[%s2569 + $0x3c] sm:$0xf]
      %v2650 = vld [vmem:[%s2569 + $0x40] sm:$0xf]
      %v2651 = vld [vmem:[%s2569 + $0x44] sm:$0x1]
      %v2652 = vld [vmem:[%s2569 + $0x48] sm:$0xf]
      %v2653 = vld [vmem:[%s2569 + $0x4c] sm:$0xf]
      %v2654 = vld [vmem:[%s2569 + $0x50] sm:$0x1]
      %v2655 = vld [vmem:[%s2569 + $0x54] sm:$0xf]
      %v2656 = vld [vmem:[%s2569 + $0x58] sm:$0xf]
      %v2657 = vld [vmem:[%s2569 + $0x5c] sm:$0x1]
      %v2658 = vld [vmem:[%s2569 + $0x60] sm:$0xf]
      %v2659 = vld [vmem:[%s2569 + $0x64] sm:$0xf]
      %v2660 = vld [vmem:[%s2569 + $0x68] sm:$0x1]
      %v2661 = vld [vmem:[%s2569 + $0x6c] sm:$0xf]
      %v2662 = vld [vmem:[%s2569 + $0x70] sm:$0xf]
      %v2663 = vld [vmem:[%s2569 + $0x74] sm:$0x1]
      %v2664 = vld [vmem:[%s2569 + $0x78] sm:$0xf]
      %v2665 = vld [vmem:[%s2569 + $0x7c] sm:$0xf]
      %v2666 = vld [vmem:[%s2569 + $0x80] sm:$0x1]
      %v2667 = vld [vmem:[%s2569 + $0x84] sm:$0xf]
      %v2668 = vld [vmem:[%s2569 + $0x88] sm:$0xf]
      %v2669 = vld [vmem:[%s2569 + $0x8c] sm:$0x1]
      %v2670 = vld [vmem:[%s2569 + $0x90] sm:$0xf]
      %v2671 = vld [vmem:[%s2569 + $0x94] sm:$0xf]
      %v2672 = vld [vmem:[%s2569 + $0x98] sm:$0x1]
      %v2673 = vld [vmem:[%s2569 + $0x9c] sm:$0xf]
      %v2674 = vld [vmem:[%s2569 + $0xa0] sm:$0xf]
      %v2675 = vld [vmem:[%s2569 + $0xa4] sm:$0x1]
      %v2676 = vld [vmem:[%s2569 + $0xa8] sm:$0xf]
      %v2677 = vld [vmem:[%s2569 + $0xac] sm:$0xf]
      %v2678 = vld [vmem:[%s2569 + $0xb0] sm:$0x1]
      %v2679 = vld [vmem:[%s2569 + $0xb4] sm:$0xf]
      %v2680 = vld [vmem:[%s2569 + $0xb8] sm:$0xf]
      %v2681 = vld [vmem:[%s2569 + $0xbc] sm:$0x1]
      %v2683 = vshrl.u32 %v2634, 16
      %v2685 = vrot.slane %v2683, 4
      %v2686 = vshll.u32 %v2634, 16
      %v2688 = vrot.slane %v2686, 5
      %v2689 = vor.u32 %v2685, %v2688
      %v2690 = vrot.slane %v2689, 4
      %v2692 = vshll.u32 %v2635, 16
      %v2694 = vrot.slane %v2692, 5
      %v2695 = vsel %vm1013, %v2690, %v2694
      %v2696 = vshrl.u32 %v2635, 16
      %v2698 = vrot.slane %v2696, 4
      %v2699 = vor.u32 %v2698, %v2694
      %v2700 = vrot.slane %v2699, 4
      %v2702 = vshll.u32 %v2636, 16
      %v2704 = vrot.slane %v2702, 5
      %v2705 = vsel %vm1013, %v2700, %v2704
      %v2707 = vshrl.u32 %v2637, 16
      %v2709 = vrot.slane %v2707, 4
      %v2710 = vshll.u32 %v2637, 16
      %v2712 = vrot.slane %v2710, 5
      %v2713 = vor.u32 %v2709, %v2712
      %v2714 = vrot.slane %v2713, 4
      %v2716 = vshll.u32 %v2638, 16
      %v2718 = vrot.slane %v2716, 5
      %v2719 = vsel %vm1013, %v2714, %v2718
      %v2720 = vshrl.u32 %v2638, 16
      %v2722 = vrot.slane %v2720, 4
      %v2723 = vor.u32 %v2722, %v2718
      %v2724 = vrot.slane %v2723, 4
      %v2726 = vshll.u32 %v2639, 16
      %v2728 = vrot.slane %v2726, 5
      %v2729 = vsel %vm1013, %v2724, %v2728
      %v2731 = vshrl.u32 %v2640, 16
      %v2733 = vrot.slane %v2731, 4
      %v2734 = vshll.u32 %v2640, 16
      %v2736 = vrot.slane %v2734, 5
      %v2737 = vor.u32 %v2733, %v2736
      %v2738 = vrot.slane %v2737, 4
      %v2740 = vshll.u32 %v2641, 16
      %v2742 = vrot.slane %v2740, 5
      %v2743 = vsel %vm1013, %v2738, %v2742
      %v2744 = vshrl.u32 %v2641, 16
      %v2746 = vrot.slane %v2744, 4
      %v2747 = vor.u32 %v2746, %v2742
      %v2748 = vrot.slane %v2747, 4
      %v2750 = vshll.u32 %v2642, 16
      %v2752 = vrot.slane %v2750, 5
      %v2753 = vsel %vm1013, %v2748, %v2752
      %v2755 = vshrl.u32 %v2643, 16
      %v2757 = vrot.slane %v2755, 4
      %v2758 = vshll.u32 %v2643, 16
      %v2760 = vrot.slane %v2758, 5
      %v2761 = vor.u32 %v2757, %v2760
      %v2762 = vrot.slane %v2761, 4
      %v2764 = vshll.u32 %v2644, 16
      %v2766 = vrot.slane %v2764, 5
      %v2767 = vsel %vm1013, %v2762, %v2766
      %v2768 = vshrl.u32 %v2644, 16
      %v2770 = vrot.slane %v2768, 4
      %v2771 = vor.u32 %v2770, %v2766
      %v2772 = vrot.slane %v2771, 4
      %v2774 = vshll.u32 %v2645, 16
      %v2776 = vrot.slane %v2774, 5
      %v2777 = vsel %vm1013, %v2772, %v2776
      %v2779 = vshrl.u32 %v2646, 16
      %v2781 = vrot.slane %v2779, 4
      %v2782 = vshll.u32 %v2646, 16
      %v2784 = vrot.slane %v2782, 5
      %v2785 = vor.u32 %v2781, %v2784
      %v2786 = vrot.slane %v2785, 4
      %v2788 = vshll.u32 %v2647, 16
      %v2790 = vrot.slane %v2788, 5
      %v2791 = vsel %vm1013, %v2786, %v2790
      %v2792 = vshrl.u32 %v2647, 16
      %v2794 = vrot.slane %v2792, 4
      %v2795 = vor.u32 %v2794, %v2790
      %v2796 = vrot.slane %v2795, 4
      %v2798 = vshll.u32 %v2648, 16
      %v2800 = vrot.slane %v2798, 5
      %v2801 = vsel %vm1013, %v2796, %v2800
      %v2803 = vshrl.u32 %v2649, 16
      %v2805 = vrot.slane %v2803, 4
      %v2806 = vshll.u32 %v2649, 16
      %v2808 = vrot.slane %v2806, 5
      %v2809 = vor.u32 %v2805, %v2808
      %v2810 = vrot.slane %v2809, 4
      %v2812 = vshll.u32 %v2650, 16
      %v2814 = vrot.slane %v2812, 5
      %v2815 = vsel %vm1013, %v2810, %v2814
      %v2816 = vshrl.u32 %v2650, 16
      %v2818 = vrot.slane %v2816, 4
      %v2819 = vor.u32 %v2818, %v2814
      %v2820 = vrot.slane %v2819, 4
      %v2822 = vshll.u32 %v2651, 16
      %v2824 = vrot.slane %v2822, 5
      %v2825 = vsel %vm1013, %v2820, %v2824
      %v2827 = vshrl.u32 %v2652, 16
      %v2829 = vrot.slane %v2827, 4
      %v2830 = vshll.u32 %v2652, 16
      %v2832 = vrot.slane %v2830, 5
      %v2833 = vor.u32 %v2829, %v2832
      %v2834 = vrot.slane %v2833, 4
      %v2836 = vshll.u32 %v2653, 16
      %v2838 = vrot.slane %v2836, 5
      %v2839 = vsel %vm1013, %v2834, %v2838
      %v2840 = vshrl.u32 %v2653, 16
      %v2842 = vrot.slane %v2840, 4
      %v2843 = vor.u32 %v2842, %v2838
      %v2844 = vrot.slane %v2843, 4
      %v2846 = vshll.u32 %v2654, 16
      %v2848 = vrot.slane %v2846, 5
      %v2849 = vsel %vm1013, %v2844, %v2848
      %v2851 = vshrl.u32 %v2655, 16
      %v2853 = vrot.slane %v2851, 4
      %v2854 = vshll.u32 %v2655, 16
      %v2856 = vrot.slane %v2854, 5
      %v2857 = vor.u32 %v2853, %v2856
      %v2858 = vrot.slane %v2857, 4
      %v2860 = vshll.u32 %v2656, 16
      %v2862 = vrot.slane %v2860, 5
      %v2863 = vsel %vm1013, %v2858, %v2862
      %v2864 = vshrl.u32 %v2656, 16
      %v2866 = vrot.slane %v2864, 4
      %v2867 = vor.u32 %v2866, %v2862
      %v2868 = vrot.slane %v2867, 4
      %v2870 = vshll.u32 %v2657, 16
      %v2872 = vrot.slane %v2870, 5
      %v2873 = vsel %vm1013, %v2868, %v2872
      %v2875 = vshrl.u32 %v2658, 16
      %v2877 = vrot.slane %v2875, 4
      %v2878 = vshll.u32 %v2658, 16
      %v2880 = vrot.slane %v2878, 5
      %v2881 = vor.u32 %v2877, %v2880
      %v2882 = vrot.slane %v2881, 4
      %v2884 = vshll.u32 %v2659, 16
      %v2886 = vrot.slane %v2884, 5
      %v2887 = vsel %vm1013, %v2882, %v2886
      %v2888 = vshrl.u32 %v2659, 16
      %v2890 = vrot.slane %v2888, 4
      %v2891 = vor.u32 %v2890, %v2886
      %v2892 = vrot.slane %v2891, 4
      %v2894 = vshll.u32 %v2660, 16
      %v2896 = vrot.slane %v2894, 5
      %v2897 = vsel %vm1013, %v2892, %v2896
      %v2899 = vshrl.u32 %v2661, 16
      %v2901 = vrot.slane %v2899, 4
      %v2902 = vshll.u32 %v2661, 16
      %v2904 = vrot.slane %v2902, 5
      %v2905 = vor.u32 %v2901, %v2904
      %v2906 = vrot.slane %v2905, 4
      %v2908 = vshll.u32 %v2662, 16
      %v2910 = vrot.slane %v2908, 5
      %v2911 = vsel %vm1013, %v2906, %v2910
      %v2912 = vshrl.u32 %v2662, 16
      %v2914 = vrot.slane %v2912, 4
      %v2915 = vor.u32 %v2914, %v2910
      %v2916 = vrot.slane %v2915, 4
      %v2918 = vshll.u32 %v2663, 16
      %v2920 = vrot.slane %v2918, 5
      %v2921 = vsel %vm1013, %v2916, %v2920
      %v2923 = vshrl.u32 %v2664, 16
      %v2925 = vrot.slane %v2923, 4
      %v2926 = vshll.u32 %v2664, 16
      %v2928 = vrot.slane %v2926, 5
      %v2929 = vor.u32 %v2925, %v2928
      %v2930 = vrot.slane %v2929, 4
      %v2932 = vshll.u32 %v2665, 16
      %v2934 = vrot.slane %v2932, 5
      %v2935 = vsel %vm1013, %v2930, %v2934
      %v2936 = vshrl.u32 %v2665, 16
      %v2938 = vrot.slane %v2936, 4
      %v2939 = vor.u32 %v2938, %v2934
      %v2940 = vrot.slane %v2939, 4
      %v2942 = vshll.u32 %v2666, 16
      %v2944 = vrot.slane %v2942, 5
      %v2945 = vsel %vm1013, %v2940, %v2944
      %v2947 = vshrl.u32 %v2667, 16
      %v2949 = vrot.slane %v2947, 4
      %v2950 = vshll.u32 %v2667, 16
      %v2952 = vrot.slane %v2950, 5
      %v2953 = vor.u32 %v2949, %v2952
      %v2954 = vrot.slane %v2953, 4
      %v2956 = vshll.u32 %v2668, 16
      %v2958 = vrot.slane %v2956, 5
      %v2959 = vsel %vm1013, %v2954, %v2958
      %v2960 = vshrl.u32 %v2668, 16
      %v2962 = vrot.slane %v2960, 4
      %v2963 = vor.u32 %v2962, %v2958
      %v2964 = vrot.slane %v2963, 4
      %v2966 = vshll.u32 %v2669, 16
      %v2968 = vrot.slane %v2966, 5
      %v2969 = vsel %vm1013, %v2964, %v2968
      %v2971 = vshrl.u32 %v2670, 16
      %v2973 = vrot.slane %v2971, 4
      %v2974 = vshll.u32 %v2670, 16
      %v2976 = vrot.slane %v2974, 5
      %v2977 = vor.u32 %v2973, %v2976
      %v2978 = vrot.slane %v2977, 4
      %v2980 = vshll.u32 %v2671, 16
      %v2982 = vrot.slane %v2980, 5
      %v2983 = vsel %vm1013, %v2978, %v2982
      %v2984 = vshrl.u32 %v2671, 16
      %v2986 = vrot.slane %v2984, 4
      %v2987 = vor.u32 %v2986, %v2982
      %v2988 = vrot.slane %v2987, 4
      %v2990 = vshll.u32 %v2672, 16
      %v2992 = vrot.slane %v2990, 5
      %v2993 = vsel %vm1013, %v2988, %v2992
      %v2995 = vshrl.u32 %v2673, 16
      %v2997 = vrot.slane %v2995, 4
      %v2998 = vshll.u32 %v2673, 16
      %v3000 = vrot.slane %v2998, 5
      %v3001 = vor.u32 %v2997, %v3000
      %v3002 = vrot.slane %v3001, 4
      %v3004 = vshll.u32 %v2674, 16
      %v3006 = vrot.slane %v3004, 5
      %v3007 = vsel %vm1013, %v3002, %v3006
      %v3008 = vshrl.u32 %v2674, 16
      %v3010 = vrot.slane %v3008, 4
      %v3011 = vor.u32 %v3010, %v3006
      %v3012 = vrot.slane %v3011, 4
      %v3014 = vshll.u32 %v2675, 16
      %v3016 = vrot.slane %v3014, 5
      %v3017 = vsel %vm1013, %v3012, %v3016
      %v3019 = vshrl.u32 %v2676, 16
      %v3021 = vrot.slane %v3019, 4
      %v3022 = vshll.u32 %v2676, 16
      %v3024 = vrot.slane %v3022, 5
      %v3025 = vor.u32 %v3021, %v3024
      %v3026 = vrot.slane %v3025, 4
      %v3028 = vshll.u32 %v2677, 16
      %v3030 = vrot.slane %v3028, 5
      %v3031 = vsel %vm1013, %v3026, %v3030
      %v3032 = vshrl.u32 %v2677, 16
      %v3034 = vrot.slane %v3032, 4
      %v3035 = vor.u32 %v3034, %v3030
      %v3036 = vrot.slane %v3035, 4
      %v3038 = vshll.u32 %v2678, 16
      %v3040 = vrot.slane %v3038, 5
      %v3041 = vsel %vm1013, %v3036, %v3040
      %v3043 = vshrl.u32 %v2679, 16
      %v3045 = vrot.slane %v3043, 4
      %v3046 = vshll.u32 %v2679, 16
      %v3048 = vrot.slane %v3046, 5
      %v3049 = vor.u32 %v3045, %v3048
      %v3050 = vrot.slane %v3049, 4
      %v3052 = vshll.u32 %v2680, 16
      %v3054 = vrot.slane %v3052, 5
      %v3055 = vsel %vm1013, %v3050, %v3054
      %v3056 = vshrl.u32 %v2680, 16
      %v3058 = vrot.slane %v3056, 4
      %v3059 = vor.u32 %v3058, %v3054
      %v3060 = vrot.slane %v3059, 4
      %v3062 = vshll.u32 %v2681, 16
      %v3064 = vrot.slane %v3062, 5
      %v3065 = vsel %vm1013, %v3060, %v3064
      %3098 = vst [vmem:[#allocation3 + $0x1c] sm:$0xf] %v2695
      %3099 = vst [vmem:[#allocation3 + $0x40] sm:$0xf] %v2705
      %3100 = vst [vmem:[#allocation3 + $0x64] sm:$0xf] %v2719
      %3101 = vst [vmem:[#allocation3 + $0x88] sm:$0xf] %v2729
      %3102 = vst [vmem:[#allocation3 + $0xac] sm:$0xf] %v2743
      %3103 = vst [vmem:[#allocation3 + $0xd0] sm:$0xf] %v2753
      %3104 = vst [vmem:[#allocation3 + $0xf4] sm:$0xf] %v2767
      %3105 = vst [vmem:[#allocation3 + $0x118] sm:$0xf] %v2777
      %3106 = vst [vmem:[#allocation3 + $0x13c] sm:$0xf] %v2791
      %3107 = vst [vmem:[#allocation3 + $0x160] sm:$0xf] %v2801
      %3108 = vst [vmem:[#allocation3 + $0x184] sm:$0xf] %v2815
      %3109 = vst [vmem:[#allocation3 + $0x1a8] sm:$0xf] %v2825
      %3110 = vst [vmem:[#allocation3 + $0x1cc] sm:$0xf] %v2839
      %3111 = vst [vmem:[#allocation3 + $0x1f0] sm:$0xf] %v2849
      %3112 = vst [vmem:[#allocation3 + $0x214] sm:$0xf] %v2863
      %3113 = vst [vmem:[#allocation3 + $0x238] sm:$0xf] %v2873
      %3114 = vst [vmem:[#allocation3 + $0x25c] sm:$0xf] %v2887
      %3115 = vst [vmem:[#allocation3 + $0x280] sm:$0xf] %v2897
      %3116 = vst [vmem:[#allocation3 + $0x2a4] sm:$0xf] %v2911
      %3117 = vst [vmem:[#allocation3 + $0x2c8] sm:$0xf] %v2921
      %3118 = vst [vmem:[#allocation3 + $0x2ec] sm:$0xf] %v2935
      %3119 = vst [vmem:[#allocation3 + $0x310] sm:$0xf] %v2945
      %3120 = vst [vmem:[#allocation3 + $0x334] sm:$0xf] %v2959
      %3121 = vst [vmem:[#allocation3 + $0x358] sm:$0xf] %v2969
      %3122 = vst [vmem:[#allocation3 + $0x37c] sm:$0xf] %v2983
      %3123 = vst [vmem:[#allocation3 + $0x3a0] sm:$0xf] %v2993
      %3124 = vst [vmem:[#allocation3 + $0x3c4] sm:$0xf] %v3007
      %3125 = vst [vmem:[#allocation3 + $0x3e8] sm:$0xf] %v3017
      %3126 = vst [vmem:[#allocation3 + $0x40c] sm:$0xf] %v3031
      %3127 = vst [vmem:[#allocation3 + $0x430] sm:$0xf] %v3041
      %3128 = vst [vmem:[#allocation3 + $0x454] sm:$0xf] %v3055
      %3129 = vst [vmem:[#allocation3 + $0x478] sm:$0xf] %v3065
      %v3130 = vld [vmem:[%s2569] sm:$0xe]
      %v3131 = vld [vmem:[%s2569 + $0x4] sm:$0xf]
      %v3132 = vld [vmem:[%s2569 + $0x8] sm:$0x1]
      %v3133 = vld [vmem:[%s2569 + $0xc] sm:$0xe]
      %v3134 = vld [vmem:[%s2569 + $0x10] sm:$0xf]
      %v3135 = vld [vmem:[%s2569 + $0x14] sm:$0x1]
      %v3136 = vld [vmem:[%s2569 + $0x18] sm:$0xe]
      %v3137 = vld [vmem:[%s2569 + $0x1c] sm:$0xf]
      %v3138 = vld [vmem:[%s2569 + $0x20] sm:$0x1]
      %v3139 = vld [vmem:[%s2569 + $0x24] sm:$0xe]
      %v3140 = vld [vmem:[%s2569 + $0x28] sm:$0xf]
      %v3141 = vld [vmem:[%s2569 + $0x2c] sm:$0x1]
      %v3142 = vld [vmem:[%s2569 + $0x30] sm:$0xe]
      %v3143 = vld [vmem:[%s2569 + $0x34] sm:$0xf]
      %v3144 = vld [vmem:[%s2569 + $0x38] sm:$0x1]
      %v3145 = vld [vmem:[%s2569 + $0x3c] sm:$0xe]
      %v3146 = vld [vmem:[%s2569 + $0x40] sm:$0xf]
      %v3147 = vld [vmem:[%s2569 + $0x44] sm:$0x1]
      %v3148 = vld [vmem:[%s2569 + $0x48] sm:$0xe]
      %v3149 = vld [vmem:[%s2569 + $0x4c] sm:$0xf]
      %v3150 = vld [vmem:[%s2569 + $0x50] sm:$0x1]
      %v3151 = vld [vmem:[%s2569 + $0x54] sm:$0xe]
      %v3152 = vld [vmem:[%s2569 + $0x58] sm:$0xf]
      %v3153 = vld [vmem:[%s2569 + $0x5c] sm:$0x1]
      %v3154 = vld [vmem:[%s2569 + $0x60] sm:$0xe]
      %v3155 = vld [vmem:[%s2569 + $0x64] sm:$0xf]
      %v3156 = vld [vmem:[%s2569 + $0x68] sm:$0x1]
      %v3157 = vld [vmem:[%s2569 + $0x6c] sm:$0xe]
      %v3158 = vld [vmem:[%s2569 + $0x70] sm:$0xf]
      %v3159 = vld [vmem:[%s2569 + $0x74] sm:$0x1]
      %v3160 = vld [vmem:[%s2569 + $0x78] sm:$0xe]
      %v3161 = vld [vmem:[%s2569 + $0x7c] sm:$0xf]
      %v3162 = vld [vmem:[%s2569 + $0x80] sm:$0x1]
      %v3163 = vld [vmem:[%s2569 + $0x84] sm:$0xe]
      %v3164 = vld [vmem:[%s2569 + $0x88] sm:$0xf]
      %v3165 = vld [vmem:[%s2569 + $0x8c] sm:$0x1]
      %v3166 = vld [vmem:[%s2569 + $0x90] sm:$0xe]
      %v3167 = vld [vmem:[%s2569 + $0x94] sm:$0xf]
      %v3168 = vld [vmem:[%s2569 + $0x98] sm:$0x1]
      %v3169 = vld [vmem:[%s2569 + $0x9c] sm:$0xe]
      %v3170 = vld [vmem:[%s2569 + $0xa0] sm:$0xf]
      %v3171 = vld [vmem:[%s2569 + $0xa4] sm:$0x1]
      %v3172 = vld [vmem:[%s2569 + $0xa8] sm:$0xe]
      %v3173 = vld [vmem:[%s2569 + $0xac] sm:$0xf]
      %v3174 = vld [vmem:[%s2569 + $0xb0] sm:$0x1]
      %v3175 = vld [vmem:[%s2569 + $0xb4] sm:$0xe]
      %v3176 = vld [vmem:[%s2569 + $0xb8] sm:$0xf]
      %v3177 = vld [vmem:[%s2569 + $0xbc] sm:$0x1]
      %v3226 = vrot.slane %v3130, 5
      %v3227 = vrot.slane %v3226, 4
      %v3228 = vrot.slane %v3131, 5
      %v3229 = vsel %vm1560, %v3227, %v3228
      %v3230 = vrot.slane %v3228, 4
      %v3231 = vrot.slane %v3132, 5
      %v3232 = vsel %vm1560, %v3230, %v3231
      %v3233 = vrot.slane %v3133, 5
      %v3234 = vrot.slane %v3233, 4
      %v3235 = vrot.slane %v3134, 5
      %v3236 = vsel %vm1560, %v3234, %v3235
      %v3237 = vrot.slane %v3235, 4
      %v3238 = vrot.slane %v3135, 5
      %v3239 = vsel %vm1560, %v3237, %v3238
      %v3240 = vrot.slane %v3136, 5
      %v3241 = vrot.slane %v3240, 4
      %v3242 = vrot.slane %v3137, 5
      %v3243 = vsel %vm1560, %v3241, %v3242
      %v3244 = vrot.slane %v3242, 4
      %v3245 = vrot.slane %v3138, 5
      %v3246 = vsel %vm1560, %v3244, %v3245
      %v3247 = vrot.slane %v3139, 5
      %v3248 = vrot.slane %v3247, 4
      %v3249 = vrot.slane %v3140, 5
      %v3250 = vsel %vm1560, %v3248, %v3249
      %v3251 = vrot.slane %v3249, 4
      %v3252 = vrot.slane %v3141, 5
      %v3253 = vsel %vm1560, %v3251, %v3252
      %v3254 = vrot.slane %v3142, 5
      %v3255 = vrot.slane %v3254, 4
      %v3256 = vrot.slane %v3143, 5
      %v3257 = vsel %vm1560, %v3255, %v3256
      %v3258 = vrot.slane %v3256, 4
      %v3259 = vrot.slane %v3144, 5
      %v3260 = vsel %vm1560, %v3258, %v3259
      %v3261 = vrot.slane %v3145, 5
      %v3262 = vrot.slane %v3261, 4
      %v3263 = vrot.slane %v3146, 5
      %v3264 = vsel %vm1560, %v3262, %v3263
      %v3265 = vrot.slane %v3263, 4
      %v3266 = vrot.slane %v3147, 5
      %v3267 = vsel %vm1560, %v3265, %v3266
      %v3268 = vrot.slane %v3148, 5
      %v3269 = vrot.slane %v3268, 4
      %v3270 = vrot.slane %v3149, 5
      %v3271 = vsel %vm1560, %v3269, %v3270
      %v3272 = vrot.slane %v3270, 4
      %v3273 = vrot.slane %v3150, 5
      %v3274 = vsel %vm1560, %v3272, %v3273
      %v3275 = vrot.slane %v3151, 5
      %v3276 = vrot.slane %v3275, 4
      %v3277 = vrot.slane %v3152, 5
      %v3278 = vsel %vm1560, %v3276, %v3277
      %v3279 = vrot.slane %v3277, 4
      %v3280 = vrot.slane %v3153, 5
      %v3281 = vsel %vm1560, %v3279, %v3280
      %v3282 = vrot.slane %v3154, 5
      %v3283 = vrot.slane %v3282, 4
      %v3284 = vrot.slane %v3155, 5
      %v3285 = vsel %vm1560, %v3283, %v3284
      %v3286 = vrot.slane %v3284, 4
      %v3287 = vrot.slane %v3156, 5
      %v3288 = vsel %vm1560, %v3286, %v3287
      %v3289 = vrot.slane %v3157, 5
      %v3290 = vrot.slane %v3289, 4
      %v3291 = vrot.slane %v3158, 5
      %v3292 = vsel %vm1560, %v3290, %v3291
      %v3293 = vrot.slane %v3291, 4
      %v3294 = vrot.slane %v3159, 5
      %v3295 = vsel %vm1560, %v3293, %v3294
      %v3296 = vrot.slane %v3160, 5
      %v3297 = vrot.slane %v3296, 4
      %v3298 = vrot.slane %v3161, 5
      %v3299 = vsel %vm1560, %v3297, %v3298
      %v3300 = vrot.slane %v3298, 4
      %v3301 = vrot.slane %v3162, 5
      %v3302 = vsel %vm1560, %v3300, %v3301
      %v3303 = vrot.slane %v3163, 5
      %v3304 = vrot.slane %v3303, 4
      %v3305 = vrot.slane %v3164, 5
      %v3306 = vsel %vm1560, %v3304, %v3305
      %v3307 = vrot.slane %v3305, 4
      %v3308 = vrot.slane %v3165, 5
      %v3309 = vsel %vm1560, %v3307, %v3308
      %v3310 = vrot.slane %v3166, 5
      %v3311 = vrot.slane %v3310, 4
      %v3312 = vrot.slane %v3167, 5
      %v3313 = vsel %vm1560, %v3311, %v3312
      %v3314 = vrot.slane %v3312, 4
      %v3315 = vrot.slane %v3168, 5
      %v3316 = vsel %vm1560, %v3314, %v3315
      %v3317 = vrot.slane %v3169, 5
      %v3318 = vrot.slane %v3317, 4
      %v3319 = vrot.slane %v3170, 5
      %v3320 = vsel %vm1560, %v3318, %v3319
      %v3321 = vrot.slane %v3319, 4
      %v3322 = vrot.slane %v3171, 5
      %v3323 = vsel %vm1560, %v3321, %v3322
      %v3324 = vrot.slane %v3172, 5
      %v3325 = vrot.slane %v3324, 4
      %v3326 = vrot.slane %v3173, 5
      %v3327 = vsel %vm1560, %v3325, %v3326
      %v3328 = vrot.slane %v3326, 4
      %v3329 = vrot.slane %v3174, 5
      %v3330 = vsel %vm1560, %v3328, %v3329
      %v3331 = vrot.slane %v3175, 5
      %v3332 = vrot.slane %v3331, 4
      %v3333 = vrot.slane %v3176, 5
      %v3334 = vsel %vm1560, %v3332, %v3333
      %v3335 = vrot.slane %v3333, 4
      %v3336 = vrot.slane %v3177, 5
      %v3337 = vsel %vm1560, %v3335, %v3336
      %3370 = vst [vmem:[#allocation3 + $0x20] sm:$0xf] %v3229
      %3371 = vst [vmem:[#allocation3 + $0x44] sm:$0xf] %v3232
      %3372 = vst [vmem:[#allocation3 + $0x68] sm:$0xf] %v3236
      %3373 = vst [vmem:[#allocation3 + $0x8c] sm:$0xf] %v3239
      %3374 = vst [vmem:[#allocation3 + $0xb0] sm:$0xf] %v3243
      %3375 = vst [vmem:[#allocation3 + $0xd4] sm:$0xf] %v3246
      %3376 = vst [vmem:[#allocation3 + $0xf8] sm:$0xf] %v3250
      %3377 = vst [vmem:[#allocation3 + $0x11c] sm:$0xf] %v3253
      %3378 = vst [vmem:[#allocation3 + $0x140] sm:$0xf] %v3257
      %3379 = vst [vmem:[#allocation3 + $0x164] sm:$0xf] %v3260
      %3380 = vst [vmem:[#allocation3 + $0x188] sm:$0xf] %v3264
      %3381 = vst [vmem:[#allocation3 + $0x1ac] sm:$0xf] %v3267
      %3382 = vst [vmem:[#allocation3 + $0x1d0] sm:$0xf] %v3271
      %3383 = vst [vmem:[#allocation3 + $0x1f4] sm:$0xf] %v3274
      %3384 = vst [vmem:[#allocation3 + $0x218] sm:$0xf] %v3278
      %3385 = vst [vmem:[#allocation3 + $0x23c] sm:$0xf] %v3281
      %3386 = vst [vmem:[#allocation3 + $0x260] sm:$0xf] %v3285
      %3387 = vst [vmem:[#allocation3 + $0x284] sm:$0xf] %v3288
      %3388 = vst [vmem:[#allocation3 + $0x2a8] sm:$0xf] %v3292
      %3389 = vst [vmem:[#allocation3 + $0x2cc] sm:$0xf] %v3295
      %3390 = vst [vmem:[#allocation3 + $0x2f0] sm:$0xf] %v3299
      %3391 = vst [vmem:[#allocation3 + $0x314] sm:$0xf] %v3302
      %3392 = vst [vmem:[#allocation3 + $0x338] sm:$0xf] %v3306
      %3393 = vst [vmem:[#allocation3 + $0x35c] sm:$0xf] %v3309
      %3394 = vst [vmem:[#allocation3 + $0x380] sm:$0xf] %v3313
      %3395 = vst [vmem:[#allocation3 + $0x3a4] sm:$0xf] %v3316
      %3396 = vst [vmem:[#allocation3 + $0x3c8] sm:$0xf] %v3320
      %3397 = vst [vmem:[#allocation3 + $0x3ec] sm:$0xf] %v3323
      %3398 = vst [vmem:[#allocation3 + $0x410] sm:$0xf] %v3327
      %3399 = vst [vmem:[#allocation3 + $0x434] sm:$0xf] %v3330
      %3400 = vst [vmem:[#allocation3 + $0x458] sm:$0xf] %v3334
      %3401 = vst [vmem:[#allocation3 + $0x47c] sm:$0xf] %v3337
      %v3402 = vld [vmem:[#allocation3] sm:$0xff]
      %v3403 = vld [vmem:[#allocation3 + $0x8] sm:$0xff]
      %v3404 = vld [vmem:[#allocation3 + $0x10] sm:$0xff]
      %v3405 = vld [vmem:[#allocation3 + $0x18] sm:$0xff]
      %v3406 = vld [vmem:[#allocation3 + $0x20] sm:$0xf]
      %v3407 = vld [vmem:[#allocation3 + $0x24] sm:$0xff]
      %v3408 = vld [vmem:[#allocation3 + $0x2c] sm:$0xff]
      %v3409 = vld [vmem:[#allocation3 + $0x34] sm:$0xff]
      %v3410 = vld [vmem:[#allocation3 + $0x3c] sm:$0xff]
      %v3411 = vld [vmem:[#allocation3 + $0x44] sm:$0xf]
      %v3412 = vld [vmem:[#allocation3 + $0x48] sm:$0xff]
      %v3413 = vld [vmem:[#allocation3 + $0x50] sm:$0xff]
      %v3414 = vld [vmem:[#allocation3 + $0x58] sm:$0xff]
      %v3415 = vld [vmem:[#allocation3 + $0x60] sm:$0xff]
      %v3416 = vld [vmem:[#allocation3 + $0x68] sm:$0xf]
      %v3417 = vld [vmem:[#allocation3 + $0x6c] sm:$0xff]
      %v3418 = vld [vmem:[#allocation3 + $0x74] sm:$0xff]
      %v3419 = vld [vmem:[#allocation3 + $0x7c] sm:$0xff]
      %v3420 = vld [vmem:[#allocation3 + $0x84] sm:$0xff]
      %v3421 = vld [vmem:[#allocation3 + $0x8c] sm:$0xf]
      %v3422 = vld [vmem:[#allocation3 + $0x90] sm:$0xff]
      %v3423 = vld [vmem:[#allocation3 + $0x98] sm:$0xff]
      %v3424 = vld [vmem:[#allocation3 + $0xa0] sm:$0xff]
      %v3425 = vld [vmem:[#allocation3 + $0xa8] sm:$0xff]
      %v3426 = vld [vmem:[#allocation3 + $0xb0] sm:$0xf]
      %v3427 = vld [vmem:[#allocation3 + $0xb4] sm:$0xff]
      %v3428 = vld [vmem:[#allocation3 + $0xbc] sm:$0xff]
      %v3429 = vld [vmem:[#allocation3 + $0xc4] sm:$0xff]
      %v3430 = vld [vmem:[#allocation3 + $0xcc] sm:$0xff]
      %v3431 = vld [vmem:[#allocation3 + $0xd4] sm:$0xf]
      %v3432 = vld [vmem:[#allocation3 + $0xd8] sm:$0xff]
      %v3433 = vld [vmem:[#allocation3 + $0xe0] sm:$0xff]
      %v3434 = vld [vmem:[#allocation3 + $0xe8] sm:$0xff]
      %v3435 = vld [vmem:[#allocation3 + $0xf0] sm:$0xff]
      %v3436 = vld [vmem:[#allocation3 + $0xf8] sm:$0xf]
      %v3437 = vld [vmem:[#allocation3 + $0xfc] sm:$0xff]
      %v3438 = vld [vmem:[#allocation3 + $0x104] sm:$0xff]
      %v3439 = vld [vmem:[#allocation3 + $0x10c] sm:$0xff]
      %v3440 = vld [vmem:[#allocation3 + $0x114] sm:$0xff]
      %v3441 = vld [vmem:[#allocation3 + $0x11c] sm:$0xf]
      %v3442 = vld [vmem:[#allocation3 + $0x120] sm:$0xff]
      %v3443 = vld [vmem:[#allocation3 + $0x128] sm:$0xff]
      %v3444 = vld [vmem:[#allocation3 + $0x130] sm:$0xff]
      %v3445 = vld [vmem:[#allocation3 + $0x138] sm:$0xff]
      %v3446 = vld [vmem:[#allocation3 + $0x140] sm:$0xf]
      %v3447 = vld [vmem:[#allocation3 + $0x144] sm:$0xff]
      %v3448 = vld [vmem:[#allocation3 + $0x14c] sm:$0xff]
      %v3449 = vld [vmem:[#allocation3 + $0x154] sm:$0xff]
      %v3450 = vld [vmem:[#allocation3 + $0x15c] sm:$0xff]
      %v3451 = vld [vmem:[#allocation3 + $0x164] sm:$0xf]
      %v3452 = vld [vmem:[#allocation3 + $0x168] sm:$0xff]
      %v3453 = vld [vmem:[#allocation3 + $0x170] sm:$0xff]
      %v3454 = vld [vmem:[#allocation3 + $0x178] sm:$0xff]
      %v3455 = vld [vmem:[#allocation3 + $0x180] sm:$0xff]
      %v3456 = vld [vmem:[#allocation3 + $0x188] sm:$0xf]
      %v3457 = vld [vmem:[#allocation3 + $0x18c] sm:$0xff]
      %v3458 = vld [vmem:[#allocation3 + $0x194] sm:$0xff]
      %v3459 = vld [vmem:[#allocation3 + $0x19c] sm:$0xff]
      %v3460 = vld [vmem:[#allocation3 + $0x1a4] sm:$0xff]
      %v3461 = vld [vmem:[#allocation3 + $0x1ac] sm:$0xf]
      %v3462 = vld [vmem:[#allocation3 + $0x1b0] sm:$0xff]
      %v3463 = vld [vmem:[#allocation3 + $0x1b8] sm:$0xff]
      %v3464 = vld [vmem:[#allocation3 + $0x1c0] sm:$0xff]
      %v3465 = vld [vmem:[#allocation3 + $0x1c8] sm:$0xff]
      %v3466 = vld [vmem:[#allocation3 + $0x1d0] sm:$0xf]
      %v3467 = vld [vmem:[#allocation3 + $0x1d4] sm:$0xff]
      %v3468 = vld [vmem:[#allocation3 + $0x1dc] sm:$0xff]
      %v3469 = vld [vmem:[#allocation3 + $0x1e4] sm:$0xff]
      %v3470 = vld [vmem:[#allocation3 + $0x1ec] sm:$0xff]
      %v3471 = vld [vmem:[#allocation3 + $0x1f4] sm:$0xf]
      %v3472 = vld [vmem:[#allocation3 + $0x1f8] sm:$0xff]
      %v3473 = vld [vmem:[#allocation3 + $0x200] sm:$0xff]
      %v3474 = vld [vmem:[#allocation3 + $0x208] sm:$0xff]
      %v3475 = vld [vmem:[#allocation3 + $0x210] sm:$0xff]
      %v3476 = vld [vmem:[#allocation3 + $0x218] sm:$0xf]
      %v3477 = vld [vmem:[#allocation3 + $0x21c] sm:$0xff]
      %v3478 = vld [vmem:[#allocation3 + $0x224] sm:$0xff]
      %v3479 = vld [vmem:[#allocation3 + $0x22c] sm:$0xff]
      %v3480 = vld [vmem:[#allocation3 + $0x234] sm:$0xff]
      %v3481 = vld [vmem:[#allocation3 + $0x23c] sm:$0xf]
      %v3482 = vld [vmem:[#allocation3 + $0x240] sm:$0xff]
      %v3483 = vld [vmem:[#allocation3 + $0x248] sm:$0xff]
      %v3484 = vld [vmem:[#allocation3 + $0x250] sm:$0xff]
      %v3485 = vld [vmem:[#allocation3 + $0x258] sm:$0xff]
      %v3486 = vld [vmem:[#allocation3 + $0x260] sm:$0xf]
      %v3487 = vld [vmem:[#allocation3 + $0x264] sm:$0xff]
      %v3488 = vld [vmem:[#allocation3 + $0x26c] sm:$0xff]
      %v3489 = vld [vmem:[#allocation3 + $0x274] sm:$0xff]
      %v3490 = vld [vmem:[#allocation3 + $0x27c] sm:$0xff]
      %v3491 = vld [vmem:[#allocation3 + $0x284] sm:$0xf]
      %v3492 = vld [vmem:[#allocation3 + $0x288] sm:$0xff]
      %v3493 = vld [vmem:[#allocation3 + $0x290] sm:$0xff]
      %v3494 = vld [vmem:[#allocation3 + $0x298] sm:$0xff]
      %v3495 = vld [vmem:[#allocation3 + $0x2a0] sm:$0xff]
      %v3496 = vld [vmem:[#allocation3 + $0x2a8] sm:$0xf]
      %v3497 = vld [vmem:[#allocation3 + $0x2ac] sm:$0xff]
      %v3498 = vld [vmem:[#allocation3 + $0x2b4] sm:$0xff]
      %v3499 = vld [vmem:[#allocation3 + $0x2bc] sm:$0xff]
      %v3500 = vld [vmem:[#allocation3 + $0x2c4] sm:$0xff]
      %v3501 = vld [vmem:[#allocation3 + $0x2cc] sm:$0xf]
      %v3502 = vld [vmem:[#allocation3 + $0x2d0] sm:$0xff]
      %v3503 = vld [vmem:[#allocation3 + $0x2d8] sm:$0xff]
      %v3504 = vld [vmem:[#allocation3 + $0x2e0] sm:$0xff]
      %v3505 = vld [vmem:[#allocation3 + $0x2e8] sm:$0xff]
      %v3506 = vld [vmem:[#allocation3 + $0x2f0] sm:$0xf]
      %v3507 = vld [vmem:[#allocation3 + $0x2f4] sm:$0xff]
      %v3508 = vld [vmem:[#allocation3 + $0x2fc] sm:$0xff]
      %v3509 = vld [vmem:[#allocation3 + $0x304] sm:$0xff]
      %v3510 = vld [vmem:[#allocation3 + $0x30c] sm:$0xff]
      %v3511 = vld [vmem:[#allocation3 + $0x314] sm:$0xf]
      %v3512 = vld [vmem:[#allocation3 + $0x318] sm:$0xff]
      %v3513 = vld [vmem:[#allocation3 + $0x320] sm:$0xff]
      %v3514 = vld [vmem:[#allocation3 + $0x328] sm:$0xff]
      %v3515 = vld [vmem:[#allocation3 + $0x330] sm:$0xff]
      %v3516 = vld [vmem:[#allocation3 + $0x338] sm:$0xf]
      %v3517 = vld [vmem:[#allocation3 + $0x33c] sm:$0xff]
      %v3518 = vld [vmem:[#allocation3 + $0x344] sm:$0xff]
      %v3519 = vld [vmem:[#allocation3 + $0x34c] sm:$0xff]
      %v3520 = vld [vmem:[#allocation3 + $0x354] sm:$0xff]
      %v3521 = vld [vmem:[#allocation3 + $0x35c] sm:$0xf]
      %v3522 = vld [vmem:[#allocation3 + $0x360] sm:$0xff]
      %v3523 = vld [vmem:[#allocation3 + $0x368] sm:$0xff]
      %v3524 = vld [vmem:[#allocation3 + $0x370] sm:$0xff]
      %v3525 = vld [vmem:[#allocation3 + $0x378] sm:$0xff]
      %v3526 = vld [vmem:[#allocation3 + $0x380] sm:$0xf]
      %v3527 = vld [vmem:[#allocation3 + $0x384] sm:$0xff]
      %v3528 = vld [vmem:[#allocation3 + $0x38c] sm:$0xff]
      %v3529 = vld [vmem:[#allocation3 + $0x394] sm:$0xff]
      %v3530 = vld [vmem:[#allocation3 + $0x39c] sm:$0xff]
      %v3531 = vld [vmem:[#allocation3 + $0x3a4] sm:$0xf]
      %v3532 = vld [vmem:[#allocation3 + $0x3a8] sm:$0xff]
      %v3533 = vld [vmem:[#allocation3 + $0x3b0] sm:$0xff]
      %v3534 = vld [vmem:[#allocation3 + $0x3b8] sm:$0xff]
      %v3535 = vld [vmem:[#allocation3 + $0x3c0] sm:$0xff]
      %v3536 = vld [vmem:[#allocation3 + $0x3c8] sm:$0xf]
      %v3537 = vld [vmem:[#allocation3 + $0x3cc] sm:$0xff]
      %v3538 = vld [vmem:[#allocation3 + $0x3d4] sm:$0xff]
      %v3539 = vld [vmem:[#allocation3 + $0x3dc] sm:$0xff]
      %v3540 = vld [vmem:[#allocation3 + $0x3e4] sm:$0xff]
      %v3541 = vld [vmem:[#allocation3 + $0x3ec] sm:$0xf]
      %v3542 = vld [vmem:[#allocation3 + $0x3f0] sm:$0xff]
      %v3543 = vld [vmem:[#allocation3 + $0x3f8] sm:$0xff]
      %v3544 = vld [vmem:[#allocation3 + $0x400] sm:$0xff]
      %v3545 = vld [vmem:[#allocation3 + $0x408] sm:$0xff]
      %v3546 = vld [vmem:[#allocation3 + $0x410] sm:$0xf]
      %v3547 = vld [vmem:[#allocation3 + $0x414] sm:$0xff]
      %v3548 = vld [vmem:[#allocation3 + $0x41c] sm:$0xff]
      %v3549 = vld [vmem:[#allocation3 + $0x424] sm:$0xff]
      %v3550 = vld [vmem:[#allocation3 + $0x42c] sm:$0xff]
      %v3551 = vld [vmem:[#allocation3 + $0x434] sm:$0xf]
      %v3552 = vld [vmem:[#allocation3 + $0x438] sm:$0xff]
      %v3553 = vld [vmem:[#allocation3 + $0x440] sm:$0xff]
      %v3554 = vld [vmem:[#allocation3 + $0x448] sm:$0xff]
      %v3555 = vld [vmem:[#allocation3 + $0x450] sm:$0xff]
      %v3556 = vld [vmem:[#allocation3 + $0x458] sm:$0xf]
      %v3557 = vld [vmem:[#allocation3 + $0x45c] sm:$0xff]
      %v3558 = vld [vmem:[#allocation3 + $0x464] sm:$0xff]
      %v3559 = vld [vmem:[#allocation3 + $0x46c] sm:$0xff]
      %v3560 = vld [vmem:[#allocation3 + $0x474] sm:$0xff]
      %v3561 = vld [vmem:[#allocation3 + $0x47c] sm:$0xf]
      %v3562 = vld [vmem:[%s1] sm:$0xf]
      %v3563 = vld [vmem:[%s1 + $0x4] sm:$0xf]
      %v3564 = vld [vmem:[%s1 + $0x8] sm:$0xf]
      %v3565 = vld [vmem:[%s1 + $0xc] sm:$0xf]
      %v3566 = vld [vmem:[%s1 + $0x10] sm:$0xf]
      %v3567 = vld [vmem:[%s1 + $0x14] sm:$0xf]
      %v3568 = vld [vmem:[%s1 + $0x18] sm:$0xf]
      %v3569 = vld [vmem:[%s1 + $0x1c] sm:$0xf]
      %v3570 = vld [vmem:[%s1 + $0x20] sm:$0xf]
      %v3571 = vld [vmem:[%s1 + $0x24] sm:$0xf]
      %v3572 = vld [vmem:[%s1 + $0x28] sm:$0xf]
      %v3573 = vld [vmem:[%s1 + $0x2c] sm:$0xf]
      %v3574 = vld [vmem:[%s1 + $0x30] sm:$0xf]
      %v3575 = vld [vmem:[%s1 + $0x34] sm:$0xf]
      %v3576 = vld [vmem:[%s1 + $0x38] sm:$0xf]
      %v3577 = vld [vmem:[%s1 + $0x3c] sm:$0xf]
      %v3578 = vld [vmem:[%s1 + $0x40] sm:$0xf]
      %v3579 = vld [vmem:[%s1 + $0x44] sm:$0xf]
      %v3580 = vld [vmem:[%s1 + $0x48] sm:$0xf]
      %v3581 = vld [vmem:[%s1 + $0x4c] sm:$0xf]
      %v3582 = vld [vmem:[%s1 + $0x50] sm:$0xf]
      %v3583 = vld [vmem:[%s1 + $0x54] sm:$0xf]
      %v3584 = vld [vmem:[%s1 + $0x58] sm:$0xf]
      %v3585 = vld [vmem:[%s1 + $0x5c] sm:$0xf]
      %v3586 = vld [vmem:[%s1 + $0x60] sm:$0xf]
      %v3587 = vld [vmem:[%s1 + $0x64] sm:$0xf]
      %v3588 = vld [vmem:[%s1 + $0x68] sm:$0xf]
      %v3589 = vld [vmem:[%s1 + $0x6c] sm:$0xf]
      %v3590 = vld [vmem:[%s1 + $0x70] sm:$0xf]
      %v3591 = vld [vmem:[%s1 + $0x74] sm:$0xf]
      %v3592 = vld [vmem:[%s1 + $0x78] sm:$0xf]
      %v3593 = vld [vmem:[%s1 + $0x7c] sm:$0xf]
      %v3594 = vld [vmem:[%s1 + $0x80] sm:$0xf]
      %v3595 = vld [vmem:[%s1 + $0x84] sm:$0xf]
      %v3596 = vld [vmem:[%s1 + $0x88] sm:$0xf]
      %v3597 = vld [vmem:[%s1 + $0x8c] sm:$0xf]
      %v3598 = vld [vmem:[%s1 + $0x90] sm:$0xf]
      %v3599 = vld [vmem:[%s1 + $0x94] sm:$0xf]
      %v3600 = vld [vmem:[%s1 + $0x98] sm:$0xf]
      %v3601 = vld [vmem:[%s1 + $0x9c] sm:$0xf]
      %v3602 = vld [vmem:[%s1 + $0xa0] sm:$0xf]
      %v3603 = vld [vmem:[%s1 + $0xa4] sm:$0xf]
      %v3604 = vld [vmem:[%s1 + $0xa8] sm:$0xf]
      %v3605 = vld [vmem:[%s1 + $0xac] sm:$0xf]
      %v3606 = vld [vmem:[%s1 + $0xb0] sm:$0xf]
      %v3607 = vld [vmem:[%s1 + $0xb4] sm:$0xf]
      %v3608 = vld [vmem:[%s1 + $0xb8] sm:$0xf]
      %v3609 = vld [vmem:[%s1 + $0xbc] sm:$0xf]
      %v3610 = vld [vmem:[%s1 + $0xc0] sm:$0xf]
      %v3611 = vld [vmem:[%s1 + $0xc4] sm:$0xf]
      %v3612 = vld [vmem:[%s1 + $0xc8] sm:$0xf]
      %v3613 = vld [vmem:[%s1 + $0xcc] sm:$0xf]
      %v3614 = vld [vmem:[%s1 + $0xd0] sm:$0xf]
      %v3615 = vld [vmem:[%s1 + $0xd4] sm:$0xf]
      %v3616 = vld [vmem:[%s1 + $0xd8] sm:$0xf]
      %v3617 = vld [vmem:[%s1 + $0xdc] sm:$0xf]
      %v3618 = vld [vmem:[%s1 + $0xe0] sm:$0xf]
      %v3619 = vld [vmem:[%s1 + $0xe4] sm:$0xf]
      %v3620 = vld [vmem:[%s1 + $0xe8] sm:$0xf]
      %v3621 = vld [vmem:[%s1 + $0xec] sm:$0xf]
      %v3622 = vld [vmem:[%s1 + $0xf0] sm:$0xf]
      %v3623 = vld [vmem:[%s1 + $0xf4] sm:$0xf]
      %v3624 = vld [vmem:[%s1 + $0xf8] sm:$0xf]
      %v3625 = vld [vmem:[%s1 + $0xfc] sm:$0xf]
      %v3626 = vld [vmem:[%s1 + $0x100] sm:$0xf]
      %v3627 = vld [vmem:[%s1 + $0x104] sm:$0xf]
      %v3628 = vld [vmem:[%s1 + $0x108] sm:$0xf]
      %v3629 = vld [vmem:[%s1 + $0x10c] sm:$0xf]
      %v3630 = vld [vmem:[%s1 + $0x110] sm:$0xf]
      %v3631 = vld [vmem:[%s1 + $0x114] sm:$0xf]
      %v3632 = vld [vmem:[%s1 + $0x118] sm:$0xf]
      %v3633 = vld [vmem:[%s1 + $0x11c] sm:$0xf]
      %v3634 = vld [vmem:[%s1 + $0x120] sm:$0xf]
      %v3635 = vld [vmem:[%s1 + $0x124] sm:$0xf]
      %v3636 = vld [vmem:[%s1 + $0x128] sm:$0xf]
      %v3637 = vld [vmem:[%s1 + $0x12c] sm:$0xf]
      %v3638 = vld [vmem:[%s1 + $0x130] sm:$0xf]
      %v3639 = vld [vmem:[%s1 + $0x134] sm:$0xf]
      %v3640 = vld [vmem:[%s1 + $0x138] sm:$0xf]
      %v3641 = vld [vmem:[%s1 + $0x13c] sm:$0xf]
      %v3642 = vld [vmem:[%s1 + $0x140] sm:$0xf]
      %v3643 = vld [vmem:[%s1 + $0x144] sm:$0xf]
      %v3644 = vld [vmem:[%s1 + $0x148] sm:$0xf]
      %v3645 = vld [vmem:[%s1 + $0x14c] sm:$0xf]
      %v3646 = vld [vmem:[%s1 + $0x150] sm:$0xf]
      %v3647 = vld [vmem:[%s1 + $0x154] sm:$0xf]
      %v3648 = vld [vmem:[%s1 + $0x158] sm:$0xf]
      %v3649 = vld [vmem:[%s1 + $0x15c] sm:$0xf]
      %v3650 = vld [vmem:[%s1 + $0x160] sm:$0xf]
      %v3651 = vld [vmem:[%s1 + $0x164] sm:$0xf]
      %v3652 = vld [vmem:[%s1 + $0x168] sm:$0xf]
      %v3653 = vld [vmem:[%s1 + $0x16c] sm:$0xf]
      %v3654 = vld [vmem:[%s1 + $0x170] sm:$0xf]
      %v3655 = vld [vmem:[%s1 + $0x174] sm:$0xf]
      %v3656 = vld [vmem:[%s1 + $0x178] sm:$0xf]
      %v3657 = vld [vmem:[%s1 + $0x17c] sm:$0xf]
      %v3658 = vld [vmem:[%s1 + $0x180] sm:$0xf]
      %v3659 = vld [vmem:[%s1 + $0x184] sm:$0xf]
      %v3660 = vld [vmem:[%s1 + $0x188] sm:$0xf]
      %v3661 = vld [vmem:[%s1 + $0x18c] sm:$0xf]
      %v3662 = vld [vmem:[%s1 + $0x190] sm:$0xf]
      %v3663 = vld [vmem:[%s1 + $0x194] sm:$0xf]
      %v3664 = vld [vmem:[%s1 + $0x198] sm:$0xf]
      %v3665 = vld [vmem:[%s1 + $0x19c] sm:$0xf]
      %v3666 = vld [vmem:[%s1 + $0x1a0] sm:$0xf]
      %v3667 = vld [vmem:[%s1 + $0x1a4] sm:$0xf]
      %v3668 = vld [vmem:[%s1 + $0x1a8] sm:$0xf]
      %v3669 = vld [vmem:[%s1 + $0x1ac] sm:$0xf]
      %v3670 = vld [vmem:[%s1 + $0x1b0] sm:$0xf]
      %v3671 = vld [vmem:[%s1 + $0x1b4] sm:$0xf]
      %v3672 = vld [vmem:[%s1 + $0x1b8] sm:$0xf]
      %v3673 = vld [vmem:[%s1 + $0x1bc] sm:$0xf]
      %v3674 = vld [vmem:[%s1 + $0x1c0] sm:$0xf]
      %v3675 = vld [vmem:[%s1 + $0x1c4] sm:$0xf]
      %v3676 = vld [vmem:[%s1 + $0x1c8] sm:$0xf]
      %v3677 = vld [vmem:[%s1 + $0x1cc] sm:$0xf]
      %v3678 = vld [vmem:[%s1 + $0x1d0] sm:$0xf]
      %v3679 = vld [vmem:[%s1 + $0x1d4] sm:$0xf]
      %v3680 = vld [vmem:[%s1 + $0x1d8] sm:$0xf]
      %v3681 = vld [vmem:[%s1 + $0x1dc] sm:$0xf]
      %v3682 = vld [vmem:[%s1 + $0x1e0] sm:$0xf]
      %v3683 = vld [vmem:[%s1 + $0x1e4] sm:$0xf]
      %v3684 = vld [vmem:[%s1 + $0x1e8] sm:$0xf]
      %v3685 = vld [vmem:[%s1 + $0x1ec] sm:$0xf]
      %v3686 = vld [vmem:[%s1 + $0x1f0] sm:$0xf]
      %v3687 = vld [vmem:[%s1 + $0x1f4] sm:$0xf]
      %v3688 = vld [vmem:[%s1 + $0x1f8] sm:$0xf]
      %v3689 = vld [vmem:[%s1 + $0x1fc] sm:$0xf]
      %v3690 = vld [vmem:[%s1 + $0x200] sm:$0xf]
      %v3691 = vld [vmem:[%s1 + $0x204] sm:$0xf]
      %v3692 = vld [vmem:[%s1 + $0x208] sm:$0xf]
      %v3693 = vld [vmem:[%s1 + $0x20c] sm:$0xf]
      %v3694 = vld [vmem:[%s1 + $0x210] sm:$0xf]
      %v3695 = vld [vmem:[%s1 + $0x214] sm:$0xf]
      %v3696 = vld [vmem:[%s1 + $0x218] sm:$0xf]
      %v3697 = vld [vmem:[%s1 + $0x21c] sm:$0xf]
      %v3698 = vld [vmem:[%s1 + $0x220] sm:$0xf]
      %v3699 = vld [vmem:[%s1 + $0x224] sm:$0xf]
      %v3700 = vld [vmem:[%s1 + $0x228] sm:$0xf]
      %v3701 = vld [vmem:[%s1 + $0x22c] sm:$0xf]
      %v3702 = vld [vmem:[%s1 + $0x230] sm:$0xf]
      %v3703 = vld [vmem:[%s1 + $0x234] sm:$0xf]
      %v3704 = vld [vmem:[%s1 + $0x238] sm:$0xf]
      %v3705 = vld [vmem:[%s1 + $0x23c] sm:$0xf]
      %v3866 = vunpack.c.l.b16 %v3402
      %v3867 = vunpack.c.h.b16 %v3402
      %v3868 = vunpack.c.l.b16 %v3403
      %v3869 = vunpack.c.h.b16 %v3403
      %v3870 = vunpack.c.l.b16 %v3404
      %v3871 = vunpack.c.h.b16 %v3404
      %v3872 = vunpack.c.l.b16 %v3405
      %v3873 = vunpack.c.h.b16 %v3405
      %v3874 = vunpack.c.l.b16 %v3406
      %v3875 = vunpack.c.l.b16 %v3407
      %v3876 = vunpack.c.h.b16 %v3407
      %v3877 = vunpack.c.l.b16 %v3408
      %v3878 = vunpack.c.h.b16 %v3408
      %v3879 = vunpack.c.l.b16 %v3409
      %v3880 = vunpack.c.h.b16 %v3409
      %v3881 = vunpack.c.l.b16 %v3410
      %v3882 = vunpack.c.h.b16 %v3410
      %v3883 = vunpack.c.l.b16 %v3411
      %v3884 = vunpack.c.l.b16 %v3412
      %v3885 = vunpack.c.h.b16 %v3412
      %v3886 = vunpack.c.l.b16 %v3413
      %v3887 = vunpack.c.h.b16 %v3413
      %v3888 = vunpack.c.l.b16 %v3414
      %v3889 = vunpack.c.h.b16 %v3414
      %v3890 = vunpack.c.l.b16 %v3415
      %v3891 = vunpack.c.h.b16 %v3415
      %v3892 = vunpack.c.l.b16 %v3416
      %v3893 = vunpack.c.l.b16 %v3417
      %v3894 = vunpack.c.h.b16 %v3417
      %v3895 = vunpack.c.l.b16 %v3418
      %v3896 = vunpack.c.h.b16 %v3418
      %v3897 = vunpack.c.l.b16 %v3419
      %v3898 = vunpack.c.h.b16 %v3419
      %v3899 = vunpack.c.l.b16 %v3420
      %v3900 = vunpack.c.h.b16 %v3420
      %v3901 = vunpack.c.l.b16 %v3421
      %v3902 = vunpack.c.l.b16 %v3422
      %v3903 = vunpack.c.h.b16 %v3422
      %v3904 = vunpack.c.l.b16 %v3423
      %v3905 = vunpack.c.h.b16 %v3423
      %v3906 = vunpack.c.l.b16 %v3424
      %v3907 = vunpack.c.h.b16 %v3424
      %v3908 = vunpack.c.l.b16 %v3425
      %v3909 = vunpack.c.h.b16 %v3425
      %v3910 = vunpack.c.l.b16 %v3426
      %v3911 = vunpack.c.l.b16 %v3427
      %v3912 = vunpack.c.h.b16 %v3427
      %v3913 = vunpack.c.l.b16 %v3428
      %v3914 = vunpack.c.h.b16 %v3428
      %v3915 = vunpack.c.l.b16 %v3429
      %v3916 = vunpack.c.h.b16 %v3429
      %v3917 = vunpack.c.l.b16 %v3430
      %v3918 = vunpack.c.h.b16 %v3430
      %v3919 = vunpack.c.l.b16 %v3431
      %v3920 = vunpack.c.l.b16 %v3432
      %v3921 = vunpack.c.h.b16 %v3432
      %v3922 = vunpack.c.l.b16 %v3433
      %v3923 = vunpack.c.h.b16 %v3433
      %v3924 = vunpack.c.l.b16 %v3434
      %v3925 = vunpack.c.h.b16 %v3434
      %v3926 = vunpack.c.l.b16 %v3435
      %v3927 = vunpack.c.h.b16 %v3435
      %v3928 = vunpack.c.l.b16 %v3436
      %v3929 = vunpack.c.l.b16 %v3437
      %v3930 = vunpack.c.h.b16 %v3437
      %v3931 = vunpack.c.l.b16 %v3438
      %v3932 = vunpack.c.h.b16 %v3438
      %v3933 = vunpack.c.l.b16 %v3439
      %v3934 = vunpack.c.h.b16 %v3439
      %v3935 = vunpack.c.l.b16 %v3440
      %v3936 = vunpack.c.h.b16 %v3440
      %v3937 = vunpack.c.l.b16 %v3441
      %v3938 = vunpack.c.l.b16 %v3442
      %v3939 = vunpack.c.h.b16 %v3442
      %v3940 = vunpack.c.l.b16 %v3443
      %v3941 = vunpack.c.h.b16 %v3443
      %v3942 = vunpack.c.l.b16 %v3444
      %v3943 = vunpack.c.h.b16 %v3444
      %v3944 = vunpack.c.l.b16 %v3445
      %v3945 = vunpack.c.h.b16 %v3445
      %v3946 = vunpack.c.l.b16 %v3446
      %v3947 = vunpack.c.l.b16 %v3447
      %v3948 = vunpack.c.h.b16 %v3447
      %v3949 = vunpack.c.l.b16 %v3448
      %v3950 = vunpack.c.h.b16 %v3448
      %v3951 = vunpack.c.l.b16 %v3449
      %v3952 = vunpack.c.h.b16 %v3449
      %v3953 = vunpack.c.l.b16 %v3450
      %v3954 = vunpack.c.h.b16 %v3450
      %v3955 = vunpack.c.l.b16 %v3451
      %v3956 = vunpack.c.l.b16 %v3452
      %v3957 = vunpack.c.h.b16 %v3452
      %v3958 = vunpack.c.l.b16 %v3453
      %v3959 = vunpack.c.h.b16 %v3453
      %v3960 = vunpack.c.l.b16 %v3454
      %v3961 = vunpack.c.h.b16 %v3454
      %v3962 = vunpack.c.l.b16 %v3455
      %v3963 = vunpack.c.h.b16 %v3455
      %v3964 = vunpack.c.l.b16 %v3456
      %v3965 = vunpack.c.l.b16 %v3457
      %v3966 = vunpack.c.h.b16 %v3457
      %v3967 = vunpack.c.l.b16 %v3458
      %v3968 = vunpack.c.h.b16 %v3458
      %v3969 = vunpack.c.l.b16 %v3459
      %v3970 = vunpack.c.h.b16 %v3459
      %v3971 = vunpack.c.l.b16 %v3460
      %v3972 = vunpack.c.h.b16 %v3460
      %v3973 = vunpack.c.l.b16 %v3461
      %v3974 = vunpack.c.l.b16 %v3462
      %v3975 = vunpack.c.h.b16 %v3462
      %v3976 = vunpack.c.l.b16 %v3463
      %v3977 = vunpack.c.h.b16 %v3463
      %v3978 = vunpack.c.l.b16 %v3464
      %v3979 = vunpack.c.h.b16 %v3464
      %v3980 = vunpack.c.l.b16 %v3465
      %v3981 = vunpack.c.h.b16 %v3465
      %v3982 = vunpack.c.l.b16 %v3466
      %v3983 = vunpack.c.l.b16 %v3467
      %v3984 = vunpack.c.h.b16 %v3467
      %v3985 = vunpack.c.l.b16 %v3468
      %v3986 = vunpack.c.h.b16 %v3468
      %v3987 = vunpack.c.l.b16 %v3469
      %v3988 = vunpack.c.h.b16 %v3469
      %v3989 = vunpack.c.l.b16 %v3470
      %v3990 = vunpack.c.h.b16 %v3470
      %v3991 = vunpack.c.l.b16 %v3471
      %v3992 = vunpack.c.l.b16 %v3472
      %v3993 = vunpack.c.h.b16 %v3472
      %v3994 = vunpack.c.l.b16 %v3473
      %v3995 = vunpack.c.h.b16 %v3473
      %v3996 = vunpack.c.l.b16 %v3474
      %v3997 = vunpack.c.h.b16 %v3474
      %v3998 = vunpack.c.l.b16 %v3475
      %v3999 = vunpack.c.h.b16 %v3475
      %v4000 = vunpack.c.l.b16 %v3476
      %v4001 = vunpack.c.l.b16 %v3477
      %v4002 = vunpack.c.h.b16 %v3477
      %v4003 = vunpack.c.l.b16 %v3478
      %v4004 = vunpack.c.h.b16 %v3478
      %v4005 = vunpack.c.l.b16 %v3479
      %v4006 = vunpack.c.h.b16 %v3479
      %v4007 = vunpack.c.l.b16 %v3480
      %v4008 = vunpack.c.h.b16 %v3480
      %v4009 = vunpack.c.l.b16 %v3481
      %v4010 = vunpack.c.l.b16 %v3482
      %v4011 = vunpack.c.h.b16 %v3482
      %v4012 = vunpack.c.l.b16 %v3483
      %v4013 = vunpack.c.h.b16 %v3483
      %v4014 = vunpack.c.l.b16 %v3484
      %v4015 = vunpack.c.h.b16 %v3484
      %v4016 = vunpack.c.l.b16 %v3485
      %v4017 = vunpack.c.h.b16 %v3485
      %v4018 = vunpack.c.l.b16 %v3486
      %v4019 = vunpack.c.l.b16 %v3487
      %v4020 = vunpack.c.h.b16 %v3487
      %v4021 = vunpack.c.l.b16 %v3488
      %v4022 = vunpack.c.h.b16 %v3488
      %v4023 = vunpack.c.l.b16 %v3489
      %v4024 = vunpack.c.h.b16 %v3489
      %v4025 = vunpack.c.l.b16 %v3490
      %v4026 = vunpack.c.h.b16 %v3490
      %v4027 = vunpack.c.l.b16 %v3491
      %v4028 = vunpack.c.l.b16 %v3492
      %v4029 = vunpack.c.h.b16 %v3492
      %v4030 = vunpack.c.l.b16 %v3493
      %v4031 = vunpack.c.h.b16 %v3493
      %v4032 = vunpack.c.l.b16 %v3494
      %v4033 = vunpack.c.h.b16 %v3494
      %v4034 = vunpack.c.l.b16 %v3495
      %v4035 = vunpack.c.h.b16 %v3495
      %v4036 = vunpack.c.l.b16 %v3496
      %v4037 = vunpack.c.l.b16 %v3497
      %v4038 = vunpack.c.h.b16 %v3497
      %v4039 = vunpack.c.l.b16 %v3498
      %v4040 = vunpack.c.h.b16 %v3498
      %v4041 = vunpack.c.l.b16 %v3499
      %v4042 = vunpack.c.h.b16 %v3499
      %v4043 = vunpack.c.l.b16 %v3500
      %v4044 = vunpack.c.h.b16 %v3500
      %v4045 = vunpack.c.l.b16 %v3501
      %v4046 = vunpack.c.l.b16 %v3502
      %v4047 = vunpack.c.h.b16 %v3502
      %v4048 = vunpack.c.l.b16 %v3503
      %v4049 = vunpack.c.h.b16 %v3503
      %v4050 = vunpack.c.l.b16 %v3504
      %v4051 = vunpack.c.h.b16 %v3504
      %v4052 = vunpack.c.l.b16 %v3505
      %v4053 = vunpack.c.h.b16 %v3505
      %v4054 = vunpack.c.l.b16 %v3506
      %v4055 = vunpack.c.l.b16 %v3507
      %v4056 = vunpack.c.h.b16 %v3507
      %v4057 = vunpack.c.l.b16 %v3508
      %v4058 = vunpack.c.h.b16 %v3508
      %v4059 = vunpack.c.l.b16 %v3509
      %v4060 = vunpack.c.h.b16 %v3509
      %v4061 = vunpack.c.l.b16 %v3510
      %v4062 = vunpack.c.h.b16 %v3510
      %v4063 = vunpack.c.l.b16 %v3511
      %v4064 = vunpack.c.l.b16 %v3512
      %v4065 = vunpack.c.h.b16 %v3512
      %v4066 = vunpack.c.l.b16 %v3513
      %v4067 = vunpack.c.h.b16 %v3513
      %v4068 = vunpack.c.l.b16 %v3514
      %v4069 = vunpack.c.h.b16 %v3514
      %v4070 = vunpack.c.l.b16 %v3515
      %v4071 = vunpack.c.h.b16 %v3515
      %v4072 = vunpack.c.l.b16 %v3516
      %v4073 = vunpack.c.l.b16 %v3517
      %v4074 = vunpack.c.h.b16 %v3517
      %v4075 = vunpack.c.l.b16 %v3518
      %v4076 = vunpack.c.h.b16 %v3518
      %v4077 = vunpack.c.l.b16 %v3519
      %v4078 = vunpack.c.h.b16 %v3519
      %v4079 = vunpack.c.l.b16 %v3520
      %v4080 = vunpack.c.h.b16 %v3520
      %v4081 = vunpack.c.l.b16 %v3521
      %v4082 = vunpack.c.l.b16 %v3522
      %v4083 = vunpack.c.h.b16 %v3522
      %v4084 = vunpack.c.l.b16 %v3523
      %v4085 = vunpack.c.h.b16 %v3523
      %v4086 = vunpack.c.l.b16 %v3524
      %v4087 = vunpack.c.h.b16 %v3524
      %v4088 = vunpack.c.l.b16 %v3525
      %v4089 = vunpack.c.h.b16 %v3525
      %v4090 = vunpack.c.l.b16 %v3526
      %v4091 = vunpack.c.l.b16 %v3527
      %v4092 = vunpack.c.h.b16 %v3527
      %v4093 = vunpack.c.l.b16 %v3528
      %v4094 = vunpack.c.h.b16 %v3528
      %v4095 = vunpack.c.l.b16 %v3529
      %v4096 = vunpack.c.h.b16 %v3529
      %v4097 = vunpack.c.l.b16 %v3530
      %v4098 = vunpack.c.h.b16 %v3530
      %v4099 = vunpack.c.l.b16 %v3531
      %v4100 = vunpack.c.l.b16 %v3532
      %v4101 = vunpack.c.h.b16 %v3532
      %v4102 = vunpack.c.l.b16 %v3533
      %v4103 = vunpack.c.h.b16 %v3533
      %v4104 = vunpack.c.l.b16 %v3534
      %v4105 = vunpack.c.h.b16 %v3534
      %v4106 = vunpack.c.l.b16 %v3535
      %v4107 = vunpack.c.h.b16 %v3535
      %v4108 = vunpack.c.l.b16 %v3536
      %v4109 = vunpack.c.l.b16 %v3537
      %v4110 = vunpack.c.h.b16 %v3537
      %v4111 = vunpack.c.l.b16 %v3538
      %v4112 = vunpack.c.h.b16 %v3538
      %v4113 = vunpack.c.l.b16 %v3539
      %v4114 = vunpack.c.h.b16 %v3539
      %v4115 = vunpack.c.l.b16 %v3540
      %v4116 = vunpack.c.h.b16 %v3540
      %v4117 = vunpack.c.l.b16 %v3541
      %v4118 = vunpack.c.l.b16 %v3542
      %v4119 = vunpack.c.h.b16 %v3542
      %v4120 = vunpack.c.l.b16 %v3543
      %v4121 = vunpack.c.h.b16 %v3543
      %v4122 = vunpack.c.l.b16 %v3544
      %v4123 = vunpack.c.h.b16 %v3544
      %v4124 = vunpack.c.l.b16 %v3545
      %v4125 = vunpack.c.h.b16 %v3545
      %v4126 = vunpack.c.l.b16 %v3546
      %v4127 = vunpack.c.l.b16 %v3547
      %v4128 = vunpack.c.h.b16 %v3547
      %v4129 = vunpack.c.l.b16 %v3548
      %v4130 = vunpack.c.h.b16 %v3548
      %v4131 = vunpack.c.l.b16 %v3549
      %v4132 = vunpack.c.h.b16 %v3549
      %v4133 = vunpack.c.l.b16 %v3550
      %v4134 = vunpack.c.h.b16 %v3550
      %v4135 = vunpack.c.l.b16 %v3551
      %v4136 = vunpack.c.l.b16 %v3552
      %v4137 = vunpack.c.h.b16 %v3552
      %v4138 = vunpack.c.l.b16 %v3553
      %v4139 = vunpack.c.h.b16 %v3553
      %v4140 = vunpack.c.l.b16 %v3554
      %v4141 = vunpack.c.h.b16 %v3554
      %v4142 = vunpack.c.l.b16 %v3555
      %v4143 = vunpack.c.h.b16 %v3555
      %v4144 = vunpack.c.l.b16 %v3556
      %v4145 = vunpack.c.l.b16 %v3557
      %v4146 = vunpack.c.h.b16 %v3557
      %v4147 = vunpack.c.l.b16 %v3558
      %v4148 = vunpack.c.h.b16 %v3558
      %v4149 = vunpack.c.l.b16 %v3559
      %v4150 = vunpack.c.h.b16 %v3559
      %v4151 = vunpack.c.l.b16 %v3560
      %v4152 = vunpack.c.h.b16 %v3560
      %v4153 = vunpack.c.l.b16 %v3561
      %v4154 = vpack.c.b16 %v3875, %v3866
      %v4155 = vpack.c.b16 %v3876, %v3867
      %v4156 = vpack.c.b16 %v3877, %v3868
      %v4157 = vpack.c.b16 %v3878, %v3869
      %v4158 = vpack.c.b16 %v3879, %v3870
      %v4159 = vpack.c.b16 %v3880, %v3871
      %v4160 = vpack.c.b16 %v3881, %v3872
      %v4161 = vpack.c.b16 %v3882, %v3873
      %v4162 = vpack.c.b16 %v3883, %v3874
      %v4163 = vpack.c.b16 %v3893, %v3884
      %v4164 = vpack.c.b16 %v3894, %v3885
      %v4165 = vpack.c.b16 %v3895, %v3886
      %v4166 = vpack.c.b16 %v3896, %v3887
      %v4167 = vpack.c.b16 %v3897, %v3888
      %v4168 = vpack.c.b16 %v3898, %v3889
      %v4169 = vpack.c.b16 %v3899, %v3890
      %v4170 = vpack.c.b16 %v3900, %v3891
      %v4171 = vpack.c.b16 %v3901, %v3892
      %v4172 = vpack.c.b16 %v3911, %v3902
      %v4173 = vpack.c.b16 %v3912, %v3903
      %v4174 = vpack.c.b16 %v3913, %v3904
      %v4175 = vpack.c.b16 %v3914, %v3905
      %v4176 = vpack.c.b16 %v3915, %v3906
      %v4177 = vpack.c.b16 %v3916, %v3907
      %v4178 = vpack.c.b16 %v3917, %v3908
      %v4179 = vpack.c.b16 %v3918, %v3909
      %v4180 = vpack.c.b16 %v3919, %v3910
      %v4181 = vpack.c.b16 %v3929, %v3920
      %v4182 = vpack.c.b16 %v3930, %v3921
      %v4183 = vpack.c.b16 %v3931, %v3922
      %v4184 = vpack.c.b16 %v3932, %v3923
      %v4185 = vpack.c.b16 %v3933, %v3924
      %v4186 = vpack.c.b16 %v3934, %v3925
      %v4187 = vpack.c.b16 %v3935, %v3926
      %v4188 = vpack.c.b16 %v3936, %v3927
      %v4189 = vpack.c.b16 %v3937, %v3928
      %v4190 = vpack.c.b16 %v3947, %v3938
      %v4191 = vpack.c.b16 %v3948, %v3939
      %v4192 = vpack.c.b16 %v3949, %v3940
      %v4193 = vpack.c.b16 %v3950, %v3941
      %v4194 = vpack.c.b16 %v3951, %v3942
      %v4195 = vpack.c.b16 %v3952, %v3943
      %v4196 = vpack.c.b16 %v3953, %v3944
      %v4197 = vpack.c.b16 %v3954, %v3945
      %v4198 = vpack.c.b16 %v3955, %v3946
      %v4199 = vpack.c.b16 %v3965, %v3956
      %v4200 = vpack.c.b16 %v3966, %v3957
      %v4201 = vpack.c.b16 %v3967, %v3958
      %v4202 = vpack.c.b16 %v3968, %v3959
      %v4203 = vpack.c.b16 %v3969, %v3960
      %v4204 = vpack.c.b16 %v3970, %v3961
      %v4205 = vpack.c.b16 %v3971, %v3962
      %v4206 = vpack.c.b16 %v3972, %v3963
      %v4207 = vpack.c.b16 %v3973, %v3964
      %v4208 = vpack.c.b16 %v3983, %v3974
      %v4209 = vpack.c.b16 %v3984, %v3975
      %v4210 = vpack.c.b16 %v3985, %v3976
      %v4211 = vpack.c.b16 %v3986, %v3977
      %v4212 = vpack.c.b16 %v3987, %v3978
      %v4213 = vpack.c.b16 %v3988, %v3979
      %v4214 = vpack.c.b16 %v3989, %v3980
      %v4215 = vpack.c.b16 %v3990, %v3981
      %v4216 = vpack.c.b16 %v3991, %v3982
      %v4217 = vpack.c.b16 %v4001, %v3992
      %v4218 = vpack.c.b16 %v4002, %v3993
      %v4219 = vpack.c.b16 %v4003, %v3994
      %v4220 = vpack.c.b16 %v4004, %v3995
      %v4221 = vpack.c.b16 %v4005, %v3996
      %v4222 = vpack.c.b16 %v4006, %v3997
      %v4223 = vpack.c.b16 %v4007, %v3998
      %v4224 = vpack.c.b16 %v4008, %v3999
      %v4225 = vpack.c.b16 %v4009, %v4000
      %v4226 = vpack.c.b16 %v4019, %v4010
      %v4227 = vpack.c.b16 %v4020, %v4011
      %v4228 = vpack.c.b16 %v4021, %v4012
      %v4229 = vpack.c.b16 %v4022, %v4013
      %v4230 = vpack.c.b16 %v4023, %v4014
      %v4231 = vpack.c.b16 %v4024, %v4015
      %v4232 = vpack.c.b16 %v4025, %v4016
      %v4233 = vpack.c.b16 %v4026, %v4017
      %v4234 = vpack.c.b16 %v4027, %v4018
      %v4235 = vpack.c.b16 %v4037, %v4028
      %v4236 = vpack.c.b16 %v4038, %v4029
      %v4237 = vpack.c.b16 %v4039, %v4030
      %v4238 = vpack.c.b16 %v4040, %v4031
      %v4239 = vpack.c.b16 %v4041, %v4032
      %v4240 = vpack.c.b16 %v4042, %v4033
      %v4241 = vpack.c.b16 %v4043, %v4034
      %v4242 = vpack.c.b16 %v4044, %v4035
      %v4243 = vpack.c.b16 %v4045, %v4036
      %v4244 = vpack.c.b16 %v4055, %v4046
      %v4245 = vpack.c.b16 %v4056, %v4047
      %v4246 = vpack.c.b16 %v4057, %v4048
      %v4247 = vpack.c.b16 %v4058, %v4049
      %v4248 = vpack.c.b16 %v4059, %v4050
      %v4249 = vpack.c.b16 %v4060, %v4051
      %v4250 = vpack.c.b16 %v4061, %v4052
      %v4251 = vpack.c.b16 %v4062, %v4053
      %v4252 = vpack.c.b16 %v4063, %v4054
      %v4253 = vpack.c.b16 %v4073, %v4064
      %v4254 = vpack.c.b16 %v4074, %v4065
      %v4255 = vpack.c.b16 %v4075, %v4066
      %v4256 = vpack.c.b16 %v4076, %v4067
      %v4257 = vpack.c.b16 %v4077, %v4068
      %v4258 = vpack.c.b16 %v4078, %v4069
      %v4259 = vpack.c.b16 %v4079, %v4070
      %v4260 = vpack.c.b16 %v4080, %v4071
      %v4261 = vpack.c.b16 %v4081, %v4072
      %v4262 = vpack.c.b16 %v4091, %v4082
      %v4263 = vpack.c.b16 %v4092, %v4083
      %v4264 = vpack.c.b16 %v4093, %v4084
      %v4265 = vpack.c.b16 %v4094, %v4085
      %v4266 = vpack.c.b16 %v4095, %v4086
      %v4267 = vpack.c.b16 %v4096, %v4087
      %v4268 = vpack.c.b16 %v4097, %v4088
      %v4269 = vpack.c.b16 %v4098, %v4089
      %v4270 = vpack.c.b16 %v4099, %v4090
      %v4271 = vpack.c.b16 %v4109, %v4100
      %v4272 = vpack.c.b16 %v4110, %v4101
      %v4273 = vpack.c.b16 %v4111, %v4102
      %v4274 = vpack.c.b16 %v4112, %v4103
      %v4275 = vpack.c.b16 %v4113, %v4104
      %v4276 = vpack.c.b16 %v4114, %v4105
      %v4277 = vpack.c.b16 %v4115, %v4106
      %v4278 = vpack.c.b16 %v4116, %v4107
      %v4279 = vpack.c.b16 %v4117, %v4108
      %v4280 = vpack.c.b16 %v4127, %v4118
      %v4281 = vpack.c.b16 %v4128, %v4119
      %v4282 = vpack.c.b16 %v4129, %v4120
      %v4283 = vpack.c.b16 %v4130, %v4121
      %v4284 = vpack.c.b16 %v4131, %v4122
      %v4285 = vpack.c.b16 %v4132, %v4123
      %v4286 = vpack.c.b16 %v4133, %v4124
      %v4287 = vpack.c.b16 %v4134, %v4125
      %v4288 = vpack.c.b16 %v4135, %v4126
      %v4289 = vpack.c.b16 %v4145, %v4136
      %v4290 = vpack.c.b16 %v4146, %v4137
      %v4291 = vpack.c.b16 %v4147, %v4138
      %v4292 = vpack.c.b16 %v4148, %v4139
      %v4293 = vpack.c.b16 %v4149, %v4140
      %v4294 = vpack.c.b16 %v4150, %v4141
      %v4295 = vpack.c.b16 %v4151, %v4142
      %v4296 = vpack.c.b16 %v4152, %v4143
      %v4297 = vpack.c.b16 %v4153, %v4144
      %v4586 = vunpack.c.l.b16 %v3562
      %v4587 = vunpack.c.l.b16 %v3563
      %v4588 = vunpack.c.l.b16 %v3564
      %v4589 = vunpack.c.l.b16 %v3565
      %v4590 = vunpack.c.l.b16 %v3566
      %v4591 = vunpack.c.l.b16 %v3567
      %v4592 = vunpack.c.l.b16 %v3568
      %v4593 = vunpack.c.l.b16 %v3569
      %v4594 = vunpack.c.l.b16 %v3570
      %v4595 = vunpack.c.l.b16 %v3571
      %v4596 = vunpack.c.l.b16 %v3572
      %v4597 = vunpack.c.l.b16 %v3573
      %v4598 = vunpack.c.l.b16 %v3574
      %v4599 = vunpack.c.l.b16 %v3575
      %v4600 = vunpack.c.l.b16 %v3576
      %v4601 = vunpack.c.l.b16 %v3577
      %v4602 = vunpack.c.l.b16 %v3578
      %v4603 = vunpack.c.l.b16 %v3579
      %v4604 = vunpack.c.l.b16 %v3580
      %v4605 = vunpack.c.l.b16 %v3581
      %v4606 = vunpack.c.l.b16 %v3582
      %v4607 = vunpack.c.l.b16 %v3583
      %v4608 = vunpack.c.l.b16 %v3584
      %v4609 = vunpack.c.l.b16 %v3585
      %v4610 = vunpack.c.l.b16 %v3586
      %v4611 = vunpack.c.l.b16 %v3587
      %v4612 = vunpack.c.l.b16 %v3588
      %v4613 = vunpack.c.l.b16 %v3589
      %v4614 = vunpack.c.l.b16 %v3590
      %v4615 = vunpack.c.l.b16 %v3591
      %v4616 = vunpack.c.l.b16 %v3592
      %v4617 = vunpack.c.l.b16 %v3593
      %v4618 = vunpack.c.l.b16 %v3594
      %v4619 = vunpack.c.l.b16 %v3595
      %v4620 = vunpack.c.l.b16 %v3596
      %v4621 = vunpack.c.l.b16 %v3597
      %v4622 = vunpack.c.l.b16 %v3598
      %v4623 = vunpack.c.l.b16 %v3599
      %v4624 = vunpack.c.l.b16 %v3600
      %v4625 = vunpack.c.l.b16 %v3601
      %v4626 = vunpack.c.l.b16 %v3602
      %v4627 = vunpack.c.l.b16 %v3603
      %v4628 = vunpack.c.l.b16 %v3604
      %v4629 = vunpack.c.l.b16 %v3605
      %v4630 = vunpack.c.l.b16 %v3606
      %v4631 = vunpack.c.l.b16 %v3607
      %v4632 = vunpack.c.l.b16 %v3608
      %v4633 = vunpack.c.l.b16 %v3609
      %v4634 = vunpack.c.l.b16 %v3610
      %v4635 = vunpack.c.l.b16 %v3611
      %v4636 = vunpack.c.l.b16 %v3612
      %v4637 = vunpack.c.l.b16 %v3613
      %v4638 = vunpack.c.l.b16 %v3614
      %v4639 = vunpack.c.l.b16 %v3615
      %v4640 = vunpack.c.l.b16 %v3616
      %v4641 = vunpack.c.l.b16 %v3617
      %v4642 = vunpack.c.l.b16 %v3618
      %v4643 = vunpack.c.l.b16 %v3619
      %v4644 = vunpack.c.l.b16 %v3620
      %v4645 = vunpack.c.l.b16 %v3621
      %v4646 = vunpack.c.l.b16 %v3622
      %v4647 = vunpack.c.l.b16 %v3623
      %v4648 = vunpack.c.l.b16 %v3624
      %v4649 = vunpack.c.l.b16 %v3625
      %v4650 = vunpack.c.l.b16 %v3626
      %v4651 = vunpack.c.l.b16 %v3627
      %v4652 = vunpack.c.l.b16 %v3628
      %v4653 = vunpack.c.l.b16 %v3629
      %v4654 = vunpack.c.l.b16 %v3630
      %v4655 = vunpack.c.l.b16 %v3631
      %v4656 = vunpack.c.l.b16 %v3632
      %v4657 = vunpack.c.l.b16 %v3633
      %v4658 = vunpack.c.l.b16 %v3634
      %v4659 = vunpack.c.l.b16 %v3635
      %v4660 = vunpack.c.l.b16 %v3636
      %v4661 = vunpack.c.l.b16 %v3637
      %v4662 = vunpack.c.l.b16 %v3638
      %v4663 = vunpack.c.l.b16 %v3639
      %v4664 = vunpack.c.l.b16 %v3640
      %v4665 = vunpack.c.l.b16 %v3641
      %v4666 = vunpack.c.l.b16 %v3642
      %v4667 = vunpack.c.l.b16 %v3643
      %v4668 = vunpack.c.l.b16 %v3644
      %v4669 = vunpack.c.l.b16 %v3645
      %v4670 = vunpack.c.l.b16 %v3646
      %v4671 = vunpack.c.l.b16 %v3647
      %v4672 = vunpack.c.l.b16 %v3648
      %v4673 = vunpack.c.l.b16 %v3649
      %v4674 = vunpack.c.l.b16 %v3650
      %v4675 = vunpack.c.l.b16 %v3651
      %v4676 = vunpack.c.l.b16 %v3652
      %v4677 = vunpack.c.l.b16 %v3653
      %v4678 = vunpack.c.l.b16 %v3654
      %v4679 = vunpack.c.l.b16 %v3655
      %v4680 = vunpack.c.l.b16 %v3656
      %v4681 = vunpack.c.l.b16 %v3657
      %v4682 = vunpack.c.l.b16 %v3658
      %v4683 = vunpack.c.l.b16 %v3659
      %v4684 = vunpack.c.l.b16 %v3660
      %v4685 = vunpack.c.l.b16 %v3661
      %v4686 = vunpack.c.l.b16 %v3662
      %v4687 = vunpack.c.l.b16 %v3663
      %v4688 = vunpack.c.l.b16 %v3664
      %v4689 = vunpack.c.l.b16 %v3665
      %v4690 = vunpack.c.l.b16 %v3666
      %v4691 = vunpack.c.l.b16 %v3667
      %v4692 = vunpack.c.l.b16 %v3668
      %v4693 = vunpack.c.l.b16 %v3669
      %v4694 = vunpack.c.l.b16 %v3670
      %v4695 = vunpack.c.l.b16 %v3671
      %v4696 = vunpack.c.l.b16 %v3672
      %v4697 = vunpack.c.l.b16 %v3673
      %v4698 = vunpack.c.l.b16 %v3674
      %v4699 = vunpack.c.l.b16 %v3675
      %v4700 = vunpack.c.l.b16 %v3676
      %v4701 = vunpack.c.l.b16 %v3677
      %v4702 = vunpack.c.l.b16 %v3678
      %v4703 = vunpack.c.l.b16 %v3679
      %v4704 = vunpack.c.l.b16 %v3680
      %v4705 = vunpack.c.l.b16 %v3681
      %v4706 = vunpack.c.l.b16 %v3682
      %v4707 = vunpack.c.l.b16 %v3683
      %v4708 = vunpack.c.l.b16 %v3684
      %v4709 = vunpack.c.l.b16 %v3685
      %v4710 = vunpack.c.l.b16 %v3686
      %v4711 = vunpack.c.l.b16 %v3687
      %v4712 = vunpack.c.l.b16 %v3688
      %v4713 = vunpack.c.l.b16 %v3689
      %v4714 = vunpack.c.l.b16 %v3690
      %v4715 = vunpack.c.l.b16 %v3691
      %v4716 = vunpack.c.l.b16 %v3692
      %v4717 = vunpack.c.l.b16 %v3693
      %v4718 = vunpack.c.l.b16 %v3694
      %v4719 = vunpack.c.l.b16 %v3695
      %v4720 = vunpack.c.l.b16 %v3696
      %v4721 = vunpack.c.l.b16 %v3697
      %v4722 = vunpack.c.l.b16 %v3698
      %v4723 = vunpack.c.l.b16 %v3699
      %v4724 = vunpack.c.l.b16 %v3700
      %v4725 = vunpack.c.l.b16 %v3701
      %v4726 = vunpack.c.l.b16 %v3702
      %v4727 = vunpack.c.l.b16 %v3703
      %v4728 = vunpack.c.l.b16 %v3704
      %v4729 = vunpack.c.l.b16 %v3705
      %v4730 = vpack.c.b16 %v4587, %v4586
      %v4731 = vpack.c.b16 %v4589, %v4588
      %v4732 = vpack.c.b16 %v4591, %v4590
      %v4733 = vpack.c.b16 %v4593, %v4592
      %v4734 = vpack.c.b16 %v4595, %v4594
      %v4735 = vpack.c.b16 %v4597, %v4596
      %v4736 = vpack.c.b16 %v4599, %v4598
      %v4737 = vpack.c.b16 %v4601, %v4600
      %v4738 = vpack.c.b16 %v4603, %v4602
      %v4739 = vpack.c.b16 %v4605, %v4604
      %v4740 = vpack.c.b16 %v4607, %v4606
      %v4741 = vpack.c.b16 %v4609, %v4608
      %v4742 = vpack.c.b16 %v4611, %v4610
      %v4743 = vpack.c.b16 %v4613, %v4612
      %v4744 = vpack.c.b16 %v4615, %v4614
      %v4745 = vpack.c.b16 %v4617, %v4616
      %v4746 = vpack.c.b16 %v4619, %v4618
      %v4747 = vpack.c.b16 %v4621, %v4620
      %v4748 = vpack.c.b16 %v4623, %v4622
      %v4749 = vpack.c.b16 %v4625, %v4624
      %v4750 = vpack.c.b16 %v4627, %v4626
      %v4751 = vpack.c.b16 %v4629, %v4628
      %v4752 = vpack.c.b16 %v4631, %v4630
      %v4753 = vpack.c.b16 %v4633, %v4632
      %v4754 = vpack.c.b16 %v4635, %v4634
      %v4755 = vpack.c.b16 %v4637, %v4636
      %v4756 = vpack.c.b16 %v4639, %v4638
      %v4757 = vpack.c.b16 %v4641, %v4640
      %v4758 = vpack.c.b16 %v4643, %v4642
      %v4759 = vpack.c.b16 %v4645, %v4644
      %v4760 = vpack.c.b16 %v4647, %v4646
      %v4761 = vpack.c.b16 %v4649, %v4648
      %v4762 = vpack.c.b16 %v4651, %v4650
      %v4763 = vpack.c.b16 %v4653, %v4652
      %v4764 = vpack.c.b16 %v4655, %v4654
      %v4765 = vpack.c.b16 %v4657, %v4656
      %v4766 = vpack.c.b16 %v4659, %v4658
      %v4767 = vpack.c.b16 %v4661, %v4660
      %v4768 = vpack.c.b16 %v4663, %v4662
      %v4769 = vpack.c.b16 %v4665, %v4664
      %v4770 = vpack.c.b16 %v4667, %v4666
      %v4771 = vpack.c.b16 %v4669, %v4668
      %v4772 = vpack.c.b16 %v4671, %v4670
      %v4773 = vpack.c.b16 %v4673, %v4672
      %v4774 = vpack.c.b16 %v4675, %v4674
      %v4775 = vpack.c.b16 %v4677, %v4676
      %v4776 = vpack.c.b16 %v4679, %v4678
      %v4777 = vpack.c.b16 %v4681, %v4680
      %v4778 = vpack.c.b16 %v4683, %v4682
      %v4779 = vpack.c.b16 %v4685, %v4684
      %v4780 = vpack.c.b16 %v4687, %v4686
      %v4781 = vpack.c.b16 %v4689, %v4688
      %v4782 = vpack.c.b16 %v4691, %v4690
      %v4783 = vpack.c.b16 %v4693, %v4692
      %v4784 = vpack.c.b16 %v4695, %v4694
      %v4785 = vpack.c.b16 %v4697, %v4696
      %v4786 = vpack.c.b16 %v4699, %v4698
      %v4787 = vpack.c.b16 %v4701, %v4700
      %v4788 = vpack.c.b16 %v4703, %v4702
      %v4789 = vpack.c.b16 %v4705, %v4704
      %v4790 = vpack.c.b16 %v4707, %v4706
      %v4791 = vpack.c.b16 %v4709, %v4708
      %v4792 = vpack.c.b16 %v4711, %v4710
      %v4793 = vpack.c.b16 %v4713, %v4712
      %v4794 = vpack.c.b16 %v4715, %v4714
      %v4795 = vpack.c.b16 %v4717, %v4716
      %v4796 = vpack.c.b16 %v4719, %v4718
      %v4797 = vpack.c.b16 %v4721, %v4720
      %v4798 = vpack.c.b16 %v4723, %v4722
      %v4799 = vpack.c.b16 %v4725, %v4724
      %v4800 = vpack.c.b16 %v4727, %v4726
      %v4801 = vpack.c.b16 %v4729, %v4728
      %4874 = vmatprep.subr.bf16.mxu0 0
      %4875 = vmatpush1.bf16.msra.mxu0 %v4737
      %4876 = vmatprep.subr.bf16.mxu0 0
      %4877 = vmatpush1.bf16.msra.mxu0 %v4736
      %4878 = vmatprep.subr.bf16.mxu0 0
      %4879 = vmatpush1.bf16.msra.mxu0 %v4735
      %4880 = vmatprep.subr.bf16.mxu0 0
      %4881 = vmatpush1.bf16.msra.mxu0 %v4734
      %4882 = vmatprep.subr.bf16.mxu0 0
      %4883 = vmatpush1.bf16.msra.mxu0 %v4733
      %4884 = vmatprep.subr.bf16.mxu0 0
      %4885 = vmatpush1.bf16.msra.mxu0 %v4732
      %4886 = vmatprep.subr.bf16.mxu0 0
      %4887 = vmatpush1.bf16.msra.mxu0 %v4731
      %4888 = vmatprep.subr.bf16.mxu0 0
      %4889 = vmatpush1.bf16.msra.mxu0 %v4730
      %4890 = vmatprep.subr.bf16.mxu0 0
      %4891 = vmatpush2.bf16.msra.mxu0 %v4745
      %4892 = vmatprep.subr.bf16.mxu0 0
      %4893 = vmatpush2.bf16.msra.mxu0 %v4744
      %4894 = vmatprep.subr.bf16.mxu0 0
      %4895 = vmatpush2.bf16.msra.mxu0 %v4743
      %4896 = vmatprep.subr.bf16.mxu0 0
      %4897 = vmatpush2.bf16.msra.mxu0 %v4742
      %4898 = vmatprep.subr.bf16.mxu0 0
      %4899 = vmatpush2.bf16.msra.mxu0 %v4741
      %4900 = vmatprep.subr.bf16.mxu0 0
      %4901 = vmatpush2.bf16.msra.mxu0 %v4740
      %4902 = vmatprep.subr.bf16.mxu0 0
      %4903 = vmatpush2.bf16.msra.mxu0 %v4739
      %4904 = vmatprep.subr.bf16.mxu0 0
      %4905 = vmatpush2.bf16.msra.mxu0 %v4738
      %4906 = vmatprep.mubr.bf16.mxu0 %v4155
      %4907 = vmatmul.mubr.bf16.gmra.mxu0 %v4154
      %v4908 = vpop.f32.mrf.mxu0
      %v4909 = vadd.f32 0.0, %v4908
      %v4910 = vpop.f32.mrf.mxu0
      %v4911 = vpop.f32.mrf.mxu0
      %v4912 = vadd.f32 0.0, %v4911
      %v4913 = vpop.f32.mrf.mxu0
      %4914 = vmatprep.mubr.bf16.mxu0 %v4164
      %4915 = vmatmul.mubr.bf16.gmra.mxu0 %v4163
      %v4916 = vpop.f32.mrf.mxu0
      %v4917 = vadd.f32 0.0, %v4916
      %v4918 = vpop.f32.mrf.mxu0
      %v4919 = vpop.f32.mrf.mxu0
      %v4920 = vadd.f32 0.0, %v4919
      %v4921 = vpop.f32.mrf.mxu0
      %4922 = vmatprep.mubr.bf16.mxu0 %v4173
      %4923 = vmatmul.mubr.bf16.gmra.mxu0 %v4172
      %v4924 = vpop.f32.mrf.mxu0
      %v4925 = vadd.f32 0.0, %v4924
      %v4926 = vpop.f32.mrf.mxu0
      %v4927 = vpop.f32.mrf.mxu0
      %v4928 = vadd.f32 0.0, %v4927
      %v4929 = vpop.f32.mrf.mxu0
      %4930 = vmatprep.mubr.bf16.mxu0 %v4182
      %4931 = vmatmul.mubr.bf16.gmra.mxu0 %v4181
      %v4932 = vpop.f32.mrf.mxu0
      %v4933 = vadd.f32 0.0, %v4932
      %v4934 = vpop.f32.mrf.mxu0
      %v4935 = vpop.f32.mrf.mxu0
      %v4936 = vadd.f32 0.0, %v4935
      %v4937 = vpop.f32.mrf.mxu0
      %4938 = vmatprep.mubr.bf16.mxu0 %v4191
      %4939 = vmatmul.mubr.bf16.gmra.mxu0 %v4190
      %v4940 = vpop.f32.mrf.mxu0
      %v4941 = vadd.f32 0.0, %v4940
      %v4942 = vpop.f32.mrf.mxu0
      %v4943 = vpop.f32.mrf.mxu0
      %v4944 = vadd.f32 0.0, %v4943
      %v4945 = vpop.f32.mrf.mxu0
      %4946 = vmatprep.mubr.bf16.mxu0 %v4200
      %4947 = vmatmul.mubr.bf16.gmra.mxu0 %v4199
      %v4948 = vpop.f32.mrf.mxu0
      %v4949 = vadd.f32 0.0, %v4948
      %v4950 = vpop.f32.mrf.mxu0
      %v4951 = vpop.f32.mrf.mxu0
      %v4952 = vadd.f32 0.0, %v4951
      %v4953 = vpop.f32.mrf.mxu0
      %4954 = vmatprep.mubr.bf16.mxu0 %v4209
      %4955 = vmatmul.mubr.bf16.gmra.mxu0 %v4208
      %v4956 = vpop.f32.mrf.mxu0
      %v4957 = vadd.f32 0.0, %v4956
      %v4958 = vpop.f32.mrf.mxu0
      %v4959 = vpop.f32.mrf.mxu0
      %v4960 = vadd.f32 0.0, %v4959
      %v4961 = vpop.f32.mrf.mxu0
      %4962 = vmatprep.mubr.bf16.mxu0 %v4218
      %4963 = vmatmul.mubr.bf16.gmra.mxu0 %v4217
      %v4964 = vpop.f32.mrf.mxu0
      %v4965 = vadd.f32 0.0, %v4964
      %v4966 = vpop.f32.mrf.mxu0
      %v4967 = vpop.f32.mrf.mxu0
      %v4968 = vadd.f32 0.0, %v4967
      %v4969 = vpop.f32.mrf.mxu0
      %4970 = vmatprep.mubr.bf16.mxu0 %v4227
      %4971 = vmatmul.mubr.bf16.gmra.mxu0 %v4226
      %v4972 = vpop.f32.mrf.mxu0
      %v4973 = vadd.f32 0.0, %v4972
      %v4974 = vpop.f32.mrf.mxu0
      %v4975 = vpop.f32.mrf.mxu0
      %v4976 = vadd.f32 0.0, %v4975
      %v4977 = vpop.f32.mrf.mxu0
      %4978 = vmatprep.mubr.bf16.mxu0 %v4236
      %4979 = vmatmul.mubr.bf16.gmra.mxu0 %v4235
      %v4980 = vpop.f32.mrf.mxu0
      %v4981 = vadd.f32 0.0, %v4980
      %v4982 = vpop.f32.mrf.mxu0
      %v4983 = vpop.f32.mrf.mxu0
      %v4984 = vadd.f32 0.0, %v4983
      %v4985 = vpop.f32.mrf.mxu0
      %4986 = vmatprep.mubr.bf16.mxu0 %v4245
      %4987 = vmatmul.mubr.bf16.gmra.mxu0 %v4244
      %v4988 = vpop.f32.mrf.mxu0
      %v4989 = vadd.f32 0.0, %v4988
      %v4990 = vpop.f32.mrf.mxu0
      %v4991 = vpop.f32.mrf.mxu0
      %v4992 = vadd.f32 0.0, %v4991
      %v4993 = vpop.f32.mrf.mxu0
      %4994 = vmatprep.mubr.bf16.mxu0 %v4254
      %4995 = vmatmul.mubr.bf16.gmra.mxu0 %v4253
      %v4996 = vpop.f32.mrf.mxu0
      %v4997 = vadd.f32 0.0, %v4996
      %v4998 = vpop.f32.mrf.mxu0
      %v4999 = vpop.f32.mrf.mxu0
      %v5000 = vadd.f32 0.0, %v4999
      %v5001 = vpop.f32.mrf.mxu0
      %5002 = vmatprep.mubr.bf16.mxu0 %v4263
      %5003 = vmatmul.mubr.bf16.gmra.mxu0 %v4262
      %v5004 = vpop.f32.mrf.mxu0
      %v5005 = vadd.f32 0.0, %v5004
      %v5006 = vpop.f32.mrf.mxu0
      %v5007 = vpop.f32.mrf.mxu0
      %v5008 = vadd.f32 0.0, %v5007
      %v5009 = vpop.f32.mrf.mxu0
      %5010 = vmatprep.mubr.bf16.mxu0 %v4272
      %5011 = vmatmul.mubr.bf16.gmra.mxu0 %v4271
      %v5012 = vpop.f32.mrf.mxu0
      %v5013 = vadd.f32 0.0, %v5012
      %v5014 = vpop.f32.mrf.mxu0
      %v5015 = vpop.f32.mrf.mxu0
      %v5016 = vadd.f32 0.0, %v5015
      %v5017 = vpop.f32.mrf.mxu0
      %5018 = vmatprep.mubr.bf16.mxu0 %v4281
      %5019 = vmatmul.mubr.bf16.gmra.mxu0 %v4280
      %v5020 = vpop.f32.mrf.mxu0
      %v5021 = vadd.f32 0.0, %v5020
      %v5022 = vpop.f32.mrf.mxu0
      %v5023 = vpop.f32.mrf.mxu0
      %v5024 = vadd.f32 0.0, %v5023
      %v5025 = vpop.f32.mrf.mxu0
      %5026 = vmatprep.mubr.bf16.mxu0 %v4290
      %5027 = vmatmul.mubr.bf16.gmra.mxu0 %v4289
      %v5028 = vpop.f32.mrf.mxu0
      %v5029 = vadd.f32 0.0, %v5028
      %v5030 = vpop.f32.mrf.mxu0
      %v5031 = vpop.f32.mrf.mxu0
      %v5032 = vadd.f32 0.0, %v5031
      %v5033 = vpop.f32.mrf.mxu0
      %5034 = vdwg.mxu0
      %5035 = vmatprep.subr.bf16.mxu0 0
      %5036 = vmatpush1.bf16.msra.mxu0 %v4753
      %5037 = vmatprep.subr.bf16.mxu0 0
      %5038 = vmatpush1.bf16.msra.mxu0 %v4752
      %5039 = vmatprep.subr.bf16.mxu0 0
      %5040 = vmatpush1.bf16.msra.mxu0 %v4751
      %5041 = vmatprep.subr.bf16.mxu0 0
      %5042 = vmatpush1.bf16.msra.mxu0 %v4750
      %5043 = vmatprep.subr.bf16.mxu0 0
      %5044 = vmatpush1.bf16.msra.mxu0 %v4749
      %5045 = vmatprep.subr.bf16.mxu0 0
      %5046 = vmatpush1.bf16.msra.mxu0 %v4748
      %5047 = vmatprep.subr.bf16.mxu0 0
      %5048 = vmatpush1.bf16.msra.mxu0 %v4747
      %5049 = vmatprep.subr.bf16.mxu0 0
      %5050 = vmatpush1.bf16.msra.mxu0 %v4746
      %5051 = vmatprep.subr.bf16.mxu0 0
      %5052 = vmatpush2.bf16.msra.mxu0 %v4761
      %5053 = vmatprep.subr.bf16.mxu0 0
      %5054 = vmatpush2.bf16.msra.mxu0 %v4760
      %5055 = vmatprep.subr.bf16.mxu0 0
      %5056 = vmatpush2.bf16.msra.mxu0 %v4759
      %5057 = vmatprep.subr.bf16.mxu0 0
      %5058 = vmatpush2.bf16.msra.mxu0 %v4758
      %5059 = vmatprep.subr.bf16.mxu0 0
      %5060 = vmatpush2.bf16.msra.mxu0 %v4757
      %5061 = vmatprep.subr.bf16.mxu0 0
      %5062 = vmatpush2.bf16.msra.mxu0 %v4756
      %5063 = vmatprep.subr.bf16.mxu0 0
      %5064 = vmatpush2.bf16.msra.mxu0 %v4755
      %5065 = vmatprep.subr.bf16.mxu0 0
      %5066 = vmatpush2.bf16.msra.mxu0 %v4754
      %5067 = vmatprep.mubr.bf16.mxu0 %v4157
      %5068 = vmatmul.mubr.bf16.gmra.mxu0 %v4156
      %v5069 = vpop.f32.mrf.mxu0
      %v5070 = vadd.f32 %v4909, %v5069
      %v5071 = vpop.f32.mrf.mxu0
      %v5072 = vpop.f32.mrf.mxu0
      %v5073 = vadd.f32 %v4912, %v5072
      %v5074 = vpop.f32.mrf.mxu0
      %5075 = vmatprep.mubr.bf16.mxu0 %v4166
      %5076 = vmatmul.mubr.bf16.gmra.mxu0 %v4165
      %v5077 = vpop.f32.mrf.mxu0
      %v5078 = vadd.f32 %v4917, %v5077
      %v5079 = vpop.f32.mrf.mxu0
      %v5080 = vpop.f32.mrf.mxu0
      %v5081 = vadd.f32 %v4920, %v5080
      %v5082 = vpop.f32.mrf.mxu0
      %5083 = vmatprep.mubr.bf16.mxu0 %v4175
      %5084 = vmatmul.mubr.bf16.gmra.mxu0 %v4174
      %v5085 = vpop.f32.mrf.mxu0
      %v5086 = vadd.f32 %v4925, %v5085
      %v5087 = vpop.f32.mrf.mxu0
      %v5088 = vpop.f32.mrf.mxu0
      %v5089 = vadd.f32 %v4928, %v5088
      %v5090 = vpop.f32.mrf.mxu0
      %5091 = vmatprep.mubr.bf16.mxu0 %v4184
      %5092 = vmatmul.mubr.bf16.gmra.mxu0 %v4183
      %v5093 = vpop.f32.mrf.mxu0
      %v5094 = vadd.f32 %v4933, %v5093
      %v5095 = vpop.f32.mrf.mxu0
      %v5096 = vpop.f32.mrf.mxu0
      %v5097 = vadd.f32 %v4936, %v5096
      %v5098 = vpop.f32.mrf.mxu0
      %5099 = vmatprep.mubr.bf16.mxu0 %v4193
      %5100 = vmatmul.mubr.bf16.gmra.mxu0 %v4192
      %v5101 = vpop.f32.mrf.mxu0
      %v5102 = vadd.f32 %v4941, %v5101
      %v5103 = vpop.f32.mrf.mxu0
      %v5104 = vpop.f32.mrf.mxu0
      %v5105 = vadd.f32 %v4944, %v5104
      %v5106 = vpop.f32.mrf.mxu0
      %5107 = vmatprep.mubr.bf16.mxu0 %v4202
      %5108 = vmatmul.mubr.bf16.gmra.mxu0 %v4201
      %v5109 = vpop.f32.mrf.mxu0
      %v5110 = vadd.f32 %v4949, %v5109
      %v5111 = vpop.f32.mrf.mxu0
      %v5112 = vpop.f32.mrf.mxu0
      %v5113 = vadd.f32 %v4952, %v5112
      %v5114 = vpop.f32.mrf.mxu0
      %5115 = vmatprep.mubr.bf16.mxu0 %v4211
      %5116 = vmatmul.mubr.bf16.gmra.mxu0 %v4210
      %v5117 = vpop.f32.mrf.mxu0
      %v5118 = vadd.f32 %v4957, %v5117
      %v5119 = vpop.f32.mrf.mxu0
      %v5120 = vpop.f32.mrf.mxu0
      %v5121 = vadd.f32 %v4960, %v5120
      %v5122 = vpop.f32.mrf.mxu0
      %5123 = vmatprep.mubr.bf16.mxu0 %v4220
      %5124 = vmatmul.mubr.bf16.gmra.mxu0 %v4219
      %v5125 = vpop.f32.mrf.mxu0
      %v5126 = vadd.f32 %v4965, %v5125
      %v5127 = vpop.f32.mrf.mxu0
      %v5128 = vpop.f32.mrf.mxu0
      %v5129 = vadd.f32 %v4968, %v5128
      %v5130 = vpop.f32.mrf.mxu0
      %5131 = vmatprep.mubr.bf16.mxu0 %v4229
      %5132 = vmatmul.mubr.bf16.gmra.mxu0 %v4228
      %v5133 = vpop.f32.mrf.mxu0
      %v5134 = vadd.f32 %v4973, %v5133
      %v5135 = vpop.f32.mrf.mxu0
      %v5136 = vpop.f32.mrf.mxu0
      %v5137 = vadd.f32 %v4976, %v5136
      %v5138 = vpop.f32.mrf.mxu0
      %5139 = vmatprep.mubr.bf16.mxu0 %v4238
      %5140 = vmatmul.mubr.bf16.gmra.mxu0 %v4237
      %v5141 = vpop.f32.mrf.mxu0
      %v5142 = vadd.f32 %v4981, %v5141
      %v5143 = vpop.f32.mrf.mxu0
      %v5144 = vpop.f32.mrf.mxu0
      %v5145 = vadd.f32 %v4984, %v5144
      %v5146 = vpop.f32.mrf.mxu0
      %5147 = vmatprep.mubr.bf16.mxu0 %v4247
      %5148 = vmatmul.mubr.bf16.gmra.mxu0 %v4246
      %v5149 = vpop.f32.mrf.mxu0
      %v5150 = vadd.f32 %v4989, %v5149
      %v5151 = vpop.f32.mrf.mxu0
      %v5152 = vpop.f32.mrf.mxu0
      %v5153 = vadd.f32 %v4992, %v5152
      %v5154 = vpop.f32.mrf.mxu0
      %5155 = vmatprep.mubr.bf16.mxu0 %v4256
      %5156 = vmatmul.mubr.bf16.gmra.mxu0 %v4255
      %v5157 = vpop.f32.mrf.mxu0
      %v5158 = vadd.f32 %v4997, %v5157
      %v5159 = vpop.f32.mrf.mxu0
      %v5160 = vpop.f32.mrf.mxu0
      %v5161 = vadd.f32 %v5000, %v5160
      %v5162 = vpop.f32.mrf.mxu0
      %5163 = vmatprep.mubr.bf16.mxu0 %v4265
      %5164 = vmatmul.mubr.bf16.gmra.mxu0 %v4264
      %v5165 = vpop.f32.mrf.mxu0
      %v5166 = vadd.f32 %v5005, %v5165
      %v5167 = vpop.f32.mrf.mxu0
      %v5168 = vpop.f32.mrf.mxu0
      %v5169 = vadd.f32 %v5008, %v5168
      %v5170 = vpop.f32.mrf.mxu0
      %5171 = vmatprep.mubr.bf16.mxu0 %v4274
      %5172 = vmatmul.mubr.bf16.gmra.mxu0 %v4273
      %v5173 = vpop.f32.mrf.mxu0
      %v5174 = vadd.f32 %v5013, %v5173
      %v5175 = vpop.f32.mrf.mxu0
      %v5176 = vpop.f32.mrf.mxu0
      %v5177 = vadd.f32 %v5016, %v5176
      %v5178 = vpop.f32.mrf.mxu0
      %5179 = vmatprep.mubr.bf16.mxu0 %v4283
      %5180 = vmatmul.mubr.bf16.gmra.mxu0 %v4282
      %v5181 = vpop.f32.mrf.mxu0
      %v5182 = vadd.f32 %v5021, %v5181
      %v5183 = vpop.f32.mrf.mxu0
      %v5184 = vpop.f32.mrf.mxu0
      %v5185 = vadd.f32 %v5024, %v5184
      %v5186 = vpop.f32.mrf.mxu0
      %5187 = vmatprep.mubr.bf16.mxu0 %v4292
      %5188 = vmatmul.mubr.bf16.gmra.mxu0 %v4291
      %v5189 = vpop.f32.mrf.mxu0
      %v5190 = vadd.f32 %v5029, %v5189
      %v5191 = vpop.f32.mrf.mxu0
      %v5192 = vpop.f32.mrf.mxu0
      %v5193 = vadd.f32 %v5032, %v5192
      %v5194 = vpop.f32.mrf.mxu0
      %5195 = vdwg.mxu0
      %5196 = vmatprep.subr.bf16.mxu0 0
      %5197 = vmatpush1.bf16.msra.mxu0 %v4769
      %5198 = vmatprep.subr.bf16.mxu0 0
      %5199 = vmatpush1.bf16.msra.mxu0 %v4768
      %5200 = vmatprep.subr.bf16.mxu0 0
      %5201 = vmatpush1.bf16.msra.mxu0 %v4767
      %5202 = vmatprep.subr.bf16.mxu0 0
      %5203 = vmatpush1.bf16.msra.mxu0 %v4766
      %5204 = vmatprep.subr.bf16.mxu0 0
      %5205 = vmatpush1.bf16.msra.mxu0 %v4765
      %5206 = vmatprep.subr.bf16.mxu0 0
      %5207 = vmatpush1.bf16.msra.mxu0 %v4764
      %5208 = vmatprep.subr.bf16.mxu0 0
      %5209 = vmatpush1.bf16.msra.mxu0 %v4763
      %5210 = vmatprep.subr.bf16.mxu0 0
      %5211 = vmatpush1.bf16.msra.mxu0 %v4762
      %5212 = vmatprep.subr.bf16.mxu0 0
      %5213 = vmatpush2.bf16.msra.mxu0 %v4777
      %5214 = vmatprep.subr.bf16.mxu0 0
      %5215 = vmatpush2.bf16.msra.mxu0 %v4776
      %5216 = vmatprep.subr.bf16.mxu0 0
      %5217 = vmatpush2.bf16.msra.mxu0 %v4775
      %5218 = vmatprep.subr.bf16.mxu0 0
      %5219 = vmatpush2.bf16.msra.mxu0 %v4774
      %5220 = vmatprep.subr.bf16.mxu0 0
      %5221 = vmatpush2.bf16.msra.mxu0 %v4773
      %5222 = vmatprep.subr.bf16.mxu0 0
      %5223 = vmatpush2.bf16.msra.mxu0 %v4772
      %5224 = vmatprep.subr.bf16.mxu0 0
      %5225 = vmatpush2.bf16.msra.mxu0 %v4771
      %5226 = vmatprep.subr.bf16.mxu0 0
      %5227 = vmatpush2.bf16.msra.mxu0 %v4770
      %5228 = vmatprep.mubr.bf16.mxu0 %v4159
      %5229 = vmatmul.mubr.bf16.gmra.mxu0 %v4158
      %v5230 = vpop.f32.mrf.mxu0
      %v5231 = vadd.f32 %v5070, %v5230
      %v5232 = vpop.f32.mrf.mxu0
      %v5233 = vpop.f32.mrf.mxu0
      %v5234 = vadd.f32 %v5073, %v5233
      %v5235 = vpop.f32.mrf.mxu0
      %5236 = vmatprep.mubr.bf16.mxu0 %v4168
      %5237 = vmatmul.mubr.bf16.gmra.mxu0 %v4167
      %v5238 = vpop.f32.mrf.mxu0
      %v5239 = vadd.f32 %v5078, %v5238
      %v5240 = vpop.f32.mrf.mxu0
      %v5241 = vpop.f32.mrf.mxu0
      %v5242 = vadd.f32 %v5081, %v5241
      %v5243 = vpop.f32.mrf.mxu0
      %5244 = vmatprep.mubr.bf16.mxu0 %v4177
      %5245 = vmatmul.mubr.bf16.gmra.mxu0 %v4176
      %v5246 = vpop.f32.mrf.mxu0
      %v5247 = vadd.f32 %v5086, %v5246
      %v5248 = vpop.f32.mrf.mxu0
      %v5249 = vpop.f32.mrf.mxu0
      %v5250 = vadd.f32 %v5089, %v5249
      %v5251 = vpop.f32.mrf.mxu0
      %5252 = vmatprep.mubr.bf16.mxu0 %v4186
      %5253 = vmatmul.mubr.bf16.gmra.mxu0 %v4185
      %v5254 = vpop.f32.mrf.mxu0
      %v5255 = vadd.f32 %v5094, %v5254
      %v5256 = vpop.f32.mrf.mxu0
      %v5257 = vpop.f32.mrf.mxu0
      %v5258 = vadd.f32 %v5097, %v5257
      %v5259 = vpop.f32.mrf.mxu0
      %5260 = vmatprep.mubr.bf16.mxu0 %v4195
      %5261 = vmatmul.mubr.bf16.gmra.mxu0 %v4194
      %v5262 = vpop.f32.mrf.mxu0
      %v5263 = vadd.f32 %v5102, %v5262
      %v5264 = vpop.f32.mrf.mxu0
      %v5265 = vpop.f32.mrf.mxu0
      %v5266 = vadd.f32 %v5105, %v5265
      %v5267 = vpop.f32.mrf.mxu0
      %5268 = vmatprep.mubr.bf16.mxu0 %v4204
      %5269 = vmatmul.mubr.bf16.gmra.mxu0 %v4203
      %v5270 = vpop.f32.mrf.mxu0
      %v5271 = vadd.f32 %v5110, %v5270
      %v5272 = vpop.f32.mrf.mxu0
      %v5273 = vpop.f32.mrf.mxu0
      %v5274 = vadd.f32 %v5113, %v5273
      %v5275 = vpop.f32.mrf.mxu0
      %5276 = vmatprep.mubr.bf16.mxu0 %v4213
      %5277 = vmatmul.mubr.bf16.gmra.mxu0 %v4212
      %v5278 = vpop.f32.mrf.mxu0
      %v5279 = vadd.f32 %v5118, %v5278
      %v5280 = vpop.f32.mrf.mxu0
      %v5281 = vpop.f32.mrf.mxu0
      %v5282 = vadd.f32 %v5121, %v5281
      %v5283 = vpop.f32.mrf.mxu0
      %5284 = vmatprep.mubr.bf16.mxu0 %v4222
      %5285 = vmatmul.mubr.bf16.gmra.mxu0 %v4221
      %v5286 = vpop.f32.mrf.mxu0
      %v5287 = vadd.f32 %v5126, %v5286
      %v5288 = vpop.f32.mrf.mxu0
      %v5289 = vpop.f32.mrf.mxu0
      %v5290 = vadd.f32 %v5129, %v5289
      %v5291 = vpop.f32.mrf.mxu0
      %5292 = vmatprep.mubr.bf16.mxu0 %v4231
      %5293 = vmatmul.mubr.bf16.gmra.mxu0 %v4230
      %v5294 = vpop.f32.mrf.mxu0
      %v5295 = vadd.f32 %v5134, %v5294
      %v5296 = vpop.f32.mrf.mxu0
      %v5297 = vpop.f32.mrf.mxu0
      %v5298 = vadd.f32 %v5137, %v5297
      %v5299 = vpop.f32.mrf.mxu0
      %5300 = vmatprep.mubr.bf16.mxu0 %v4240
      %5301 = vmatmul.mubr.bf16.gmra.mxu0 %v4239
      %v5302 = vpop.f32.mrf.mxu0
      %v5303 = vadd.f32 %v5142, %v5302
      %v5304 = vpop.f32.mrf.mxu0
      %v5305 = vpop.f32.mrf.mxu0
      %v5306 = vadd.f32 %v5145, %v5305
      %v5307 = vpop.f32.mrf.mxu0
      %5308 = vmatprep.mubr.bf16.mxu0 %v4249
      %5309 = vmatmul.mubr.bf16.gmra.mxu0 %v4248
      %v5310 = vpop.f32.mrf.mxu0
      %v5311 = vadd.f32 %v5150, %v5310
      %v5312 = vpop.f32.mrf.mxu0
      %v5313 = vpop.f32.mrf.mxu0
      %v5314 = vadd.f32 %v5153, %v5313
      %v5315 = vpop.f32.mrf.mxu0
      %5316 = vmatprep.mubr.bf16.mxu0 %v4258
      %5317 = vmatmul.mubr.bf16.gmra.mxu0 %v4257
      %v5318 = vpop.f32.mrf.mxu0
      %v5319 = vadd.f32 %v5158, %v5318
      %v5320 = vpop.f32.mrf.mxu0
      %v5321 = vpop.f32.mrf.mxu0
      %v5322 = vadd.f32 %v5161, %v5321
      %v5323 = vpop.f32.mrf.mxu0
      %5324 = vmatprep.mubr.bf16.mxu0 %v4267
      %5325 = vmatmul.mubr.bf16.gmra.mxu0 %v4266
      %v5326 = vpop.f32.mrf.mxu0
      %v5327 = vadd.f32 %v5166, %v5326
      %v5328 = vpop.f32.mrf.mxu0
      %v5329 = vpop.f32.mrf.mxu0
      %v5330 = vadd.f32 %v5169, %v5329
      %v5331 = vpop.f32.mrf.mxu0
      %5332 = vmatprep.mubr.bf16.mxu0 %v4276
      %5333 = vmatmul.mubr.bf16.gmra.mxu0 %v4275
      %v5334 = vpop.f32.mrf.mxu0
      %v5335 = vadd.f32 %v5174, %v5334
      %v5336 = vpop.f32.mrf.mxu0
      %v5337 = vpop.f32.mrf.mxu0
      %v5338 = vadd.f32 %v5177, %v5337
      %v5339 = vpop.f32.mrf.mxu0
      %5340 = vmatprep.mubr.bf16.mxu0 %v4285
      %5341 = vmatmul.mubr.bf16.gmra.mxu0 %v4284
      %v5342 = vpop.f32.mrf.mxu0
      %v5343 = vadd.f32 %v5182, %v5342
      %v5344 = vpop.f32.mrf.mxu0
      %v5345 = vpop.f32.mrf.mxu0
      %v5346 = vadd.f32 %v5185, %v5345
      %v5347 = vpop.f32.mrf.mxu0
      %5348 = vmatprep.mubr.bf16.mxu0 %v4294
      %5349 = vmatmul.mubr.bf16.gmra.mxu0 %v4293
      %v5350 = vpop.f32.mrf.mxu0
      %v5351 = vadd.f32 %v5190, %v5350
      %v5352 = vpop.f32.mrf.mxu0
      %v5353 = vpop.f32.mrf.mxu0
      %v5354 = vadd.f32 %v5193, %v5353
      %v5355 = vpop.f32.mrf.mxu0
      %5356 = vdwg.mxu0
      %5357 = vmatprep.subr.bf16.mxu0 0
      %5358 = vmatpush1.bf16.msra.mxu0 %v4785
      %5359 = vmatprep.subr.bf16.mxu0 0
      %5360 = vmatpush1.bf16.msra.mxu0 %v4784
      %5361 = vmatprep.subr.bf16.mxu0 0
      %5362 = vmatpush1.bf16.msra.mxu0 %v4783
      %5363 = vmatprep.subr.bf16.mxu0 0
      %5364 = vmatpush1.bf16.msra.mxu0 %v4782
      %5365 = vmatprep.subr.bf16.mxu0 0
      %5366 = vmatpush1.bf16.msra.mxu0 %v4781
      %5367 = vmatprep.subr.bf16.mxu0 0
      %5368 = vmatpush1.bf16.msra.mxu0 %v4780
      %5369 = vmatprep.subr.bf16.mxu0 0
      %5370 = vmatpush1.bf16.msra.mxu0 %v4779
      %5371 = vmatprep.subr.bf16.mxu0 0
      %5372 = vmatpush1.bf16.msra.mxu0 %v4778
      %5373 = vmatprep.subr.bf16.mxu0 0
      %5374 = vmatpush2.bf16.msra.mxu0 %v4793
      %5375 = vmatprep.subr.bf16.mxu0 0
      %5376 = vmatpush2.bf16.msra.mxu0 %v4792
      %5377 = vmatprep.subr.bf16.mxu0 0
      %5378 = vmatpush2.bf16.msra.mxu0 %v4791
      %5379 = vmatprep.subr.bf16.mxu0 0
      %5380 = vmatpush2.bf16.msra.mxu0 %v4790
      %5381 = vmatprep.subr.bf16.mxu0 0
      %5382 = vmatpush2.bf16.msra.mxu0 %v4789
      %5383 = vmatprep.subr.bf16.mxu0 0
      %5384 = vmatpush2.bf16.msra.mxu0 %v4788
      %5385 = vmatprep.subr.bf16.mxu0 0
      %5386 = vmatpush2.bf16.msra.mxu0 %v4787
      %5387 = vmatprep.subr.bf16.mxu0 0
      %5388 = vmatpush2.bf16.msra.mxu0 %v4786
      %5389 = vmatprep.mubr.bf16.mxu0 %v4161
      %5390 = vmatmul.mubr.bf16.gmra.mxu0 %v4160
      %v5391 = vpop.f32.mrf.mxu0
      %v5392 = vadd.f32 %v5231, %v5391
      %v5393 = vpop.f32.mrf.mxu0
      %v5394 = vpop.f32.mrf.mxu0
      %v5395 = vadd.f32 %v5234, %v5394
      %v5396 = vpop.f32.mrf.mxu0
      %5397 = vmatprep.mubr.bf16.mxu0 %v4170
      %5398 = vmatmul.mubr.bf16.gmra.mxu0 %v4169
      %v5399 = vpop.f32.mrf.mxu0
      %v5400 = vadd.f32 %v5239, %v5399
      %v5401 = vpop.f32.mrf.mxu0
      %v5402 = vpop.f32.mrf.mxu0
      %v5403 = vadd.f32 %v5242, %v5402
      %v5404 = vpop.f32.mrf.mxu0
      %5405 = vmatprep.mubr.bf16.mxu0 %v4179
      %5406 = vmatmul.mubr.bf16.gmra.mxu0 %v4178
      %v5407 = vpop.f32.mrf.mxu0
      %v5408 = vadd.f32 %v5247, %v5407
      %v5409 = vpop.f32.mrf.mxu0
      %v5410 = vpop.f32.mrf.mxu0
      %v5411 = vadd.f32 %v5250, %v5410
      %v5412 = vpop.f32.mrf.mxu0
      %5413 = vmatprep.mubr.bf16.mxu0 %v4188
      %5414 = vmatmul.mubr.bf16.gmra.mxu0 %v4187
      %v5415 = vpop.f32.mrf.mxu0
      %v5416 = vadd.f32 %v5255, %v5415
      %v5417 = vpop.f32.mrf.mxu0
      %v5418 = vpop.f32.mrf.mxu0
      %v5419 = vadd.f32 %v5258, %v5418
      %v5420 = vpop.f32.mrf.mxu0
      %5421 = vmatprep.mubr.bf16.mxu0 %v4197
      %5422 = vmatmul.mubr.bf16.gmra.mxu0 %v4196
      %v5423 = vpop.f32.mrf.mxu0
      %v5424 = vadd.f32 %v5263, %v5423
      %v5425 = vpop.f32.mrf.mxu0
      %v5426 = vpop.f32.mrf.mxu0
      %v5427 = vadd.f32 %v5266, %v5426
      %v5428 = vpop.f32.mrf.mxu0
      %5429 = vmatprep.mubr.bf16.mxu0 %v4206
      %5430 = vmatmul.mubr.bf16.gmra.mxu0 %v4205
      %v5431 = vpop.f32.mrf.mxu0
      %v5432 = vadd.f32 %v5271, %v5431
      %v5433 = vpop.f32.mrf.mxu0
      %v5434 = vpop.f32.mrf.mxu0
      %v5435 = vadd.f32 %v5274, %v5434
      %v5436 = vpop.f32.mrf.mxu0
      %5437 = vmatprep.mubr.bf16.mxu0 %v4215
      %5438 = vmatmul.mubr.bf16.gmra.mxu0 %v4214
      %v5439 = vpop.f32.mrf.mxu0
      %v5440 = vadd.f32 %v5279, %v5439
      %v5441 = vpop.f32.mrf.mxu0
      %v5442 = vpop.f32.mrf.mxu0
      %v5443 = vadd.f32 %v5282, %v5442
      %v5444 = vpop.f32.mrf.mxu0
      %5445 = vmatprep.mubr.bf16.mxu0 %v4224
      %5446 = vmatmul.mubr.bf16.gmra.mxu0 %v4223
      %v5447 = vpop.f32.mrf.mxu0
      %v5448 = vadd.f32 %v5287, %v5447
      %v5449 = vpop.f32.mrf.mxu0
      %v5450 = vpop.f32.mrf.mxu0
      %v5451 = vadd.f32 %v5290, %v5450
      %v5452 = vpop.f32.mrf.mxu0
      %5453 = vmatprep.mubr.bf16.mxu0 %v4233
      %5454 = vmatmul.mubr.bf16.gmra.mxu0 %v4232
      %v5455 = vpop.f32.mrf.mxu0
      %v5456 = vadd.f32 %v5295, %v5455
      %v5457 = vpop.f32.mrf.mxu0
      %v5458 = vpop.f32.mrf.mxu0
      %v5459 = vadd.f32 %v5298, %v5458
      %v5460 = vpop.f32.mrf.mxu0
      %5461 = vmatprep.mubr.bf16.mxu0 %v4242
      %5462 = vmatmul.mubr.bf16.gmra.mxu0 %v4241
      %v5463 = vpop.f32.mrf.mxu0
      %v5464 = vadd.f32 %v5303, %v5463
      %v5465 = vpop.f32.mrf.mxu0
      %v5466 = vpop.f32.mrf.mxu0
      %v5467 = vadd.f32 %v5306, %v5466
      %v5468 = vpop.f32.mrf.mxu0
      %5469 = vmatprep.mubr.bf16.mxu0 %v4251
      %5470 = vmatmul.mubr.bf16.gmra.mxu0 %v4250
      %v5471 = vpop.f32.mrf.mxu0
      %v5472 = vadd.f32 %v5311, %v5471
      %v5473 = vpop.f32.mrf.mxu0
      %v5474 = vpop.f32.mrf.mxu0
      %v5475 = vadd.f32 %v5314, %v5474
      %v5476 = vpop.f32.mrf.mxu0
      %5477 = vmatprep.mubr.bf16.mxu0 %v4260
      %5478 = vmatmul.mubr.bf16.gmra.mxu0 %v4259
      %v5479 = vpop.f32.mrf.mxu0
      %v5480 = vadd.f32 %v5319, %v5479
      %v5481 = vpop.f32.mrf.mxu0
      %v5482 = vpop.f32.mrf.mxu0
      %v5483 = vadd.f32 %v5322, %v5482
      %v5484 = vpop.f32.mrf.mxu0
      %5485 = vmatprep.mubr.bf16.mxu0 %v4269
      %5486 = vmatmul.mubr.bf16.gmra.mxu0 %v4268
      %v5487 = vpop.f32.mrf.mxu0
      %v5488 = vadd.f32 %v5327, %v5487
      %v5489 = vpop.f32.mrf.mxu0
      %v5490 = vpop.f32.mrf.mxu0
      %v5491 = vadd.f32 %v5330, %v5490
      %v5492 = vpop.f32.mrf.mxu0
      %5493 = vmatprep.mubr.bf16.mxu0 %v4278
      %5494 = vmatmul.mubr.bf16.gmra.mxu0 %v4277
      %v5495 = vpop.f32.mrf.mxu0
      %v5496 = vadd.f32 %v5335, %v5495
      %v5497 = vpop.f32.mrf.mxu0
      %v5498 = vpop.f32.mrf.mxu0
      %v5499 = vadd.f32 %v5338, %v5498
      %v5500 = vpop.f32.mrf.mxu0
      %5501 = vmatprep.mubr.bf16.mxu0 %v4287
      %5502 = vmatmul.mubr.bf16.gmra.mxu0 %v4286
      %v5503 = vpop.f32.mrf.mxu0
      %v5504 = vadd.f32 %v5343, %v5503
      %v5505 = vpop.f32.mrf.mxu0
      %v5506 = vpop.f32.mrf.mxu0
      %v5507 = vadd.f32 %v5346, %v5506
      %v5508 = vpop.f32.mrf.mxu0
      %5509 = vmatprep.mubr.bf16.mxu0 %v4296
      %5510 = vmatmul.mubr.bf16.gmra.mxu0 %v4295
      %v5511 = vpop.f32.mrf.mxu0
      %v5512 = vadd.f32 %v5351, %v5511
      %v5513 = vpop.f32.mrf.mxu0
      %v5514 = vpop.f32.mrf.mxu0
      %v5515 = vadd.f32 %v5354, %v5514
      %v5516 = vpop.f32.mrf.mxu0
      %5517 = vdwg.mxu0
      %5518 = vmatprep.subr.bf16.mxu0 0
      %5519 = vmatpush1.bf16.msra.mxu0 %v4801
      %5520 = vmatprep.subr.bf16.mxu0 0
      %5521 = vmatpush1.bf16.msra.mxu0 %v4800
      %5522 = vmatprep.subr.bf16.mxu0 0
      %5523 = vmatpush1.bf16.msra.mxu0 %v4799
      %5524 = vmatprep.subr.bf16.mxu0 0
      %5525 = vmatpush1.bf16.msra.mxu0 %v4798
      %5526 = vmatprep.subr.bf16.mxu0 0
      %5527 = vmatpush1.bf16.msra.mxu0 %v4797
      %5528 = vmatprep.subr.bf16.mxu0 0
      %5529 = vmatpush1.bf16.msra.mxu0 %v4796
      %5530 = vmatprep.subr.bf16.mxu0 0
      %5531 = vmatpush1.bf16.msra.mxu0 %v4795
      %5532 = vmatprep.subr.bf16.mxu0 0
      %5533 = vmatpush1.bf16.msra.mxu0 %v4794
      %5534 = vmatprep.subr.bf16.mxu0 0
      %5535 = vmatpush2.bf16.msra.mxu0 0
      %5536 = vmatprep.subr.bf16.mxu0 0
      %5537 = vmatpush2.bf16.msra.mxu0 0
      %5538 = vmatprep.subr.bf16.mxu0 0
      %5539 = vmatpush2.bf16.msra.mxu0 0
      %5540 = vmatprep.subr.bf16.mxu0 0
      %5541 = vmatpush2.bf16.msra.mxu0 0
      %5542 = vmatprep.subr.bf16.mxu0 0
      %5543 = vmatpush2.bf16.msra.mxu0 0
      %5544 = vmatprep.subr.bf16.mxu0 0
      %5545 = vmatpush2.bf16.msra.mxu0 0
      %5546 = vmatprep.subr.bf16.mxu0 0
      %5547 = vmatpush2.bf16.msra.mxu0 0
      %5548 = vmatprep.subr.bf16.mxu0 0
      %5549 = vmatpush2.bf16.msra.mxu0 0
      %5550 = vmatprep.mubr.bf16.mxu0 0
      %5551 = vmatmul.mubr.bf16.gmra.mxu0 %v4162
      %v5552 = vpop.f32.mrf.mxu0
      %v5553 = vadd.f32 %v5392, %v5552
      %v5554 = vpop.f32.mrf.mxu0
      %v5555 = vpop.f32.mrf.mxu0
      %v5556 = vadd.f32 %v5395, %v5555
      %v5557 = vpop.f32.mrf.mxu0
      %5558 = vmatprep.mubr.bf16.mxu0 0
      %5559 = vmatmul.mubr.bf16.gmra.mxu0 %v4171
      %v5560 = vpop.f32.mrf.mxu0
      %v5561 = vadd.f32 %v5400, %v5560
      %v5562 = vpop.f32.mrf.mxu0
      %v5563 = vpop.f32.mrf.mxu0
      %v5564 = vadd.f32 %v5403, %v5563
      %v5565 = vpop.f32.mrf.mxu0
      %5566 = vmatprep.mubr.bf16.mxu0 0
      %5567 = vmatmul.mubr.bf16.gmra.mxu0 %v4180
      %v5568 = vpop.f32.mrf.mxu0
      %v5569 = vadd.f32 %v5408, %v5568
      %v5570 = vpop.f32.mrf.mxu0
      %v5571 = vpop.f32.mrf.mxu0
      %v5572 = vadd.f32 %v5411, %v5571
      %v5573 = vpop.f32.mrf.mxu0
      %5574 = vmatprep.mubr.bf16.mxu0 0
      %5575 = vmatmul.mubr.bf16.gmra.mxu0 %v4189
      %v5576 = vpop.f32.mrf.mxu0
      %v5577 = vadd.f32 %v5416, %v5576
      %v5578 = vpop.f32.mrf.mxu0
      %v5579 = vpop.f32.mrf.mxu0
      %v5580 = vadd.f32 %v5419, %v5579
      %v5581 = vpop.f32.mrf.mxu0
      %5582 = vmatprep.mubr.bf16.mxu0 0
      %5583 = vmatmul.mubr.bf16.gmra.mxu0 %v4198
      %v5584 = vpop.f32.mrf.mxu0
      %v5585 = vadd.f32 %v5424, %v5584
      %v5586 = vpop.f32.mrf.mxu0
      %v5587 = vpop.f32.mrf.mxu0
      %v5588 = vadd.f32 %v5427, %v5587
      %v5589 = vpop.f32.mrf.mxu0
      %5590 = vmatprep.mubr.bf16.mxu0 0
      %5591 = vmatmul.mubr.bf16.gmra.mxu0 %v4207
      %v5592 = vpop.f32.mrf.mxu0
      %v5593 = vadd.f32 %v5432, %v5592
      %v5594 = vpop.f32.mrf.mxu0
      %v5595 = vpop.f32.mrf.mxu0
      %v5596 = vadd.f32 %v5435, %v5595
      %v5597 = vpop.f32.mrf.mxu0
      %5598 = vmatprep.mubr.bf16.mxu0 0
      %5599 = vmatmul.mubr.bf16.gmra.mxu0 %v4216
      %v5600 = vpop.f32.mrf.mxu0
      %v5601 = vadd.f32 %v5440, %v5600
      %v5602 = vpop.f32.mrf.mxu0
      %v5603 = vpop.f32.mrf.mxu0
      %v5604 = vadd.f32 %v5443, %v5603
      %v5605 = vpop.f32.mrf.mxu0
      %5606 = vmatprep.mubr.bf16.mxu0 0
      %5607 = vmatmul.mubr.bf16.gmra.mxu0 %v4225
      %v5608 = vpop.f32.mrf.mxu0
      %v5609 = vadd.f32 %v5448, %v5608
      %v5610 = vpop.f32.mrf.mxu0
      %v5611 = vpop.f32.mrf.mxu0
      %v5612 = vadd.f32 %v5451, %v5611
      %v5613 = vpop.f32.mrf.mxu0
      %5614 = vmatprep.mubr.bf16.mxu0 0
      %5615 = vmatmul.mubr.bf16.gmra.mxu0 %v4234
      %v5616 = vpop.f32.mrf.mxu0
      %v5617 = vadd.f32 %v5456, %v5616
      %v5618 = vpop.f32.mrf.mxu0
      %v5619 = vpop.f32.mrf.mxu0
      %v5620 = vadd.f32 %v5459, %v5619
      %v5621 = vpop.f32.mrf.mxu0
      %5622 = vmatprep.mubr.bf16.mxu0 0
      %5623 = vmatmul.mubr.bf16.gmra.mxu0 %v4243
      %v5624 = vpop.f32.mrf.mxu0
      %v5625 = vadd.f32 %v5464, %v5624
      %v5626 = vpop.f32.mrf.mxu0
      %v5627 = vpop.f32.mrf.mxu0
      %v5628 = vadd.f32 %v5467, %v5627
      %v5629 = vpop.f32.mrf.mxu0
      %5630 = vmatprep.mubr.bf16.mxu0 0
      %5631 = vmatmul.mubr.bf16.gmra.mxu0 %v4252
      %v5632 = vpop.f32.mrf.mxu0
      %v5633 = vadd.f32 %v5472, %v5632
      %v5634 = vpop.f32.mrf.mxu0
      %v5635 = vpop.f32.mrf.mxu0
      %v5636 = vadd.f32 %v5475, %v5635
      %v5637 = vpop.f32.mrf.mxu0
      %5638 = vmatprep.mubr.bf16.mxu0 0
      %5639 = vmatmul.mubr.bf16.gmra.mxu0 %v4261
      %v5640 = vpop.f32.mrf.mxu0
      %v5641 = vadd.f32 %v5480, %v5640
      %v5642 = vpop.f32.mrf.mxu0
      %v5643 = vpop.f32.mrf.mxu0
      %v5644 = vadd.f32 %v5483, %v5643
      %v5645 = vpop.f32.mrf.mxu0
      %5646 = vmatprep.mubr.bf16.mxu0 0
      %5647 = vmatmul.mubr.bf16.gmra.mxu0 %v4270
      %v5648 = vpop.f32.mrf.mxu0
      %v5649 = vadd.f32 %v5488, %v5648
      %v5650 = vpop.f32.mrf.mxu0
      %v5651 = vpop.f32.mrf.mxu0
      %v5652 = vadd.f32 %v5491, %v5651
      %v5653 = vpop.f32.mrf.mxu0
      %5654 = vmatprep.mubr.bf16.mxu0 0
      %5655 = vmatmul.mubr.bf16.gmra.mxu0 %v4279
      %v5656 = vpop.f32.mrf.mxu0
      %v5657 = vadd.f32 %v5496, %v5656
      %v5658 = vpop.f32.mrf.mxu0
      %v5659 = vpop.f32.mrf.mxu0
      %v5660 = vadd.f32 %v5499, %v5659
      %v5661 = vpop.f32.mrf.mxu0
      %5662 = vmatprep.mubr.bf16.mxu0 0
      %5663 = vmatmul.mubr.bf16.gmra.mxu0 %v4288
      %v5664 = vpop.f32.mrf.mxu0
      %v5665 = vadd.f32 %v5504, %v5664
      %v5666 = vpop.f32.mrf.mxu0
      %v5667 = vpop.f32.mrf.mxu0
      %v5668 = vadd.f32 %v5507, %v5667
      %v5669 = vpop.f32.mrf.mxu0
      %5670 = vmatprep.mubr.bf16.mxu0 0
      %5671 = vmatmul.mubr.bf16.gmra.mxu0 %v4297
      %v5672 = vpop.f32.mrf.mxu0
      %v5673 = vadd.f32 %v5512, %v5672
      %v5674 = vpop.f32.mrf.mxu0
      %v5675 = vpop.f32.mrf.mxu0
      %v5676 = vadd.f32 %v5515, %v5675
      %v5677 = vpop.f32.mrf.mxu0
      %5678 = vdwg.mxu0
      %v5679 = vld [vmem:[%s2] sm:$0x1]
      %v5681 = vlaneseq
      %v5682 = vshrl.u32 %v5681, 7
      %v5683 = vsub.s32 0, %v5682
      %v5684 = vrot.slane %v5679, %v5683
      %v5686 = vmul.f32 %v5553, %v5684
      %v5687 = vmul.f32 %v5556, %v5684
      %v5688 = vmul.f32 %v5561, %v5684
      %v5689 = vmul.f32 %v5564, %v5684
      %v5690 = vmul.f32 %v5569, %v5684
      %v5691 = vmul.f32 %v5572, %v5684
      %v5692 = vmul.f32 %v5577, %v5684
      %v5693 = vmul.f32 %v5580, %v5684
      %v5694 = vmul.f32 %v5585, %v5684
      %v5695 = vmul.f32 %v5588, %v5684
      %v5696 = vmul.f32 %v5593, %v5684
      %v5697 = vmul.f32 %v5596, %v5684
      %v5698 = vmul.f32 %v5601, %v5684
      %v5699 = vmul.f32 %v5604, %v5684
      %v5700 = vmul.f32 %v5609, %v5684
      %v5701 = vmul.f32 %v5612, %v5684
      %v5702 = vmul.f32 %v5617, %v5684
      %v5703 = vmul.f32 %v5620, %v5684
      %v5704 = vmul.f32 %v5625, %v5684
      %v5705 = vmul.f32 %v5628, %v5684
      %v5706 = vmul.f32 %v5633, %v5684
      %v5707 = vmul.f32 %v5636, %v5684
      %v5708 = vmul.f32 %v5641, %v5684
      %v5709 = vmul.f32 %v5644, %v5684
      %v5710 = vmul.f32 %v5649, %v5684
      %v5711 = vmul.f32 %v5652, %v5684
      %v5712 = vmul.f32 %v5657, %v5684
      %v5713 = vmul.f32 %v5660, %v5684
      %v5714 = vmul.f32 %v5665, %v5684
      %v5715 = vmul.f32 %v5668, %v5684
      %v5716 = vmul.f32 %v5673, %v5684
      %v5717 = vmul.f32 %v5676, %v5684
      %v5718 = vld [vmem:[%s3] sm:$0x1]
      %v5720 = vlaneseq
      %v5721 = vshrl.u32 %v5720, 7
      %v5722 = vsub.s32 0, %v5721
      %v5723 = vrot.slane %v5718, %v5722
      %v5725 = vadd.f32 %v5686, %v5723
      %v5726 = vadd.f32 %v5687, %v5723
      %v5727 = vadd.f32 %v5688, %v5723
      %v5728 = vadd.f32 %v5689, %v5723
      %v5729 = vadd.f32 %v5690, %v5723
      %v5730 = vadd.f32 %v5691, %v5723
      %v5731 = vadd.f32 %v5692, %v5723
      %v5732 = vadd.f32 %v5693, %v5723
      %v5733 = vadd.f32 %v5694, %v5723
      %v5734 = vadd.f32 %v5695, %v5723
      %v5735 = vadd.f32 %v5696, %v5723
      %v5736 = vadd.f32 %v5697, %v5723
      %v5737 = vadd.f32 %v5698, %v5723
      %v5738 = vadd.f32 %v5699, %v5723
      %v5739 = vadd.f32 %v5700, %v5723
      %v5740 = vadd.f32 %v5701, %v5723
      %v5741 = vadd.f32 %v5702, %v5723
      %v5742 = vadd.f32 %v5703, %v5723
      %v5743 = vadd.f32 %v5704, %v5723
      %v5744 = vadd.f32 %v5705, %v5723
      %v5745 = vadd.f32 %v5706, %v5723
      %v5746 = vadd.f32 %v5707, %v5723
      %v5747 = vadd.f32 %v5708, %v5723
      %v5748 = vadd.f32 %v5709, %v5723
      %v5749 = vadd.f32 %v5710, %v5723
      %v5750 = vadd.f32 %v5711, %v5723
      %v5751 = vadd.f32 %v5712, %v5723
      %v5752 = vadd.f32 %v5713, %v5723
      %v5753 = vadd.f32 %v5714, %v5723
      %v5754 = vadd.f32 %v5715, %v5723
      %v5755 = vadd.f32 %v5716, %v5723
      %v5756 = vadd.f32 %v5717, %v5723
      %v5757 = vmax.f32 %v5725, 0.0
      %v5758 = vmax.f32 %v5726, 0.0
      %v5759 = vmax.f32 %v5727, 0.0
      %v5760 = vmax.f32 %v5728, 0.0
      %v5761 = vmax.f32 %v5729, 0.0
      %v5762 = vmax.f32 %v5730, 0.0
      %v5763 = vmax.f32 %v5731, 0.0
      %v5764 = vmax.f32 %v5732, 0.0
      %v5765 = vmax.f32 %v5733, 0.0
      %v5766 = vmax.f32 %v5734, 0.0
      %v5767 = vmax.f32 %v5735, 0.0
      %v5768 = vmax.f32 %v5736, 0.0
      %v5769 = vmax.f32 %v5737, 0.0
      %v5770 = vmax.f32 %v5738, 0.0
      %v5771 = vmax.f32 %v5739, 0.0
      %v5772 = vmax.f32 %v5740, 0.0
      %v5773 = vmax.f32 %v5741, 0.0
      %v5774 = vmax.f32 %v5742, 0.0
      %v5775 = vmax.f32 %v5743, 0.0
      %v5776 = vmax.f32 %v5744, 0.0
      %v5777 = vmax.f32 %v5745, 0.0
      %v5778 = vmax.f32 %v5746, 0.0
      %v5779 = vmax.f32 %v5747, 0.0
      %v5780 = vmax.f32 %v5748, 0.0
      %v5781 = vmax.f32 %v5749, 0.0
      %v5782 = vmax.f32 %v5750, 0.0
      %v5783 = vmax.f32 %v5751, 0.0
      %v5784 = vmax.f32 %v5752, 0.0
      %v5785 = vmax.f32 %v5753, 0.0
      %v5786 = vmax.f32 %v5754, 0.0
      %v5787 = vmax.f32 %v5755, 0.0
      %v5788 = vmax.f32 %v5756, 0.0
      %v5789 = vpack.c.bf16 %v5758, %v5757
      %v5790 = vpack.c.bf16 %v5760, %v5759
      %v5791 = vpack.c.bf16 %v5762, %v5761
      %v5792 = vpack.c.bf16 %v5764, %v5763
      %v5793 = vpack.c.bf16 %v5766, %v5765
      %v5794 = vpack.c.bf16 %v5768, %v5767
      %v5795 = vpack.c.bf16 %v5770, %v5769
      %v5796 = vpack.c.bf16 %v5772, %v5771
      %v5797 = vpack.c.bf16 %v5774, %v5773
      %v5798 = vpack.c.bf16 %v5776, %v5775
      %v5799 = vpack.c.bf16 %v5778, %v5777
      %v5800 = vpack.c.bf16 %v5780, %v5779
      %v5801 = vpack.c.bf16 %v5782, %v5781
      %v5802 = vpack.c.bf16 %v5784, %v5783
      %v5803 = vpack.c.bf16 %v5786, %v5785
      %v5804 = vpack.c.bf16 %v5788, %v5787
      %v5821 = vunpack.c.l.b16 %v5789
      %v5822 = vunpack.c.h.b16 %v5789
      %v5823 = vunpack.c.l.b16 %v5790
      %v5824 = vunpack.c.h.b16 %v5790
      %v5825 = vunpack.c.l.b16 %v5791
      %v5826 = vunpack.c.h.b16 %v5791
      %v5827 = vunpack.c.l.b16 %v5792
      %v5828 = vunpack.c.h.b16 %v5792
      %v5829 = vunpack.c.l.b16 %v5793
      %v5830 = vunpack.c.h.b16 %v5793
      %v5831 = vunpack.c.l.b16 %v5794
      %v5832 = vunpack.c.h.b16 %v5794
      %v5833 = vunpack.c.l.b16 %v5795
      %v5834 = vunpack.c.h.b16 %v5795
      %v5835 = vunpack.c.l.b16 %v5796
      %v5836 = vunpack.c.h.b16 %v5796
      %v5837 = vunpack.c.l.b16 %v5797
      %v5838 = vunpack.c.h.b16 %v5797
      %v5839 = vunpack.c.l.b16 %v5798
      %v5840 = vunpack.c.h.b16 %v5798
      %v5841 = vunpack.c.l.b16 %v5799
      %v5842 = vunpack.c.h.b16 %v5799
      %v5843 = vunpack.c.l.b16 %v5800
      %v5844 = vunpack.c.h.b16 %v5800
      %v5845 = vunpack.c.l.b16 %v5801
      %v5846 = vunpack.c.h.b16 %v5801
      %v5847 = vunpack.c.l.b16 %v5802
      %v5848 = vunpack.c.h.b16 %v5802
      %v5849 = vunpack.c.l.b16 %v5803
      %v5850 = vunpack.c.h.b16 %v5803
      %v5851 = vunpack.c.l.b16 %v5804
      %v5852 = vunpack.c.h.b16 %v5804
      %v5853 = vpack.c.b16 %v5821, %v5821
      %v5854 = vpack.c.b16 %v5822, %v5822
      %v5855 = vpack.c.b16 %v5823, %v5823
      %v5856 = vpack.c.b16 %v5824, %v5824
      %v5857 = vpack.c.b16 %v5825, %v5825
      %v5858 = vpack.c.b16 %v5826, %v5826
      %v5859 = vpack.c.b16 %v5827, %v5827
      %v5860 = vpack.c.b16 %v5828, %v5828
      %v5861 = vpack.c.b16 %v5829, %v5829
      %v5862 = vpack.c.b16 %v5830, %v5830
      %v5863 = vpack.c.b16 %v5831, %v5831
      %v5864 = vpack.c.b16 %v5832, %v5832
      %v5865 = vpack.c.b16 %v5833, %v5833
      %v5866 = vpack.c.b16 %v5834, %v5834
      %v5867 = vpack.c.b16 %v5835, %v5835
      %v5868 = vpack.c.b16 %v5836, %v5836
      %v5869 = vpack.c.b16 %v5837, %v5837
      %v5870 = vpack.c.b16 %v5838, %v5838
      %v5871 = vpack.c.b16 %v5839, %v5839
      %v5872 = vpack.c.b16 %v5840, %v5840
      %v5873 = vpack.c.b16 %v5841, %v5841
      %v5874 = vpack.c.b16 %v5842, %v5842
      %v5875 = vpack.c.b16 %v5843, %v5843
      %v5876 = vpack.c.b16 %v5844, %v5844
      %v5877 = vpack.c.b16 %v5845, %v5845
      %v5878 = vpack.c.b16 %v5846, %v5846
      %v5879 = vpack.c.b16 %v5847, %v5847
      %v5880 = vpack.c.b16 %v5848, %v5848
      %v5881 = vpack.c.b16 %v5849, %v5849
      %v5882 = vpack.c.b16 %v5850, %v5850
      %v5883 = vpack.c.b16 %v5851, %v5851
      %v5884 = vpack.c.b16 %v5852, %v5852
      %5917 = vst [vmem:[%s221] sm:$0xf] %v5853
      %5918 = vst [vmem:[%s221 + $0x4] sm:$0xf] %v5854
      %5919 = vst [vmem:[%s221 + $0x8] sm:$0xf] %v5855
      %5920 = vst [vmem:[%s221 + $0xc] sm:$0xf] %v5856
      %5921 = vst [vmem:[%s221 + $0x10] sm:$0xf] %v5857
      %5922 = vst [vmem:[%s221 + $0x14] sm:$0xf] %v5858
      %5923 = vst [vmem:[%s221 + $0x18] sm:$0xf] %v5859
      %5924 = vst [vmem:[%s221 + $0x1c] sm:$0xf] %v5860
      %5925 = vst [vmem:[%s221 + $0x20] sm:$0xf] %v5861
      %5926 = vst [vmem:[%s221 + $0x24] sm:$0xf] %v5862
      %5927 = vst [vmem:[%s221 + $0x28] sm:$0xf] %v5863
      %5928 = vst [vmem:[%s221 + $0x2c] sm:$0xf] %v5864
      %5929 = vst [vmem:[%s221 + $0x30] sm:$0xf] %v5865
      %5930 = vst [vmem:[%s221 + $0x34] sm:$0xf] %v5866
      %5931 = vst [vmem:[%s221 + $0x38] sm:$0xf] %v5867
      %5932 = vst [vmem:[%s221 + $0x3c] sm:$0xf] %v5868
      %5933 = vst [vmem:[%s221 + $0x40] sm:$0xf] %v5869
      %5934 = vst [vmem:[%s221 + $0x44] sm:$0xf] %v5870
      %5935 = vst [vmem:[%s221 + $0x48] sm:$0xf] %v5871
      %5936 = vst [vmem:[%s221 + $0x4c] sm:$0xf] %v5872
      %5937 = vst [vmem:[%s221 + $0x50] sm:$0xf] %v5873
      %5938 = vst [vmem:[%s221 + $0x54] sm:$0xf] %v5874
      %5939 = vst [vmem:[%s221 + $0x58] sm:$0xf] %v5875
      %5940 = vst [vmem:[%s221 + $0x5c] sm:$0xf] %v5876
      %5941 = vst [vmem:[%s221 + $0x60] sm:$0xf] %v5877
      %5942 = vst [vmem:[%s221 + $0x64] sm:$0xf] %v5878
      %5943 = vst [vmem:[%s221 + $0x68] sm:$0xf] %v5879
      %5944 = vst [vmem:[%s221 + $0x6c] sm:$0xf] %v5880
      %5945 = vst [vmem:[%s221 + $0x70] sm:$0xf] %v5881
      %5946 = vst [vmem:[%s221 + $0x74] sm:$0xf] %v5882
      %5947 = vst [vmem:[%s221 + $0x78] sm:$0xf] %v5883
      %5948 = vst [vmem:[%s221 + $0x7c] sm:$0xf] %v5884
      %s5949 = smul.u32 16, %s20
      %p5950 = scmp.lt.s32.totalorder %s19, 1
      %s5951 = scalar_select %p5950, %s19, 1
      %p5952 = scmp.lt.s32.totalorder %s5949, 15
      %s5953 = scalar_select %p5952, %s5949, 15
      %s5954 = smul.addr %s5953, 2
      %s5955 = smul.addr %s5951, 32
      %s5956 = sadd.s32 %s5954, %s5955
      %s5957 = smul.addr %s5956, 4
      %s5958 = scalar_lea.vmem %s4, %s5957
      // Predicated region
      $region53: #{convx_forward.1} parent=35 // pred_check
        %p5959 = pneg %p136
      $region54: #{convx_forward.1} parent=35 // pred_check_branch
        %5961 = sbr.rel (%p5959) target = $region56
      $region55: #{convx_forward.1} parent=35 // pred_region
        %s5962 = smul.u32 16, %s20
      $region56: #{convx_forward.1} parent=35 // pred_fallthru
        _
    $region36: #{convx_forward.1} parent=5 // pred_fallthru
      _
    %p5963 = scmp.le.s32.totalorder 2, %s10
    // Predicated region
    $region57: #{convx_forward.1} parent=5 // pred_check
      %p5964 = pneg %p5963
    $region58: #{convx_forward.1} parent=5 // pred_check_branch
      %5966 = sbr.rel (%p5964) target = $region60
    $region59: #{convx_forward.1} parent=5 // pred_region
      %s5967 = ssub.s32 %s10, 2
      // Predicated region
      $region61: #{convx_forward.1} parent=59 // pred_check
        %p5968 = pneg %p142
      $region62: #{convx_forward.1} parent=59 // pred_check_branch
        %5970 = sbr.rel (%p5968) target = $region64
      $region63: #{convx_forward.1} parent=59 // pred_region
        %s5971 = smul.u32 16, %s22
        %p5972 = scmp.lt.s32.totalorder %s21, 1
        %s5973 = scalar_select %p5972, %s21, 1
        %p5974 = scmp.lt.s32.totalorder %s5971, 15
        %s5975 = scalar_select %p5974, %s5971, 15
        %s5976 = smul.addr %s5975, 2
        %s5977 = smul.addr %s5973, 32
        %s5978 = sadd.s32 %s5976, %s5977
        %s5979 = smul.addr %s5978, 4
        %s5980 = scalar_lea.vmem %s4, %s5979
      $region64: #{convx_forward.1} parent=59 // pred_fallthru
        _
    $region60: #{convx_forward.1} parent=5 // pred_fallthru
      _
  $region6: #{convx_forward.1} parent=0 // loop_footer
    %s14 = sadd.s32 1, %s10
  $region7: #{convx_forward.1} parent=0 // loop_footer_branch
    %9 = sbr.rel target = $region3
  $region8: #{convx_forward.1} parent=0 // loop_exit
    _

</llo_original>
